<compile_context>
chip_gen: v7x
topology: tpu7x:2x2x1
jax: 0.10.0
libtpu: 0.0.40
codegen_flags: <defaults>
</compile_context>

<pallas_src>
import math
from functools import partial

import jax
import jax.numpy as jnp
from jax import lax
from jax.experimental import pallas as pl
from jax.experimental.pallas import tpu as pltpu


# ------------------------------ fused layer kernel ------------------------------

def _vlsa_layer_kernel(depth_ref, tgt_ref, mem_ref,
                       wqkv_ref, bqkv_ref, wo_ref, bo_ref,
                       ln_g_ref, ln_b_ref, w1_ref, b1_ref, w2_ref, b2_ref,
                       vis_ref, txt_ref, dep_ref,
                       *, nhead, eps, compute_dtype):
    s_d, B, D = depth_ref.shape
    s_t = tgt_ref.shape[0]
    s_m = mem_ref.shape[0]
    S = s_d + s_t + s_m
    dk = D // nhead
    scale = 1.0 / math.sqrt(dk)
    cdt = compute_dtype

    # Weights stay VMEM-resident for the whole call (one DMA each).
    wqkv = wqkv_ref[...]                          # (D, 3D)  bf16
    bqkv = bqkv_ref[...]                          # (1, 3D)  f32
    wo, bo = wo_ref[...], bo_ref[...]             # (D, D) bf16, (1, D) f32
    gamma, beta = ln_g_ref[...], ln_b_ref[...]    # (1, D) f32
    w1, b1 = w1_ref[...], b1_ref[...]             # (D, F) bf16, (1, F) f32
    w2, b2 = w2_ref[...], b2_ref[...]             # (F, D) bf16, (1, D) f32

    d_all = depth_ref[...]                        # (s_d, B, D)
    t_all = tgt_ref[...]                          # (s_t, B, D)
    m_all = mem_ref[...]                          # (s_m, B, D)

    # Static loop over the (small) batch.  For large B this would become a ("parallel",)
    # grid axis so the v7x megacore can split batches across its two TensorCores.
    for b in range(B):
        # Sequence concat happens in VMEM (previously an HBM concat in the wrapper).
        x = jnp.concatenate(
            [d_all[:, b, :], t_all[:, b, :], m_all[:, b, :]], axis=0
        ).astype(jnp.float32)                                          # (S, D) f32
        xc = x.astype(cdt)

        # ---- fused QKV projection: one lane-dense (S, 3D) MXU pass ----
        qkv = jnp.dot(xc, wqkv, preferred_element_type=jnp.float32) + bqkv
        q = (qkv[:, 0:D] * scale).astype(cdt)                # fold 1/sqrt(dk) into q once
        kt = jnp.transpose(qkv[:, D:2 * D]).astype(cdt)      # (D, S): one transpose/batch
        v = qkv[:, 2 * D:3 * D].astype(cdt)

        # ---- per-head attention (heads = static lane slices; nhead is small) ----
        # TODO(synk): for large S switch to an online-softmax (flash) tiling over keys
        # instead of materializing the full (S, S) score matrix per head.
        ctx_heads = []
        for h in range(nhead):
            lo = h * dk
            s = jnp.dot(q[:, lo:lo + dk], kt[lo:lo + dk, :],
                        preferred_element_type=jnp.float32)            # (S, S) f32
            m_ = jnp.max(s, axis=-1, keepdims=True)
            p = jnp.exp(s - m_)                                        # f32 softmax
            p = p * pl.reciprocal(jnp.sum(p, axis=-1, keepdims=True), approx=True)
            ctx_heads.append(jnp.dot(p.astype(cdt), v[:, lo:lo + dk],
                                     preferred_element_type=jnp.float32))   # (S, dk)

        # Head merge (lane concat) + ONE K=D output projection.
        ctx = jnp.concatenate(ctx_heads, axis=-1).astype(cdt)           # (S, D)
        attn = jnp.dot(ctx, wo, preferred_element_type=jnp.float32) + bo

        # ---- residual + LayerNorm (norm1); dropout = identity in eval ----
        y = x + attn
        mu = jnp.mean(y, axis=-1, keepdims=True)
        var = jnp.mean((y - mu) ** 2, axis=-1, keepdims=True)
        t = (y - mu) * lax.rsqrt(var + eps) * gamma + beta              # (S, D) f32

        # ---- FFN: fc1 -> ReLU -> fc2, residual add (module has NO second LN) ----
        h1 = jnp.maximum(
            jnp.dot(t.astype(cdt), w1, preferred_element_type=jnp.float32) + b1, 0.0)
        ffn = jnp.dot(h1.astype(cdt), w2, preferred_element_type=jnp.float32) + b2
        out = t + ffn                                                   # (S, D) f32

        # ---- split + store directly in the module's (S_part, B, D) layout ----
        dep_ref[:, b:b + 1, :] = out[0:s_d][:, None, :].astype(dep_ref.dtype)
        vis_ref[:, b:b + 1, :] = out[s_d:s_d + s_t][:, None, :].astype(vis_ref.dtype)
        txt_ref[:, b:b + 1, :] = out[s_d + s_t:S][:, None, :].astype(txt_ref.dtype)


# ------------------------------ wrapper ------------------------------

def vlsa_adapter_depth_forward(tgt, memory, depth, params, nhead,
                               compute_dtype=jnp.bfloat16):
    """tgt/memory/depth: (S_*, B, D) seq-first, exactly like the PyTorch module.
    Returns (vis, txt, depth) matching VLSAadapter_depth.forward (eval mode)."""
    s_d, B, D = depth.shape
    s_t = tgt.shape[0]
    s_m = memory.shape[0]
    assert D % nhead == 0
    D3 = 3 * D
    F = params["w1"].shape[1]
    f32 = jnp.float32

    kernel = partial(_vlsa_layer_kernel, nhead=nhead, eps=1e-5,
                     compute_dtype=compute_dtype)

    c3 = lambda i: (0, 0, 0)          # everything resident: one DMA per operand
    c2 = lambda i: (0, 0)

    vis, txt, dep = pl.pallas_call(
        kernel,
        out_shape=(
            jax.ShapeDtypeStruct((s_t, B, D), tgt.dtype),      # vis  (tgt rows)
            jax.ShapeDtypeStruct((s_m, B, D), memory.dtype),   # txt  (memory rows)
            jax.ShapeDtypeStruct((s_d, B, D), depth.dtype),    # depth rows
        ),
        grid=(1,),
        in_specs=[
            pl.BlockSpec((s_d, B, D), c3),   # depth   (native (S,B,D) layout)
            pl.BlockSpec((s_t, B, D), c3),   # tgt
            pl.BlockSpec((s_m, B, D), c3),   # memory
            pl.BlockSpec((D, D3), c2),       # fused Wqkv (bf16)
            pl.BlockSpec((1, D3), c2),       # bqkv
            pl.BlockSpec((D, D), c2),        # Wo (bf16)
            pl.BlockSpec((1, D), c2),        # bo
            pl.BlockSpec((1, D), c2),        # LN gamma
            pl.BlockSpec((1, D), c2),        # LN beta
            pl.BlockSpec((D, F), c2),        # fc1 W (bf16)
            pl.BlockSpec((1, F), c2),        # fc1 b
            pl.BlockSpec((F, D), c2),        # fc2 W (bf16)
            pl.BlockSpec((1, D), c2),        # fc2 b
        ],
        out_specs=(
            pl.BlockSpec((s_t, B, D), c3),
            pl.BlockSpec((s_m, B, D), c3),
            pl.BlockSpec((s_d, B, D), c3),
        ),
        compiler_params=pltpu.CompilerParams(
            dimension_semantics=("arbitrary",),
            vmem_limit_bytes=64 * 1024 * 1024),
    )(depth, tgt, memory,
      params["wqkv"].astype(compute_dtype), params["bqkv"].reshape(1, D3).astype(f32),
      params["wo"].astype(compute_dtype), params["bo"].reshape(1, D).astype(f32),
      params["ln_g"].reshape(1, D).astype(f32), params["ln_b"].reshape(1, D).astype(f32),
      params["w1"].astype(compute_dtype), params["b1"].reshape(1, F).astype(f32),
      params["w2"].astype(compute_dtype), params["b2"].reshape(1, D).astype(f32))
    return vis, txt, dep


# ------------------------------ params / reference ------------------------------

def init_params(key, d_model, dim_ffn):
    ks = jax.random.split(key, 10)

    def u(k, shape, fan_in):
        bound = 1.0 / math.sqrt(fan_in)
        return jax.random.uniform(k, shape, jnp.float32, -bound, bound)

    return {
        "wqkv": u(ks[0], (d_model, 3 * d_model), d_model),   # [Wq | Wk | Wv] columns
        "bqkv": u(ks[1], (3 * d_model,), d_model),
        "wo": u(ks[2], (d_model, d_model), d_model),
        "bo": u(ks[3], (d_model,), d_model),
        "ln_g": 1.0 + 0.1 * jax.random.normal(ks[4], (d_model,), jnp.float32),
        "ln_b": 0.1 * jax.random.normal(ks[5], (d_model,), jnp.float32),
        "w1": u(ks[6], (d_model, dim_ffn), d_model),
        "b1": u(ks[7], (dim_ffn,), d_model),
        "w2": u(ks[8], (dim_ffn, d_model), dim_ffn),
        "b2": u(ks[9], (d_model,), dim_ffn),
    }


def _reference(tgt, memory, depth, params, nhead):
    """Pure-jnp f32 reference matching the PyTorch forward (eval mode)."""
    with jax.default_matmul_precision("float32"):
        x = jnp.concatenate([depth, tgt, memory], axis=0)          # (S, B, D)
        S, B, D = x.shape
        dk = D // nhead
        qkv = jnp.einsum("sbd,de->sbe", x, params["wqkv"]) + params["bqkv"]
        q, k, v = jnp.split(qkv, 3, axis=-1)
        sh = lambda t: t.reshape(S, B, nhead, dk).transpose(1, 2, 0, 3)   # (B,h,S,dk)
        qh, kh, vh = sh(q), sh(k), sh(v)
        s = jnp.einsum("bhqd,bhkd->bhqk", qh, kh) / math.sqrt(dk)
        p = jax.nn.softmax(s, axis=-1)
        ctx = jnp.einsum("bhqk,bhkd->bhqd", p, vh).transpose(2, 0, 1, 3).reshape(S, B, D)
        attn = ctx @ params["wo"] + params["bo"]
        y = x + attn
        mean = y.mean(-1, keepdims=True)
        var = ((y - mean) ** 2).mean(-1, keepdims=True)
        t = (y - mean) / jnp.sqrt(var + 1e-5) * params["ln_g"] + params["ln_b"]
        out = t + jax.nn.relu(t @ params["w1"] + params["b1"]) @ params["w2"] + params["b2"]
    s_d, s_t = depth.shape[0], tgt.shape[0]
    return out[s_d:s_d + s_t], out[s_d + s_t:], out[:s_d]


# ------------------------------ demo ------------------------------

if __name__ == "__main__":
    d_model, nhead, dim_ffn = 128, 4, 128          # lane-dense D; module default FFN width
    B = 2
    s_depth, s_tgt, s_mem = 16, 24, 8              # concat seq length S = 48

    key = jax.random.PRNGKey(0)
    k1, k2, k3, k4 = jax.random.split(key, 4)
    depth = jax.random.normal(k1, (s_depth, B, d_model), jnp.float32)
    tgt = jax.random.normal(k2, (s_tgt, B, d_model), jnp.float32)
    memory = jax.random.normal(k3, (s_mem, B, d_model), jnp.float32)
    params = init_params(k4, d_model, dim_ffn)

    rvis, rtxt, rdep = _reference(tgt, memory, depth, params, nhead)

    # f32 path: validates the algorithm against the PyTorch-equivalent reference.
    fwd32 = jax.jit(partial(vlsa_adapter_depth_forward, nhead=nhead,
                            compute_dtype=jnp.float32))
    vis32, txt32, dep32 = jax.block_until_ready(fwd32(tgt, memory, depth, params))

    # bf16-MXU path: the fast path (f32 accumulation, f32 softmax/LayerNorm).
    fwd = jax.jit(partial(vlsa_adapter_depth_forward, nhead=nhead))
    vis, txt, dep = jax.block_until_ready(fwd(tgt, memory, depth, params))

    assert vis.shape == (s_tgt, B, d_model)
    assert txt.shape == (s_mem, B, d_model)
    assert dep.shape == (s_depth, B, d_model)

    for a, r in ((vis32, rvis), (txt32, rtxt), (dep32, rdep)):
        assert bool(jnp.all(jnp.isfinite(a)))
        assert float(jnp.max(jnp.abs(a - r))) < 2e-2
    for a, r in ((vis, rvis), (txt, rtxt), (dep, rdep)):
        assert bool(jnp.all(jnp.isfinite(a)))
        assert float(jnp.max(jnp.abs(a - r))) < 6e-2

    print("KERNEL_OK")
</pallas_src>

<mosaic_0001>
module attributes {stable_mosaic.version = 11 : i64} {
  func.func @_vlsa_layer_kernel(%arg0: i32, %arg1: memref<16x2x128xf32, #tpu.memory_space<vmem>>, %arg2: memref<24x2x128xf32, #tpu.memory_space<vmem>>, %arg3: memref<8x2x128xf32, #tpu.memory_space<vmem>>, %arg4: memref<128x384xf32, #tpu.memory_space<vmem>>, %arg5: memref<1x384xf32, #tpu.memory_space<vmem>>, %arg6: memref<128x128xf32, #tpu.memory_space<vmem>>, %arg7: memref<1x128xf32, #tpu.memory_space<vmem>>, %arg8: memref<1x128xf32, #tpu.memory_space<vmem>>, %arg9: memref<1x128xf32, #tpu.memory_space<vmem>>, %arg10: memref<128x128xf32, #tpu.memory_space<vmem>>, %arg11: memref<1x128xf32, #tpu.memory_space<vmem>>, %arg12: memref<128x128xf32, #tpu.memory_space<vmem>>, %arg13: memref<1x128xf32, #tpu.memory_space<vmem>>, %arg14: memref<24x2x128xf32, #tpu.memory_space<vmem>>, %arg15: memref<8x2x128xf32, #tpu.memory_space<vmem>>, %arg16: memref<16x2x128xf32, #tpu.memory_space<vmem>>) attributes {dimension_semantics = [#tpu.dimension_semantics<arbitrary>], iteration_bounds = array<i64: 1>, scalar_prefetch = 0 : i64, scratch_operands = 0 : i64, tpu.core_type = #tpu.core_type<tc>, window_params = [{pipeline_mode = #tpu.pipeline_mode<synchronous>, transform_indices = @transform_0, window_bounds = array<i64: 16, 2, 128>}, {pipeline_mode = #tpu.pipeline_mode<synchronous>, transform_indices = @transform_1, window_bounds = array<i64: 24, 2, 128>}, {pipeline_mode = #tpu.pipeline_mode<synchronous>, transform_indices = @transform_2, window_bounds = array<i64: 8, 2, 128>}, {pipeline_mode = #tpu.pipeline_mode<synchronous>, transform_indices = @transform_3, window_bounds = array<i64: 128, 384>}, {pipeline_mode = #tpu.pipeline_mode<synchronous>, transform_indices = @transform_4, window_bounds = array<i64: 1, 384>}, {pipeline_mode = #tpu.pipeline_mode<synchronous>, transform_indices = @transform_5, window_bounds = array<i64: 128, 128>}, {pipeline_mode = #tpu.pipeline_mode<synchronous>, transform_indices = @transform_6, window_bounds = array<i64: 1, 128>}, {pipeline_mode = #tpu.pipeline_mode<synchronous>, transform_indices = @transform_7, window_bounds = array<i64: 1, 128>}, {pipeline_mode = #tpu.pipeline_mode<synchronous>, transform_indices = @transform_8, window_bounds = array<i64: 1, 128>}, {pipeline_mode = #tpu.pipeline_mode<synchronous>, transform_indices = @transform_9, window_bounds = array<i64: 128, 128>}, {pipeline_mode = #tpu.pipeline_mode<synchronous>, transform_indices = @transform_10, window_bounds = array<i64: 1, 128>}, {pipeline_mode = #tpu.pipeline_mode<synchronous>, transform_indices = @transform_11, window_bounds = array<i64: 128, 128>}, {pipeline_mode = #tpu.pipeline_mode<synchronous>, transform_indices = @transform_12, window_bounds = array<i64: 1, 128>}, {pipeline_mode = #tpu.pipeline_mode<synchronous>, transform_indices = @transform_13, window_bounds = array<i64: 24, 2, 128>}, {pipeline_mode = #tpu.pipeline_mode<synchronous>, transform_indices = @transform_14, window_bounds = array<i64: 8, 2, 128>}, {pipeline_mode = #tpu.pipeline_mode<synchronous>, transform_indices = @transform_15, window_bounds = array<i64: 16, 2, 128>}]} {
    %c0 = arith.constant 0 : index
    %c0_0 = arith.constant 0 : index
    %0 = vector.load %arg4[%c0, %c0_0] : memref<128x384xf32, #tpu.memory_space<vmem>>, vector<128x384xf32>
    %c0_1 = arith.constant 0 : index
    %c0_2 = arith.constant 0 : index
    %1 = vector.load %arg5[%c0_1, %c0_2] : memref<1x384xf32, #tpu.memory_space<vmem>>, vector<1x384xf32>
    %c0_3 = arith.constant 0 : index
    %c0_4 = arith.constant 0 : index
    %2 = vector.load %arg6[%c0_3, %c0_4] : memref<128x128xf32, #tpu.memory_space<vmem>>, vector<128x128xf32>
    %c0_5 = arith.constant 0 : index
    %c0_6 = arith.constant 0 : index
    %3 = vector.load %arg7[%c0_5, %c0_6] : memref<1x128xf32, #tpu.memory_space<vmem>>, vector<1x128xf32>
    %c0_7 = arith.constant 0 : index
    %c0_8 = arith.constant 0 : index
    %4 = vector.load %arg8[%c0_7, %c0_8] : memref<1x128xf32, #tpu.memory_space<vmem>>, vector<1x128xf32>
    %c0_9 = arith.constant 0 : index
    %c0_10 = arith.constant 0 : index
    %5 = vector.load %arg9[%c0_9, %c0_10] : memref<1x128xf32, #tpu.memory_space<vmem>>, vector<1x128xf32>
    %c0_11 = arith.constant 0 : index
    %c0_12 = arith.constant 0 : index
    %6 = vector.load %arg10[%c0_11, %c0_12] : memref<128x128xf32, #tpu.memory_space<vmem>>, vector<128x128xf32>
    %c0_13 = arith.constant 0 : index
    %c0_14 = arith.constant 0 : index
    %7 = vector.load %arg11[%c0_13, %c0_14] : memref<1x128xf32, #tpu.memory_space<vmem>>, vector<1x128xf32>
    %c0_15 = arith.constant 0 : index
    %c0_16 = arith.constant 0 : index
    %8 = vector.load %arg12[%c0_15, %c0_16] : memref<128x128xf32, #tpu.memory_space<vmem>>, vector<128x128xf32>
    %c0_17 = arith.constant 0 : index
    %c0_18 = arith.constant 0 : index
    %9 = vector.load %arg13[%c0_17, %c0_18] : memref<1x128xf32, #tpu.memory_space<vmem>>, vector<1x128xf32>
    %c0_19 = arith.constant 0 : index
    %c0_20 = arith.constant 0 : index
    %c0_21 = arith.constant 0 : index
    %10 = vector.load %arg1[%c0_19, %c0_20, %c0_21] : memref<16x2x128xf32, #tpu.memory_space<vmem>>, vector<16x2x128xf32>
    %c0_22 = arith.constant 0 : index
    %c0_23 = arith.constant 0 : index
    %c0_24 = arith.constant 0 : index
    %11 = vector.load %arg2[%c0_22, %c0_23, %c0_24] : memref<24x2x128xf32, #tpu.memory_space<vmem>>, vector<24x2x128xf32>
    %c0_25 = arith.constant 0 : index
    %c0_26 = arith.constant 0 : index
    %c0_27 = arith.constant 0 : index
    %12 = vector.load %arg3[%c0_25, %c0_26, %c0_27] : memref<8x2x128xf32, #tpu.memory_space<vmem>>, vector<8x2x128xf32>
    %13 = vector.extract_strided_slice %10 {offsets = [0, 0, 0], sizes = [16, 1, 128], strides = [1, 1, 1]} : vector<16x2x128xf32> to vector<16x1x128xf32>
    %14 = vector.shape_cast %13 : vector<16x1x128xf32> to vector<16x128xf32>
    %15 = vector.extract_strided_slice %11 {offsets = [0, 0, 0], sizes = [24, 1, 128], strides = [1, 1, 1]} : vector<24x2x128xf32> to vector<24x1x128xf32>
    %16 = vector.shape_cast %15 : vector<24x1x128xf32> to vector<24x128xf32>
    %17 = vector.extract_strided_slice %12 {offsets = [0, 0, 0], sizes = [8, 1, 128], strides = [1, 1, 1]} : vector<8x2x128xf32> to vector<8x1x128xf32>
    %18 = vector.shape_cast %17 : vector<8x1x128xf32> to vector<8x128xf32>
    %19 = tpu.concatenate %14, %16, %18 in 0 : vector<16x128xf32>, vector<24x128xf32>, vector<8x128xf32> -> vector<48x128xf32>
    %cst = arith.constant dense<0.000000e+00> : vector<48x384xf32>
    %20 = tpu.matmul %19, %0, %cst {dimension_numbers = #tpu.dot_dimension_numbers<[1], [0], [0], [1], [0, 0, 1, 1], [], []>} : vector<48x128xf32>, vector<128x384xf32>, vector<48x384xf32> -> vector<48x384xf32>
    %21 = vector.broadcast %1 : vector<1x384xf32> to vector<48x384xf32>
    %22 = arith.addf %20, %21 : vector<48x384xf32>
    %23 = vector.extract_strided_slice %22 {offsets = [0, 0], sizes = [48, 128], strides = [1, 1]} : vector<48x384xf32> to vector<48x128xf32>
    %cst_28 = arith.constant 0.176776692 : f32
    %24 = vector.broadcast %cst_28 : f32 to vector<48x128xf32>
    %25 = arith.mulf %23, %24 : vector<48x128xf32>
    %26 = vector.extract_strided_slice %22 {offsets = [0, 128], sizes = [48, 128], strides = [1, 1]} : vector<48x384xf32> to vector<48x128xf32>
    %27 = tpu.transpose %26, [1, 0] : vector<48x128xf32> -> vector<128x48xf32>
    %28 = vector.extract_strided_slice %22 {offsets = [0, 256], sizes = [48, 128], strides = [1, 1]} : vector<48x384xf32> to vector<48x128xf32>
    %29 = vector.extract_strided_slice %25 {offsets = [0, 0], sizes = [48, 32], strides = [1, 1]} : vector<48x128xf32> to vector<48x32xf32>
    %30 = vector.extract_strided_slice %27 {offsets = [0, 0], sizes = [32, 48], strides = [1, 1]} : vector<128x48xf32> to vector<32x48xf32>
    %cst_29 = arith.constant dense<0.000000e+00> : vector<48x48xf32>
    %31 = tpu.matmul %29, %30, %cst_29 {dimension_numbers = #tpu.dot_dimension_numbers<[1], [0], [0], [1], [0, 0, 1, 1], [], []>} : vector<48x32xf32>, vector<32x48xf32>, vector<48x48xf32> -> vector<48x48xf32>
    %cst_30 = arith.constant dense<0xFF800000> : vector<48xf32>
    %32 = vector.multi_reduction <maximumf>, %31, %cst_30 [1] : vector<48x48xf32> to vector<48xf32>
    %33 = vector.shape_cast %32 : vector<48xf32> to vector<48x1xf32>
    %34 = vector.broadcast %33 : vector<48x1xf32> to vector<48x48xf32>
    %35 = arith.subf %31, %34 : vector<48x48xf32>
    %36 = math.exp %35 : vector<48x48xf32>
    %cst_31 = arith.constant dense<0.000000e+00> : vector<48xf32>
    %37 = vector.multi_reduction <add>, %36, %cst_31 [1] : vector<48x48xf32> to vector<48xf32>
    %38 = vector.shape_cast %37 : vector<48xf32> to vector<48x1xf32>
    %39 = tpu.reciprocal %38 {approx = true} : vector<48x1xf32> -> vector<48x1xf32>
    %40 = vector.broadcast %39 : vector<48x1xf32> to vector<48x48xf32>
    %41 = arith.mulf %36, %40 : vector<48x48xf32>
    %42 = vector.extract_strided_slice %28 {offsets = [0, 0], sizes = [48, 32], strides = [1, 1]} : vector<48x128xf32> to vector<48x32xf32>
    %cst_32 = arith.constant dense<0.000000e+00> : vector<48x32xf32>
    %43 = tpu.matmul %41, %42, %cst_32 {dimension_numbers = #tpu.dot_dimension_numbers<[1], [0], [0], [1], [0, 0, 1, 1], [], []>} : vector<48x48xf32>, vector<48x32xf32>, vector<48x32xf32> -> vector<48x32xf32>
    %44 = vector.extract_strided_slice %25 {offsets = [0, 32], sizes = [48, 32], strides = [1, 1]} : vector<48x128xf32> to vector<48x32xf32>
    %45 = vector.extract_strided_slice %27 {offsets = [32, 0], sizes = [32, 48], strides = [1, 1]} : vector<128x48xf32> to vector<32x48xf32>
    %cst_33 = arith.constant dense<0.000000e+00> : vector<48x48xf32>
    %46 = tpu.matmul %44, %45, %cst_33 {dimension_numbers = #tpu.dot_dimension_numbers<[1], [0], [0], [1], [0, 0, 1, 1], [], []>} : vector<48x32xf32>, vector<32x48xf32>, vector<48x48xf32> -> vector<48x48xf32>
    %cst_34 = arith.constant dense<0xFF800000> : vector<48xf32>
    %47 = vector.multi_reduction <maximumf>, %46, %cst_34 [1] : vector<48x48xf32> to vector<48xf32>
    %48 = vector.shape_cast %47 : vector<48xf32> to vector<48x1xf32>
    %49 = vector.broadcast %48 : vector<48x1xf32> to vector<48x48xf32>
    %50 = arith.subf %46, %49 : vector<48x48xf32>
    %51 = math.exp %50 : vector<48x48xf32>
    %cst_35 = arith.constant dense<0.000000e+00> : vector<48xf32>
    %52 = vector.multi_reduction <add>, %51, %cst_35 [1] : vector<48x48xf32> to vector<48xf32>
    %53 = vector.shape_cast %52 : vector<48xf32> to vector<48x1xf32>
    %54 = tpu.reciprocal %53 {approx = true} : vector<48x1xf32> -> vector<48x1xf32>
    %55 = vector.broadcast %54 : vector<48x1xf32> to vector<48x48xf32>
    %56 = arith.mulf %51, %55 : vector<48x48xf32>
    %57 = vector.extract_strided_slice %28 {offsets = [0, 32], sizes = [48, 32], strides = [1, 1]} : vector<48x128xf32> to vector<48x32xf32>
    %cst_36 = arith.constant dense<0.000000e+00> : vector<48x32xf32>
    %58 = tpu.matmul %56, %57, %cst_36 {dimension_numbers = #tpu.dot_dimension_numbers<[1], [0], [0], [1], [0, 0, 1, 1], [], []>} : vector<48x48xf32>, vector<48x32xf32>, vector<48x32xf32> -> vector<48x32xf32>
    %59 = vector.extract_strided_slice %25 {offsets = [0, 64], sizes = [48, 32], strides = [1, 1]} : vector<48x128xf32> to vector<48x32xf32>
    %60 = vector.extract_strided_slice %27 {offsets = [64, 0], sizes = [32, 48], strides = [1, 1]} : vector<128x48xf32> to vector<32x48xf32>
    %cst_37 = arith.constant dense<0.000000e+00> : vector<48x48xf32>
    %61 = tpu.matmul %59, %60, %cst_37 {dimension_numbers = #tpu.dot_dimension_numbers<[1], [0], [0], [1], [0, 0, 1, 1], [], []>} : vector<48x32xf32>, vector<32x48xf32>, vector<48x48xf32> -> vector<48x48xf32>
    %cst_38 = arith.constant dense<0xFF800000> : vector<48xf32>
    %62 = vector.multi_reduction <maximumf>, %61, %cst_38 [1] : vector<48x48xf32> to vector<48xf32>
    %63 = vector.shape_cast %62 : vector<48xf32> to vector<48x1xf32>
    %64 = vector.broadcast %63 : vector<48x1xf32> to vector<48x48xf32>
    %65 = arith.subf %61, %64 : vector<48x48xf32>
    %66 = math.exp %65 : vector<48x48xf32>
    %cst_39 = arith.constant dense<0.000000e+00> : vector<48xf32>
    %67 = vector.multi_reduction <add>, %66, %cst_39 [1] : vector<48x48xf32> to vector<48xf32>
    %68 = vector.shape_cast %67 : vector<48xf32> to vector<48x1xf32>
    %69 = tpu.reciprocal %68 {approx = true} : vector<48x1xf32> -> vector<48x1xf32>
    %70 = vector.broadcast %69 : vector<48x1xf32> to vector<48x48xf32>
    %71 = arith.mulf %66, %70 : vector<48x48xf32>
    %72 = vector.extract_strided_slice %28 {offsets = [0, 64], sizes = [48, 32], strides = [1, 1]} : vector<48x128xf32> to vector<48x32xf32>
    %cst_40 = arith.constant dense<0.000000e+00> : vector<48x32xf32>
    %73 = tpu.matmul %71, %72, %cst_40 {dimension_numbers = #tpu.dot_dimension_numbers<[1], [0], [0], [1], [0, 0, 1, 1], [], []>} : vector<48x48xf32>, vector<48x32xf32>, vector<48x32xf32> -> vector<48x32xf32>
    %74 = vector.extract_strided_slice %25 {offsets = [0, 96], sizes = [48, 32], strides = [1, 1]} : vector<48x128xf32> to vector<48x32xf32>
    %75 = vector.extract_strided_slice %27 {offsets = [96, 0], sizes = [32, 48], strides = [1, 1]} : vector<128x48xf32> to vector<32x48xf32>
    %cst_41 = arith.constant dense<0.000000e+00> : vector<48x48xf32>
    %76 = tpu.matmul %74, %75, %cst_41 {dimension_numbers = #tpu.dot_dimension_numbers<[1], [0], [0], [1], [0, 0, 1, 1], [], []>} : vector<48x32xf32>, vector<32x48xf32>, vector<48x48xf32> -> vector<48x48xf32>
    %cst_42 = arith.constant dense<0xFF800000> : vector<48xf32>
    %77 = vector.multi_reduction <maximumf>, %76, %cst_42 [1] : vector<48x48xf32> to vector<48xf32>
    %78 = vector.shape_cast %77 : vector<48xf32> to vector<48x1xf32>
    %79 = vector.broadcast %78 : vector<48x1xf32> to vector<48x48xf32>
    %80 = arith.subf %76, %79 : vector<48x48xf32>
    %81 = math.exp %80 : vector<48x48xf32>
    %cst_43 = arith.constant dense<0.000000e+00> : vector<48xf32>
    %82 = vector.multi_reduction <add>, %81, %cst_43 [1] : vector<48x48xf32> to vector<48xf32>
    %83 = vector.shape_cast %82 : vector<48xf32> to vector<48x1xf32>
    %84 = tpu.reciprocal %83 {approx = true} : vector<48x1xf32> -> vector<48x1xf32>
    %85 = vector.broadcast %84 : vector<48x1xf32> to vector<48x48xf32>
    %86 = arith.mulf %81, %85 : vector<48x48xf32>
    %87 = vector.extract_strided_slice %28 {offsets = [0, 96], sizes = [48, 32], strides = [1, 1]} : vector<48x128xf32> to vector<48x32xf32>
    %cst_44 = arith.constant dense<0.000000e+00> : vector<48x32xf32>
    %88 = tpu.matmul %86, %87, %cst_44 {dimension_numbers = #tpu.dot_dimension_numbers<[1], [0], [0], [1], [0, 0, 1, 1], [], []>} : vector<48x48xf32>, vector<48x32xf32>, vector<48x32xf32> -> vector<48x32xf32>
    %89 = tpu.concatenate %43, %58, %73, %88 in 1 : vector<48x32xf32>, vector<48x32xf32>, vector<48x32xf32>, vector<48x32xf32> -> vector<48x128xf32>
    %cst_45 = arith.constant dense<0.000000e+00> : vector<48x128xf32>
    %90 = tpu.matmul %89, %2, %cst_45 {dimension_numbers = #tpu.dot_dimension_numbers<[1], [0], [0], [1], [0, 0, 1, 1], [], []>} : vector<48x128xf32>, vector<128x128xf32>, vector<48x128xf32> -> vector<48x128xf32>
    %91 = vector.broadcast %3 : vector<1x128xf32> to vector<48x128xf32>
    %92 = arith.addf %90, %91 : vector<48x128xf32>
    %93 = arith.addf %19, %92 : vector<48x128xf32>
    %cst_46 = arith.constant dense<0.000000e+00> : vector<48xf32>
    %94 = vector.multi_reduction <add>, %93, %cst_46 [1] : vector<48x128xf32> to vector<48xf32>
    %95 = vector.shape_cast %94 : vector<48xf32> to vector<48x1xf32>
    %cst_47 = arith.constant 1.280000e+02 : f32
    %96 = vector.broadcast %cst_47 : f32 to vector<48x1xf32>
    %97 = arith.divf %95, %96 : vector<48x1xf32>
    %98 = vector.broadcast %97 : vector<48x1xf32> to vector<48x128xf32>
    %99 = arith.subf %93, %98 : vector<48x128xf32>
    %100 = arith.mulf %99, %99 : vector<48x128xf32>
    %cst_48 = arith.constant dense<0.000000e+00> : vector<48xf32>
    %101 = vector.multi_reduction <add>, %100, %cst_48 [1] : vector<48x128xf32> to vector<48xf32>
    %102 = vector.shape_cast %101 : vector<48xf32> to vector<48x1xf32>
    %cst_49 = arith.constant 1.280000e+02 : f32
    %103 = vector.broadcast %cst_49 : f32 to vector<48x1xf32>
    %104 = arith.divf %102, %103 : vector<48x1xf32>
    %105 = vector.broadcast %97 : vector<48x1xf32> to vector<48x128xf32>
    %106 = arith.subf %93, %105 : vector<48x128xf32>
    %cst_50 = arith.constant 9.99999974E-6 : f32
    %107 = vector.broadcast %cst_50 : f32 to vector<48x1xf32>
    %108 = arith.addf %104, %107 : vector<48x1xf32>
    %109 = math.rsqrt %108 : vector<48x1xf32>
    %110 = vector.broadcast %109 : vector<48x1xf32> to vector<48x128xf32>
    %111 = arith.mulf %106, %110 : vector<48x128xf32>
    %112 = vector.broadcast %4 : vector<1x128xf32> to vector<48x128xf32>
    %113 = arith.mulf %111, %112 : vector<48x128xf32>
    %114 = vector.broadcast %5 : vector<1x128xf32> to vector<48x128xf32>
    %115 = arith.addf %113, %114 : vector<48x128xf32>
    %cst_51 = arith.constant dense<0.000000e+00> : vector<48x128xf32>
    %116 = tpu.matmul %115, %6, %cst_51 {dimension_numbers = #tpu.dot_dimension_numbers<[1], [0], [0], [1], [0, 0, 1, 1], [], []>} : vector<48x128xf32>, vector<128x128xf32>, vector<48x128xf32> -> vector<48x128xf32>
    %117 = vector.broadcast %7 : vector<1x128xf32> to vector<48x128xf32>
    %118 = arith.addf %116, %117 : vector<48x128xf32>
    %cst_52 = arith.constant 0.000000e+00 : f32
    %119 = vector.broadcast %cst_52 : f32 to vector<48x128xf32>
    %120 = arith.maximumf %118, %119 : vector<48x128xf32>
    %cst_53 = arith.constant dense<0.000000e+00> : vector<48x128xf32>
    %121 = tpu.matmul %120, %8, %cst_53 {dimension_numbers = #tpu.dot_dimension_numbers<[1], [0], [0], [1], [0, 0, 1, 1], [], []>} : vector<48x128xf32>, vector<128x128xf32>, vector<48x128xf32> -> vector<48x128xf32>
    %122 = vector.broadcast %9 : vector<1x128xf32> to vector<48x128xf32>
    %123 = arith.addf %121, %122 : vector<48x128xf32>
    %124 = arith.addf %115, %123 : vector<48x128xf32>
    %125 = vector.extract_strided_slice %124 {offsets = [0, 0], sizes = [16, 128], strides = [1, 1]} : vector<48x128xf32> to vector<16x128xf32>
    %126 = vector.shape_cast %125 : vector<16x128xf32> to vector<16x1x128xf32>
    %c0_54 = arith.constant 0 : index
    %c0_55 = arith.constant 0 : index
    %c0_56 = arith.constant 0 : index
    %127 = vector.load %arg16[%c0_54, %c0_55, %c0_56] : memref<16x2x128xf32, #tpu.memory_space<vmem>>, vector<16x1x128xf32>
    tpu.vector_store %arg16[%c0_54, %c0_55, %c0_56], %126 {strides = array<i32>} : memref<16x2x128xf32, #tpu.memory_space<vmem>>, vector<16x1x128xf32>,
    %128 = vector.extract_strided_slice %124 {offsets = [16, 0], sizes = [24, 128], strides = [1, 1]} : vector<48x128xf32> to vector<24x128xf32>
    %129 = vector.shape_cast %128 : vector<24x128xf32> to vector<24x1x128xf32>
    %c0_57 = arith.constant 0 : index
    %c0_58 = arith.constant 0 : index
    %c0_59 = arith.constant 0 : index
    %130 = vector.load %arg14[%c0_57, %c0_58, %c0_59] : memref<24x2x128xf32, #tpu.memory_space<vmem>>, vector<24x1x128xf32>
    tpu.vector_store %arg14[%c0_57, %c0_58, %c0_59], %129 {strides = array<i32>} : memref<24x2x128xf32, #tpu.memory_space<vmem>>, vector<24x1x128xf32>,
    %131 = vector.extract_strided_slice %124 {offsets = [40, 0], sizes = [8, 128], strides = [1, 1]} : vector<48x128xf32> to vector<8x128xf32>
    %132 = vector.shape_cast %131 : vector<8x128xf32> to vector<8x1x128xf32>
    %c0_60 = arith.constant 0 : index
    %c0_61 = arith.constant 0 : index
    %c0_62 = arith.constant 0 : index
    %133 = vector.load %arg15[%c0_60, %c0_61, %c0_62] : memref<8x2x128xf32, #tpu.memory_space<vmem>>, vector<8x1x128xf32>
    tpu.vector_store %arg15[%c0_60, %c0_61, %c0_62], %132 {strides = array<i32>} : memref<8x2x128xf32, #tpu.memory_space<vmem>>, vector<8x1x128xf32>,
    %134 = vector.extract_strided_slice %10 {offsets = [0, 1, 0], sizes = [16, 1, 128], strides = [1, 1, 1]} : vector<16x2x128xf32> to vector<16x1x128xf32>
    %135 = vector.shape_cast %134 : vector<16x1x128xf32> to vector<16x128xf32>
    %136 = vector.extract_strided_slice %11 {offsets = [0, 1, 0], sizes = [24, 1, 128], strides = [1, 1, 1]} : vector<24x2x128xf32> to vector<24x1x128xf32>
    %137 = vector.shape_cast %136 : vector<24x1x128xf32> to vector<24x128xf32>
    %138 = vector.extract_strided_slice %12 {offsets = [0, 1, 0], sizes = [8, 1, 128], strides = [1, 1, 1]} : vector<8x2x128xf32> to vector<8x1x128xf32>
    %139 = vector.shape_cast %138 : vector<8x1x128xf32> to vector<8x128xf32>
    %140 = tpu.concatenate %135, %137, %139 in 0 : vector<16x128xf32>, vector<24x128xf32>, vector<8x128xf32> -> vector<48x128xf32>
    %cst_63 = arith.constant dense<0.000000e+00> : vector<48x384xf32>
    %141 = tpu.matmul %140, %0, %cst_63 {dimension_numbers = #tpu.dot_dimension_numbers<[1], [0], [0], [1], [0, 0, 1, 1], [], []>} : vector<48x128xf32>, vector<128x384xf32>, vector<48x384xf32> -> vector<48x384xf32>
    %142 = vector.broadcast %1 : vector<1x384xf32> to vector<48x384xf32>
    %143 = arith.addf %141, %142 : vector<48x384xf32>
    %144 = vector.extract_strided_slice %143 {offsets = [0, 0], sizes = [48, 128], strides = [1, 1]} : vector<48x384xf32> to vector<48x128xf32>
    %cst_64 = arith.constant 0.176776692 : f32
    %145 = vector.broadcast %cst_64 : f32 to vector<48x128xf32>
    %146 = arith.mulf %144, %145 : vector<48x128xf32>
    %147 = vector.extract_strided_slice %143 {offsets = [0, 128], sizes = [48, 128], strides = [1, 1]} : vector<48x384xf32> to vector<48x128xf32>
    %148 = tpu.transpose %147, [1, 0] : vector<48x128xf32> -> vector<128x48xf32>
    %149 = vector.extract_strided_slice %143 {offsets = [0, 256], sizes = [48, 128], strides = [1, 1]} : vector<48x384xf32> to vector<48x128xf32>
    %150 = vector.extract_strided_slice %146 {offsets = [0, 0], sizes = [48, 32], strides = [1, 1]} : vector<48x128xf32> to vector<48x32xf32>
    %151 = vector.extract_strided_slice %148 {offsets = [0, 0], sizes = [32, 48], strides = [1, 1]} : vector<128x48xf32> to vector<32x48xf32>
    %cst_65 = arith.constant dense<0.000000e+00> : vector<48x48xf32>
    %152 = tpu.matmul %150, %151, %cst_65 {dimension_numbers = #tpu.dot_dimension_numbers<[1], [0], [0], [1], [0, 0, 1, 1], [], []>} : vector<48x32xf32>, vector<32x48xf32>, vector<48x48xf32> -> vector<48x48xf32>
    %cst_66 = arith.constant dense<0xFF800000> : vector<48xf32>
    %153 = vector.multi_reduction <maximumf>, %152, %cst_66 [1] : vector<48x48xf32> to vector<48xf32>
    %154 = vector.shape_cast %153 : vector<48xf32> to vector<48x1xf32>
    %155 = vector.broadcast %154 : vector<48x1xf32> to vector<48x48xf32>
    %156 = arith.subf %152, %155 : vector<48x48xf32>
    %157 = math.exp %156 : vector<48x48xf32>
    %cst_67 = arith.constant dense<0.000000e+00> : vector<48xf32>
    %158 = vector.multi_reduction <add>, %157, %cst_67 [1] : vector<48x48xf32> to vector<48xf32>
    %159 = vector.shape_cast %158 : vector<48xf32> to vector<48x1xf32>
    %160 = tpu.reciprocal %159 {approx = true} : vector<48x1xf32> -> vector<48x1xf32>
    %161 = vector.broadcast %160 : vector<48x1xf32> to vector<48x48xf32>
    %162 = arith.mulf %157, %161 : vector<48x48xf32>
    %163 = vector.extract_strided_slice %149 {offsets = [0, 0], sizes = [48, 32], strides = [1, 1]} : vector<48x128xf32> to vector<48x32xf32>
    %cst_68 = arith.constant dense<0.000000e+00> : vector<48x32xf32>
    %164 = tpu.matmul %162, %163, %cst_68 {dimension_numbers = #tpu.dot_dimension_numbers<[1], [0], [0], [1], [0, 0, 1, 1], [], []>} : vector<48x48xf32>, vector<48x32xf32>, vector<48x32xf32> -> vector<48x32xf32>
    %165 = vector.extract_strided_slice %146 {offsets = [0, 32], sizes = [48, 32], strides = [1, 1]} : vector<48x128xf32> to vector<48x32xf32>
    %166 = vector.extract_strided_slice %148 {offsets = [32, 0], sizes = [32, 48], strides = [1, 1]} : vector<128x48xf32> to vector<32x48xf32>
    %cst_69 = arith.constant dense<0.000000e+00> : vector<48x48xf32>
    %167 = tpu.matmul %165, %166, %cst_69 {dimension_numbers = #tpu.dot_dimension_numbers<[1], [0], [0], [1], [0, 0, 1, 1], [], []>} : vector<48x32xf32>, vector<32x48xf32>, vector<48x48xf32> -> vector<48x48xf32>
    %cst_70 = arith.constant dense<0xFF800000> : vector<48xf32>
    %168 = vector.multi_reduction <maximumf>, %167, %cst_70 [1] : vector<48x48xf32> to vector<48xf32>
    %169 = vector.shape_cast %168 : vector<48xf32> to vector<48x1xf32>
    %170 = vector.broadcast %169 : vector<48x1xf32> to vector<48x48xf32>
    %171 = arith.subf %167, %170 : vector<48x48xf32>
    %172 = math.exp %171 : vector<48x48xf32>
    %cst_71 = arith.constant dense<0.000000e+00> : vector<48xf32>
    %173 = vector.multi_reduction <add>, %172, %cst_71 [1] : vector<48x48xf32> to vector<48xf32>
    %174 = vector.shape_cast %173 : vector<48xf32> to vector<48x1xf32>
    %175 = tpu.reciprocal %174 {approx = true} : vector<48x1xf32> -> vector<48x1xf32>
    %176 = vector.broadcast %175 : vector<48x1xf32> to vector<48x48xf32>
    %177 = arith.mulf %172, %176 : vector<48x48xf32>
    %178 = vector.extract_strided_slice %149 {offsets = [0, 32], sizes = [48, 32], strides = [1, 1]} : vector<48x128xf32> to vector<48x32xf32>
    %cst_72 = arith.constant dense<0.000000e+00> : vector<48x32xf32>
    %179 = tpu.matmul %177, %178, %cst_72 {dimension_numbers = #tpu.dot_dimension_numbers<[1], [0], [0], [1], [0, 0, 1, 1], [], []>} : vector<48x48xf32>, vector<48x32xf32>, vector<48x32xf32> -> vector<48x32xf32>
    %180 = vector.extract_strided_slice %146 {offsets = [0, 64], sizes = [48, 32], strides = [1, 1]} : vector<48x128xf32> to vector<48x32xf32>
    %181 = vector.extract_strided_slice %148 {offsets = [64, 0], sizes = [32, 48], strides = [1, 1]} : vector<128x48xf32> to vector<32x48xf32>
    %cst_73 = arith.constant dense<0.000000e+00> : vector<48x48xf32>
    %182 = tpu.matmul %180, %181, %cst_73 {dimension_numbers = #tpu.dot_dimension_numbers<[1], [0], [0], [1], [0, 0, 1, 1], [], []>} : vector<48x32xf32>, vector<32x48xf32>, vector<48x48xf32> -> vector<48x48xf32>
    %cst_74 = arith.constant dense<0xFF800000> : vector<48xf32>
    %183 = vector.multi_reduction <maximumf>, %182, %cst_74 [1] : vector<48x48xf32> to vector<48xf32>
    %184 = vector.shape_cast %183 : vector<48xf32> to vector<48x1xf32>
    %185 = vector.broadcast %184 : vector<48x1xf32> to vector<48x48xf32>
    %186 = arith.subf %182, %185 : vector<48x48xf32>
    %187 = math.exp %186 : vector<48x48xf32>
    %cst_75 = arith.constant dense<0.000000e+00> : vector<48xf32>
    %188 = vector.multi_reduction <add>, %187, %cst_75 [1] : vector<48x48xf32> to vector<48xf32>
    %189 = vector.shape_cast %188 : vector<48xf32> to vector<48x1xf32>
    %190 = tpu.reciprocal %189 {approx = true} : vector<48x1xf32> -> vector<48x1xf32>
    %191 = vector.broadcast %190 : vector<48x1xf32> to vector<48x48xf32>
    %192 = arith.mulf %187, %191 : vector<48x48xf32>
    %193 = vector.extract_strided_slice %149 {offsets = [0, 64], sizes = [48, 32], strides = [1, 1]} : vector<48x128xf32> to vector<48x32xf32>
    %cst_76 = arith.constant dense<0.000000e+00> : vector<48x32xf32>
    %194 = tpu.matmul %192, %193, %cst_76 {dimension_numbers = #tpu.dot_dimension_numbers<[1], [0], [0], [1], [0, 0, 1, 1], [], []>} : vector<48x48xf32>, vector<48x32xf32>, vector<48x32xf32> -> vector<48x32xf32>
    %195 = vector.extract_strided_slice %146 {offsets = [0, 96], sizes = [48, 32], strides = [1, 1]} : vector<48x128xf32> to vector<48x32xf32>
    %196 = vector.extract_strided_slice %148 {offsets = [96, 0], sizes = [32, 48], strides = [1, 1]} : vector<128x48xf32> to vector<32x48xf32>
    %cst_77 = arith.constant dense<0.000000e+00> : vector<48x48xf32>
    %197 = tpu.matmul %195, %196, %cst_77 {dimension_numbers = #tpu.dot_dimension_numbers<[1], [0], [0], [1], [0, 0, 1, 1], [], []>} : vector<48x32xf32>, vector<32x48xf32>, vector<48x48xf32> -> vector<48x48xf32>
    %cst_78 = arith.constant dense<0xFF800000> : vector<48xf32>
    %198 = vector.multi_reduction <maximumf>, %197, %cst_78 [1] : vector<48x48xf32> to vector<48xf32>
    %199 = vector.shape_cast %198 : vector<48xf32> to vector<48x1xf32>
    %200 = vector.broadcast %199 : vector<48x1xf32> to vector<48x48xf32>
    %201 = arith.subf %197, %200 : vector<48x48xf32>
    %202 = math.exp %201 : vector<48x48xf32>
    %cst_79 = arith.constant dense<0.000000e+00> : vector<48xf32>
    %203 = vector.multi_reduction <add>, %202, %cst_79 [1] : vector<48x48xf32> to vector<48xf32>
    %204 = vector.shape_cast %203 : vector<48xf32> to vector<48x1xf32>
    %205 = tpu.reciprocal %204 {approx = true} : vector<48x1xf32> -> vector<48x1xf32>
    %206 = vector.broadcast %205 : vector<48x1xf32> to vector<48x48xf32>
    %207 = arith.mulf %202, %206 : vector<48x48xf32>
    %208 = vector.extract_strided_slice %149 {offsets = [0, 96], sizes = [48, 32], strides = [1, 1]} : vector<48x128xf32> to vector<48x32xf32>
    %cst_80 = arith.constant dense<0.000000e+00> : vector<48x32xf32>
    %209 = tpu.matmul %207, %208, %cst_80 {dimension_numbers = #tpu.dot_dimension_numbers<[1], [0], [0], [1], [0, 0, 1, 1], [], []>} : vector<48x48xf32>, vector<48x32xf32>, vector<48x32xf32> -> vector<48x32xf32>
    %210 = tpu.concatenate %164, %179, %194, %209 in 1 : vector<48x32xf32>, vector<48x32xf32>, vector<48x32xf32>, vector<48x32xf32> -> vector<48x128xf32>
    %cst_81 = arith.constant dense<0.000000e+00> : vector<48x128xf32>
    %211 = tpu.matmul %210, %2, %cst_81 {dimension_numbers = #tpu.dot_dimension_numbers<[1], [0], [0], [1], [0, 0, 1, 1], [], []>} : vector<48x128xf32>, vector<128x128xf32>, vector<48x128xf32> -> vector<48x128xf32>
    %212 = vector.broadcast %3 : vector<1x128xf32> to vector<48x128xf32>
    %213 = arith.addf %211, %212 : vector<48x128xf32>
    %214 = arith.addf %140, %213 : vector<48x128xf32>
    %cst_82 = arith.constant dense<0.000000e+00> : vector<48xf32>
    %215 = vector.multi_reduction <add>, %214, %cst_82 [1] : vector<48x128xf32> to vector<48xf32>
    %216 = vector.shape_cast %215 : vector<48xf32> to vector<48x1xf32>
    %cst_83 = arith.constant 1.280000e+02 : f32
    %217 = vector.broadcast %cst_83 : f32 to vector<48x1xf32>
    %218 = arith.divf %216, %217 : vector<48x1xf32>
    %219 = vector.broadcast %218 : vector<48x1xf32> to vector<48x128xf32>
    %220 = arith.subf %214, %219 : vector<48x128xf32>
    %221 = arith.mulf %220, %220 : vector<48x128xf32>
    %cst_84 = arith.constant dense<0.000000e+00> : vector<48xf32>
    %222 = vector.multi_reduction <add>, %221, %cst_84 [1] : vector<48x128xf32> to vector<48xf32>
    %223 = vector.shape_cast %222 : vector<48xf32> to vector<48x1xf32>
    %cst_85 = arith.constant 1.280000e+02 : f32
    %224 = vector.broadcast %cst_85 : f32 to vector<48x1xf32>
    %225 = arith.divf %223, %224 : vector<48x1xf32>
    %226 = vector.broadcast %218 : vector<48x1xf32> to vector<48x128xf32>
    %227 = arith.subf %214, %226 : vector<48x128xf32>
    %cst_86 = arith.constant 9.99999974E-6 : f32
    %228 = vector.broadcast %cst_86 : f32 to vector<48x1xf32>
    %229 = arith.addf %225, %228 : vector<48x1xf32>
    %230 = math.rsqrt %229 : vector<48x1xf32>
    %231 = vector.broadcast %230 : vector<48x1xf32> to vector<48x128xf32>
    %232 = arith.mulf %227, %231 : vector<48x128xf32>
    %233 = vector.broadcast %4 : vector<1x128xf32> to vector<48x128xf32>
    %234 = arith.mulf %232, %233 : vector<48x128xf32>
    %235 = vector.broadcast %5 : vector<1x128xf32> to vector<48x128xf32>
    %236 = arith.addf %234, %235 : vector<48x128xf32>
    %cst_87 = arith.constant dense<0.000000e+00> : vector<48x128xf32>
    %237 = tpu.matmul %236, %6, %cst_87 {dimension_numbers = #tpu.dot_dimension_numbers<[1], [0], [0], [1], [0, 0, 1, 1], [], []>} : vector<48x128xf32>, vector<128x128xf32>, vector<48x128xf32> -> vector<48x128xf32>
    %238 = vector.broadcast %7 : vector<1x128xf32> to vector<48x128xf32>
    %239 = arith.addf %237, %238 : vector<48x128xf32>
    %cst_88 = arith.constant 0.000000e+00 : f32
    %240 = vector.broadcast %cst_88 : f32 to vector<48x128xf32>
    %241 = arith.maximumf %239, %240 : vector<48x128xf32>
    %cst_89 = arith.constant dense<0.000000e+00> : vector<48x128xf32>
    %242 = tpu.matmul %241, %8, %cst_89 {dimension_numbers = #tpu.dot_dimension_numbers<[1], [0], [0], [1], [0, 0, 1, 1], [], []>} : vector<48x128xf32>, vector<128x128xf32>, vector<48x128xf32> -> vector<48x128xf32>
    %243 = vector.broadcast %9 : vector<1x128xf32> to vector<48x128xf32>
    %244 = arith.addf %242, %243 : vector<48x128xf32>
    %245 = arith.addf %236, %244 : vector<48x128xf32>
    %246 = vector.extract_strided_slice %245 {offsets = [0, 0], sizes = [16, 128], strides = [1, 1]} : vector<48x128xf32> to vector<16x128xf32>
    %247 = vector.shape_cast %246 : vector<16x128xf32> to vector<16x1x128xf32>
    %c0_90 = arith.constant 0 : index
    %c1 = arith.constant 1 : index
    %c0_91 = arith.constant 0 : index
    %248 = vector.load %arg16[%c0_90, %c1, %c0_91] : memref<16x2x128xf32, #tpu.memory_space<vmem>>, vector<16x1x128xf32>
    tpu.vector_store %arg16[%c0_90, %c1, %c0_91], %247 {strides = array<i32>} : memref<16x2x128xf32, #tpu.memory_space<vmem>>, vector<16x1x128xf32>,
    %249 = vector.extract_strided_slice %245 {offsets = [16, 0], sizes = [24, 128], strides = [1, 1]} : vector<48x128xf32> to vector<24x128xf32>
    %250 = vector.shape_cast %249 : vector<24x128xf32> to vector<24x1x128xf32>
    %c0_92 = arith.constant 0 : index
    %c1_93 = arith.constant 1 : index
    %c0_94 = arith.constant 0 : index
    %251 = vector.load %arg14[%c0_92, %c1_93, %c0_94] : memref<24x2x128xf32, #tpu.memory_space<vmem>>, vector<24x1x128xf32>
    tpu.vector_store %arg14[%c0_92, %c1_93, %c0_94], %250 {strides = array<i32>} : memref<24x2x128xf32, #tpu.memory_space<vmem>>, vector<24x1x128xf32>,
    %252 = vector.extract_strided_slice %245 {offsets = [40, 0], sizes = [8, 128], strides = [1, 1]} : vector<48x128xf32> to vector<8x128xf32>
    %253 = vector.shape_cast %252 : vector<8x128xf32> to vector<8x1x128xf32>
    %c0_95 = arith.constant 0 : index
    %c1_96 = arith.constant 1 : index
    %c0_97 = arith.constant 0 : index
    %254 = vector.load %arg15[%c0_95, %c1_96, %c0_97] : memref<8x2x128xf32, #tpu.memory_space<vmem>>, vector<8x1x128xf32>
    tpu.vector_store %arg15[%c0_95, %c1_96, %c0_97], %253 {strides = array<i32>} : memref<8x2x128xf32, #tpu.memory_space<vmem>>, vector<8x1x128xf32>,
    return
  }
  func.func @transform_0(%arg0: i32) -> (i32, i32, i32) {
    %c0_i32 = arith.constant 0 : i32
    %c0_i32_0 = arith.constant 0 : i32
    %c0_i32_1 = arith.constant 0 : i32
    %c0_i32_2 = arith.constant 0 : i32
    return %c0_i32, %c0_i32_0, %c0_i32_1 : i32, i32, i32
  }
  func.func @transform_1(%arg0: i32) -> (i32, i32, i32) {
    %c0_i32 = arith.constant 0 : i32
    %c0_i32_0 = arith.constant 0 : i32
    %c0_i32_1 = arith.constant 0 : i32
    %c0_i32_2 = arith.constant 0 : i32
    return %c0_i32, %c0_i32_0, %c0_i32_1 : i32, i32, i32
  }
  func.func @transform_2(%arg0: i32) -> (i32, i32, i32) {
    %c0_i32 = arith.constant 0 : i32
    %c0_i32_0 = arith.constant 0 : i32
    %c0_i32_1 = arith.constant 0 : i32
    %c0_i32_2 = arith.constant 0 : i32
    return %c0_i32, %c0_i32_0, %c0_i32_1 : i32, i32, i32
  }
  func.func @transform_3(%arg0: i32) -> (i32, i32) {
    %c0_i32 = arith.constant 0 : i32
    %c0_i32_0 = arith.constant 0 : i32
    %c0_i32_1 = arith.constant 0 : i32
    return %c0_i32, %c0_i32_0 : i32, i32
  }
  func.func @transform_4(%arg0: i32) -> (i32, i32) {
    %c0_i32 = arith.constant 0 : i32
    %c0_i32_0 = arith.constant 0 : i32
    %c0_i32_1 = arith.constant 0 : i32
    return %c0_i32, %c0_i32_0 : i32, i32
  }
  func.func @transform_5(%arg0: i32) -> (i32, i32) {
    %c0_i32 = arith.constant 0 : i32
    %c0_i32_0 = arith.constant 0 : i32
    %c0_i32_1 = arith.constant 0 : i32
    return %c0_i32, %c0_i32_0 : i32, i32
  }
  func.func @transform_6(%arg0: i32) -> (i32, i32) {
    %c0_i32 = arith.constant 0 : i32
    %c0_i32_0 = arith.constant 0 : i32
    %c0_i32_1 = arith.constant 0 : i32
    return %c0_i32, %c0_i32_0 : i32, i32
  }
  func.func @transform_7(%arg0: i32) -> (i32, i32) {
    %c0_i32 = arith.constant 0 : i32
    %c0_i32_0 = arith.constant 0 : i32
    %c0_i32_1 = arith.constant 0 : i32
    return %c0_i32, %c0_i32_0 : i32, i32
  }
  func.func @transform_8(%arg0: i32) -> (i32, i32) {
    %c0_i32 = arith.constant 0 : i32
    %c0_i32_0 = arith.constant 0 : i32
    %c0_i32_1 = arith.constant 0 : i32
    return %c0_i32, %c0_i32_0 : i32, i32
  }
  func.func @transform_9(%arg0: i32) -> (i32, i32) {
    %c0_i32 = arith.constant 0 : i32
    %c0_i32_0 = arith.constant 0 : i32
    %c0_i32_1 = arith.constant 0 : i32
    return %c0_i32, %c0_i32_0 : i32, i32
  }
  func.func @transform_10(%arg0: i32) -> (i32, i32) {
    %c0_i32 = arith.constant 0 : i32
    %c0_i32_0 = arith.constant 0 : i32
    %c0_i32_1 = arith.constant 0 : i32
    return %c0_i32, %c0_i32_0 : i32, i32
  }
  func.func @transform_11(%arg0: i32) -> (i32, i32) {
    %c0_i32 = arith.constant 0 : i32
    %c0_i32_0 = arith.constant 0 : i32
    %c0_i32_1 = arith.constant 0 : i32
    return %c0_i32, %c0_i32_0 : i32, i32
  }
  func.func @transform_12(%arg0: i32) -> (i32, i32) {
    %c0_i32 = arith.constant 0 : i32
    %c0_i32_0 = arith.constant 0 : i32
    %c0_i32_1 = arith.constant 0 : i32
    return %c0_i32, %c0_i32_0 : i32, i32
  }
  func.func @transform_13(%arg0: i32) -> (i32, i32, i32) {
    %c0_i32 = arith.constant 0 : i32
    %c0_i32_0 = arith.constant 0 : i32
    %c0_i32_1 = arith.constant 0 : i32
    %c0_i32_2 = arith.constant 0 : i32
    return %c0_i32, %c0_i32_0, %c0_i32_1 : i32, i32, i32
  }
  func.func @transform_14(%arg0: i32) -> (i32, i32, i32) {
    %c0_i32 = arith.constant 0 : i32
    %c0_i32_0 = arith.constant 0 : i32
    %c0_i32_1 = arith.constant 0 : i32
    %c0_i32_2 = arith.constant 0 : i32
    return %c0_i32, %c0_i32_0, %c0_i32_1 : i32, i32, i32
  }
  func.func @transform_15(%arg0: i32) -> (i32, i32, i32) {
    %c0_i32 = arith.constant 0 : i32
    %c0_i32_0 = arith.constant 0 : i32
    %c0_i32_1 = arith.constant 0 : i32
    %c0_i32_2 = arith.constant 0 : i32
    return %c0_i32, %c0_i32_0, %c0_i32_1 : i32, i32, i32
  }
}

</mosaic_0001>

<llo_original>
// kernel: vlsa_adapter_depth_forward.1
$region0: #{vlsa_adapter_depth_forward.1}
  #allocation0 [shape = 'u32[]', space=smem, size = 0x4, offset = 0x4, fixed_abs, tag = 'smem constant byte address 0x4 - core index']
  #allocation1 [shape = 'u32[144,128]{1,0:T(1,128)}', space=vmem, size = 0x12000, scoped, tag = 'internal scratch']
  %s0 = inlined_call_operand.hbm [shape: f32[16,2,128], index: 0, kind: input, shape index: {}]
  %s1 = inlined_call_operand.hbm [shape: f32[24,2,128], index: 1, kind: input, shape index: {}]
  %s2 = inlined_call_operand.hbm [shape: f32[8,2,128], index: 2, kind: input, shape index: {}]
  %s3 = inlined_call_operand.hbm [shape: f32[128,384], index: 3, kind: input, shape index: {}]
  %s4 = inlined_call_operand.hbm [shape: f32[1,384], index: 4, kind: input, shape index: {}]
  %s5 = inlined_call_operand.hbm [shape: f32[128,128], index: 5, kind: input, shape index: {}]
  %s6 = inlined_call_operand.hbm [shape: f32[1,128], index: 6, kind: input, shape index: {}]
  %s7 = inlined_call_operand.hbm [shape: f32[1,128], index: 7, kind: input, shape index: {}]
  %s8 = inlined_call_operand.hbm [shape: f32[1,128], index: 8, kind: input, shape index: {}]
  %s9 = inlined_call_operand.hbm [shape: f32[128,128], index: 9, kind: input, shape index: {}]
  %s10 = inlined_call_operand.hbm [shape: f32[1,128], index: 10, kind: input, shape index: {}]
  %s11 = inlined_call_operand.hbm [shape: f32[128,128], index: 11, kind: input, shape index: {}]
  %s12 = inlined_call_operand.hbm [shape: f32[1,128], index: 12, kind: input, shape index: {}]
  %s13 = inlined_call_operand.hbm [shape: f32[24,2,128], index: 13, kind: output, shape index: {0}]
  %s14 = inlined_call_operand.hbm [shape: f32[8,2,128], index: 14, kind: output, shape index: {1}]
  %s15 = inlined_call_operand.hbm [shape: f32[16,2,128], index: 15, kind: output, shape index: {2}]
  %16 = xla_tuple %s13, %s14, %s15
  %s17 = sld [smem:[#allocation0]]
  $region130: #{vlsa_adapter_depth_forward.1} parent=0
    _
  %s19 = ssub.s32 1, %s17
  %s20 = scalar_select 0, %s19, %s17
  $region1: #{vlsa_adapter_depth_forward.1} parent=0
    #allocation2 [shape = 'u8[16384]{0}', space=vmem, size = 0x4000, scoped, tag = 'input window, operand 0, single buffered']
    #allocation3 [shape = 's32[1]{0}', space=sflag, size = 0x4, scoped, tag = 'scoped memory for vlsa_adapter_depth_forward.1']
    #allocation4 [shape = 's32[1]{0}', space=sflag, size = 0x4, scoped, tag = 'scoped memory for vlsa_adapter_depth_forward.1']
    #allocation5 [shape = 'u8[24576]{0}', space=vmem, size = 0x6000, scoped, tag = 'input window, operand 1, single buffered']
    #allocation6 [shape = 's32[1]{0}', space=sflag, size = 0x4, scoped, tag = 'scoped memory for vlsa_adapter_depth_forward.1']
    #allocation7 [shape = 'u8[8192]{0}', space=vmem, size = 0x2000, scoped, tag = 'input window, operand 2, single buffered']
    #allocation8 [shape = 'u8[196608]{0}', space=vmem, size = 0x30000, scoped, tag = 'input window, operand 3, single buffered']
    #allocation9 [shape = 's32[1]{0}', space=sflag, size = 0x4, scoped, tag = 'scoped memory for vlsa_adapter_depth_forward.1']
    #allocation10 [shape = 'u8[1536]{0}', space=vmem, size = 0x800, scoped, tag = 'input window, operand 4, single buffered']
    #allocation11 [shape = 'u8[65536]{0}', space=vmem, size = 0x10000, scoped, tag = 'input window, operand 5, single buffered']
    #allocation12 [shape = 's32[1]{0}', space=sflag, size = 0x4, scoped, tag = 'scoped memory for vlsa_adapter_depth_forward.1']
    #allocation13 [shape = 'u8[512]{0}', space=vmem, size = 0x400, scoped, tag = 'input window, operand 6, single buffered']
    #allocation14 [shape = 'u8[512]{0}', space=vmem, size = 0x400, scoped, tag = 'input window, operand 7, single buffered']
    #allocation15 [shape = 's32[1]{0}', space=sflag, size = 0x4, scoped, tag = 'scoped memory for vlsa_adapter_depth_forward.1']
    #allocation16 [shape = 'u8[512]{0}', space=vmem, size = 0x400, scoped, tag = 'input window, operand 8, single buffered']
    #allocation17 [shape = 'u8[65536]{0}', space=vmem, size = 0x10000, scoped, tag = 'input window, operand 9, single buffered']
    #allocation18 [shape = 's32[1]{0}', space=sflag, size = 0x4, scoped, tag = 'scoped memory for vlsa_adapter_depth_forward.1']
    #allocation19 [shape = 'u8[512]{0}', space=vmem, size = 0x400, scoped, tag = 'input window, operand 10, single buffered']
    #allocation20 [shape = 'u8[65536]{0}', space=vmem, size = 0x10000, scoped, tag = 'input window, operand 11, single buffered']
    #allocation21 [shape = 's32[1]{0}', space=sflag, size = 0x4, scoped, tag = 'scoped memory for vlsa_adapter_depth_forward.1']
    #allocation22 [shape = 'u8[512]{0}', space=vmem, size = 0x400, scoped, tag = 'input window, operand 12, single buffered']
    #allocation23 [shape = 'u8[24576]{0}', space=vmem, size = 0x6000, scoped, tag = 'output window, operand 0, single buffered']
    #allocation24 [shape = 'u8[8192]{0}', space=vmem, size = 0x2000, scoped, tag = 'output window, operand 1, single buffered']
    #allocation25 [shape = 's32[1]{0}', space=sflag, size = 0x4, scoped, tag = 'scoped memory for vlsa_adapter_depth_forward.1']
    #allocation26 [shape = 'u8[16384]{0}', space=vmem, size = 0x4000, scoped, tag = 'output window, operand 2, single buffered']
    %21 = vsyncpa [#allocation3], 0
    %22 = vsyncpa [#allocation6], 0
    %23 = vsyncpa [#allocation9], 0
    %24 = vsyncpa [#allocation12], 0
    %25 = vsyncpa [#allocation15], 0
    %26 = vsyncpa [#allocation18], 0
    %27 = vsyncpa [#allocation21], 0
    %28 = vsyncpa [#allocation4], 0
    %29 = vsyncpa [#allocation25], 0
    // Predicated region
    $region2: #{vlsa_adapter_depth_forward.1} parent=1 // pred_check
      _
    $region3: #{vlsa_adapter_depth_forward.1} parent=1 // pred_check_branch
      %31 = sbr.rel (0) target = $region5
    $region4: #{vlsa_adapter_depth_forward.1} parent=1 // pred_region
      %s33 = ssub.s32 512, 512
      %34 = vsyncadd [#allocation3], %s33
      %s35 = sshll.u32 [#allocation2], 4
      %s36 = int_to_ptr.vmem [resolvable:$true] %s35
      %41 = dma.hbm_to_vmem [thread:$0]  %s0, 512, %s36, [#allocation3], 32, 32, 2
    $region5: #{vlsa_adapter_depth_forward.1} parent=1 // pred_fallthru
      _
    // Predicated region
    $region6: #{vlsa_adapter_depth_forward.1} parent=1 // pred_check
      _
    $region7: #{vlsa_adapter_depth_forward.1} parent=1 // pred_check_branch
      %43 = sbr.rel (0) target = $region9
    $region8: #{vlsa_adapter_depth_forward.1} parent=1 // pred_region
      %s45 = ssub.s32 768, 768
      %46 = vsyncadd [#allocation6], %s45
      %s47 = sshll.u32 [#allocation5], 4
      %s48 = int_to_ptr.vmem [resolvable:$true] %s47
      %53 = dma.hbm_to_vmem [thread:$0]  %s1, 768, %s48, [#allocation6], 32, 32, 2
    $region9: #{vlsa_adapter_depth_forward.1} parent=1 // pred_fallthru
      _
    // Predicated region
    $region10: #{vlsa_adapter_depth_forward.1} parent=1 // pred_check
      _
    $region11: #{vlsa_adapter_depth_forward.1} parent=1 // pred_check_branch
      %55 = sbr.rel (0) target = $region13
    $region12: #{vlsa_adapter_depth_forward.1} parent=1 // pred_region
      %s57 = ssub.s32 256, 256
      %58 = vsyncadd [#allocation6], %s57
      %s59 = sshll.u32 [#allocation7], 4
      %s60 = int_to_ptr.vmem [resolvable:$true] %s59
      %65 = dma.hbm_to_vmem [thread:$0]  %s2, 256, %s60, [#allocation6], 32, 32, 2
    $region13: #{vlsa_adapter_depth_forward.1} parent=1 // pred_fallthru
      _
    // Predicated region
    $region14: #{vlsa_adapter_depth_forward.1} parent=1 // pred_check
      _
    $region15: #{vlsa_adapter_depth_forward.1} parent=1 // pred_check_branch
      %67 = sbr.rel (0) target = $region17
    $region16: #{vlsa_adapter_depth_forward.1} parent=1 // pred_region
      %s69 = ssub.s32 6144, 6144
      %70 = vsyncadd [#allocation9], %s69
      %s71 = sshll.u32 [#allocation8], 4
      %s72 = int_to_ptr.vmem [resolvable:$true] %s71
      %77 = dma.hbm_to_vmem [thread:$0]  %s3, 6144, %s72, [#allocation9], 384, 384, 24
    $region17: #{vlsa_adapter_depth_forward.1} parent=1 // pred_fallthru
      _
    // Predicated region
    $region18: #{vlsa_adapter_depth_forward.1} parent=1 // pred_check
      _
    $region19: #{vlsa_adapter_depth_forward.1} parent=1 // pred_check_branch
      %79 = sbr.rel (0) target = $region21
    $region20: #{vlsa_adapter_depth_forward.1} parent=1 // pred_region
      %s81 = ssub.s32 48, 48
      %82 = vsyncadd [#allocation9], %s81
      %s84 = sshll.u32 [#allocation10], 4
      %s85 = int_to_ptr.vmem [resolvable:$true] %s84
      %87 = dma.hbm_to_vmem [thread:$0]  %s4, 48, %s85, [#allocation9]
    $region21: #{vlsa_adapter_depth_forward.1} parent=1 // pred_fallthru
      _
    // Predicated region
    $region22: #{vlsa_adapter_depth_forward.1} parent=1 // pred_check
      _
    $region23: #{vlsa_adapter_depth_forward.1} parent=1 // pred_check_branch
      %89 = sbr.rel (0) target = $region25
    $region24: #{vlsa_adapter_depth_forward.1} parent=1 // pred_region
      %s91 = ssub.s32 2048, 2048
      %92 = vsyncadd [#allocation12], %s91
      %s93 = sshll.u32 [#allocation11], 4
      %s94 = int_to_ptr.vmem [resolvable:$true] %s93
      %99 = dma.hbm_to_vmem [thread:$0]  %s5, 2048, %s94, [#allocation12], 128, 128, 8
    $region25: #{vlsa_adapter_depth_forward.1} parent=1 // pred_fallthru
      _
    // Predicated region
    $region26: #{vlsa_adapter_depth_forward.1} parent=1 // pred_check
      _
    $region27: #{vlsa_adapter_depth_forward.1} parent=1 // pred_check_branch
      %101 = sbr.rel (0) target = $region29
    $region28: #{vlsa_adapter_depth_forward.1} parent=1 // pred_region
      %s103 = ssub.s32 16, 16
      %104 = vsyncadd [#allocation12], %s103
      %s106 = sshll.u32 [#allocation13], 4
      %s107 = int_to_ptr.vmem [resolvable:$true] %s106
      %109 = dma.hbm_to_vmem [thread:$0]  %s6, 16, %s107, [#allocation12]
    $region29: #{vlsa_adapter_depth_forward.1} parent=1 // pred_fallthru
      _
    // Predicated region
    $region30: #{vlsa_adapter_depth_forward.1} parent=1 // pred_check
      _
    $region31: #{vlsa_adapter_depth_forward.1} parent=1 // pred_check_branch
      %111 = sbr.rel (0) target = $region33
    $region32: #{vlsa_adapter_depth_forward.1} parent=1 // pred_region
      %s113 = ssub.s32 16, 16
      %114 = vsyncadd [#allocation15], %s113
      %s116 = sshll.u32 [#allocation14], 4
      %s117 = int_to_ptr.vmem [resolvable:$true] %s116
      %119 = dma.hbm_to_vmem [thread:$0]  %s7, 16, %s117, [#allocation15]
    $region33: #{vlsa_adapter_depth_forward.1} parent=1 // pred_fallthru
      _
    // Predicated region
    $region34: #{vlsa_adapter_depth_forward.1} parent=1 // pred_check
      _
    $region35: #{vlsa_adapter_depth_forward.1} parent=1 // pred_check_branch
      %121 = sbr.rel (0) target = $region37
    $region36: #{vlsa_adapter_depth_forward.1} parent=1 // pred_region
      %s123 = ssub.s32 16, 16
      %124 = vsyncadd [#allocation15], %s123
      %s126 = sshll.u32 [#allocation16], 4
      %s127 = int_to_ptr.vmem [resolvable:$true] %s126
      %129 = dma.hbm_to_vmem [thread:$0]  %s8, 16, %s127, [#allocation15]
    $region37: #{vlsa_adapter_depth_forward.1} parent=1 // pred_fallthru
      _
    // Predicated region
    $region38: #{vlsa_adapter_depth_forward.1} parent=1 // pred_check
      _
    $region39: #{vlsa_adapter_depth_forward.1} parent=1 // pred_check_branch
      %131 = sbr.rel (0) target = $region41
    $region40: #{vlsa_adapter_depth_forward.1} parent=1 // pred_region
      %s133 = ssub.s32 2048, 2048
      %134 = vsyncadd [#allocation18], %s133
      %s135 = sshll.u32 [#allocation17], 4
      %s136 = int_to_ptr.vmem [resolvable:$true] %s135
      %141 = dma.hbm_to_vmem [thread:$0]  %s9, 2048, %s136, [#allocation18], 128, 128, 8
    $region41: #{vlsa_adapter_depth_forward.1} parent=1 // pred_fallthru
      _
    // Predicated region
    $region42: #{vlsa_adapter_depth_forward.1} parent=1 // pred_check
      _
    $region43: #{vlsa_adapter_depth_forward.1} parent=1 // pred_check_branch
      %143 = sbr.rel (0) target = $region45
    $region44: #{vlsa_adapter_depth_forward.1} parent=1 // pred_region
      %s145 = ssub.s32 16, 16
      %146 = vsyncadd [#allocation18], %s145
      %s148 = sshll.u32 [#allocation19], 4
      %s149 = int_to_ptr.vmem [resolvable:$true] %s148
      %151 = dma.hbm_to_vmem [thread:$0]  %s10, 16, %s149, [#allocation18]
    $region45: #{vlsa_adapter_depth_forward.1} parent=1 // pred_fallthru
      _
    // Predicated region
    $region46: #{vlsa_adapter_depth_forward.1} parent=1 // pred_check
      _
    $region47: #{vlsa_adapter_depth_forward.1} parent=1 // pred_check_branch
      %153 = sbr.rel (0) target = $region49
    $region48: #{vlsa_adapter_depth_forward.1} parent=1 // pred_region
      %s155 = ssub.s32 2048, 2048
      %156 = vsyncadd [#allocation21], %s155
      %s157 = sshll.u32 [#allocation20], 4
      %s158 = int_to_ptr.vmem [resolvable:$true] %s157
      %163 = dma.hbm_to_vmem [thread:$0]  %s11, 2048, %s158, [#allocation21], 128, 128, 8
    $region49: #{vlsa_adapter_depth_forward.1} parent=1 // pred_fallthru
      _
    // Predicated region
    $region50: #{vlsa_adapter_depth_forward.1} parent=1 // pred_check
      _
    $region51: #{vlsa_adapter_depth_forward.1} parent=1 // pred_check_branch
      %165 = sbr.rel (0) target = $region53
    $region52: #{vlsa_adapter_depth_forward.1} parent=1 // pred_region
      %s167 = ssub.s32 16, 16
      %168 = vsyncadd [#allocation21], %s167
      %s170 = sshll.u32 [#allocation22], 4
      %s171 = int_to_ptr.vmem [resolvable:$true] %s170
      %173 = dma.hbm_to_vmem [thread:$0]  %s12, 16, %s171, [#allocation21]
    $region53: #{vlsa_adapter_depth_forward.1} parent=1 // pred_fallthru
      _
    // Predicated region
    $region54: #{vlsa_adapter_depth_forward.1} parent=1 // pred_check
      _
    $region55: #{vlsa_adapter_depth_forward.1} parent=1 // pred_check_branch
      %175 = sbr.rel (0) target = $region57
    $region56: #{vlsa_adapter_depth_forward.1} parent=1 // pred_region
      %176 = dma.done [#allocation3], 512
    $region57: #{vlsa_adapter_depth_forward.1} parent=1 // pred_fallthru
      _
    // Predicated region
    $region58: #{vlsa_adapter_depth_forward.1} parent=1 // pred_check
      _
    $region59: #{vlsa_adapter_depth_forward.1} parent=1 // pred_check_branch
      %178 = sbr.rel (0) target = $region61
    $region60: #{vlsa_adapter_depth_forward.1} parent=1 // pred_region
      %179 = dma.done [#allocation6], 768
    $region61: #{vlsa_adapter_depth_forward.1} parent=1 // pred_fallthru
      _
    // Predicated region
    $region62: #{vlsa_adapter_depth_forward.1} parent=1 // pred_check
      _
    $region63: #{vlsa_adapter_depth_forward.1} parent=1 // pred_check_branch
      %181 = sbr.rel (0) target = $region65
    $region64: #{vlsa_adapter_depth_forward.1} parent=1 // pred_region
      %182 = dma.done [#allocation6], 256
    $region65: #{vlsa_adapter_depth_forward.1} parent=1 // pred_fallthru
      _
    // Predicated region
    $region66: #{vlsa_adapter_depth_forward.1} parent=1 // pred_check
      _
    $region67: #{vlsa_adapter_depth_forward.1} parent=1 // pred_check_branch
      %184 = sbr.rel (0) target = $region69
    $region68: #{vlsa_adapter_depth_forward.1} parent=1 // pred_region
      %185 = dma.done [#allocation9], 6144
    $region69: #{vlsa_adapter_depth_forward.1} parent=1 // pred_fallthru
      _
    // Predicated region
    $region70: #{vlsa_adapter_depth_forward.1} parent=1 // pred_check
      _
    $region71: #{vlsa_adapter_depth_forward.1} parent=1 // pred_check_branch
      %187 = sbr.rel (0) target = $region73
    $region72: #{vlsa_adapter_depth_forward.1} parent=1 // pred_region
      %188 = dma.done [#allocation9], 48
    $region73: #{vlsa_adapter_depth_forward.1} parent=1 // pred_fallthru
      _
    // Predicated region
    $region74: #{vlsa_adapter_depth_forward.1} parent=1 // pred_check
      _
    $region75: #{vlsa_adapter_depth_forward.1} parent=1 // pred_check_branch
      %190 = sbr.rel (0) target = $region77
    $region76: #{vlsa_adapter_depth_forward.1} parent=1 // pred_region
      %191 = dma.done [#allocation12], 2048
    $region77: #{vlsa_adapter_depth_forward.1} parent=1 // pred_fallthru
      _
    // Predicated region
    $region78: #{vlsa_adapter_depth_forward.1} parent=1 // pred_check
      _
    $region79: #{vlsa_adapter_depth_forward.1} parent=1 // pred_check_branch
      %193 = sbr.rel (0) target = $region81
    $region80: #{vlsa_adapter_depth_forward.1} parent=1 // pred_region
      %194 = dma.done [#allocation12], 16
    $region81: #{vlsa_adapter_depth_forward.1} parent=1 // pred_fallthru
      _
    // Predicated region
    $region82: #{vlsa_adapter_depth_forward.1} parent=1 // pred_check
      _
    $region83: #{vlsa_adapter_depth_forward.1} parent=1 // pred_check_branch
      %196 = sbr.rel (0) target = $region85
    $region84: #{vlsa_adapter_depth_forward.1} parent=1 // pred_region
      %197 = dma.done [#allocation15], 16
    $region85: #{vlsa_adapter_depth_forward.1} parent=1 // pred_fallthru
      _
    // Predicated region
    $region86: #{vlsa_adapter_depth_forward.1} parent=1 // pred_check
      _
    $region87: #{vlsa_adapter_depth_forward.1} parent=1 // pred_check_branch
      %199 = sbr.rel (0) target = $region89
    $region88: #{vlsa_adapter_depth_forward.1} parent=1 // pred_region
      %200 = dma.done [#allocation15], 16
    $region89: #{vlsa_adapter_depth_forward.1} parent=1 // pred_fallthru
      _
    // Predicated region
    $region90: #{vlsa_adapter_depth_forward.1} parent=1 // pred_check
      _
    $region91: #{vlsa_adapter_depth_forward.1} parent=1 // pred_check_branch
      %202 = sbr.rel (0) target = $region93
    $region92: #{vlsa_adapter_depth_forward.1} parent=1 // pred_region
      %203 = dma.done [#allocation18], 2048
    $region93: #{vlsa_adapter_depth_forward.1} parent=1 // pred_fallthru
      _
    // Predicated region
    $region94: #{vlsa_adapter_depth_forward.1} parent=1 // pred_check
      _
    $region95: #{vlsa_adapter_depth_forward.1} parent=1 // pred_check_branch
      %205 = sbr.rel (0) target = $region97
    $region96: #{vlsa_adapter_depth_forward.1} parent=1 // pred_region
      %206 = dma.done [#allocation18], 16
    $region97: #{vlsa_adapter_depth_forward.1} parent=1 // pred_fallthru
      _
    // Predicated region
    $region98: #{vlsa_adapter_depth_forward.1} parent=1 // pred_check
      _
    $region99: #{vlsa_adapter_depth_forward.1} parent=1 // pred_check_branch
      %208 = sbr.rel (0) target = $region101
    $region100: #{vlsa_adapter_depth_forward.1} parent=1 // pred_region
      %209 = dma.done [#allocation21], 2048
    $region101: #{vlsa_adapter_depth_forward.1} parent=1 // pred_fallthru
      _
    // Predicated region
    $region102: #{vlsa_adapter_depth_forward.1} parent=1 // pred_check
      _
    $region103: #{vlsa_adapter_depth_forward.1} parent=1 // pred_check_branch
      %211 = sbr.rel (0) target = $region105
    $region104: #{vlsa_adapter_depth_forward.1} parent=1 // pred_region
      %212 = dma.done [#allocation21], 16
    $region105: #{vlsa_adapter_depth_forward.1} parent=1 // pred_fallthru
      _
    %v213 = vld [vmem:[#allocation8] sm:$0xff]
    %v214 = vld [vmem:[#allocation8 + $0x8] sm:$0xff]
    %v215 = vld [vmem:[#allocation8 + $0x10] sm:$0xff]
    %v216 = vld [vmem:[#allocation8 + $0x18] sm:$0xff]
    %v217 = vld [vmem:[#allocation8 + $0x20] sm:$0xff]
    %v218 = vld [vmem:[#allocation8 + $0x28] sm:$0xff]
    %v219 = vld [vmem:[#allocation8 + $0x30] sm:$0xff]
    %v220 = vld [vmem:[#allocation8 + $0x38] sm:$0xff]
    %v221 = vld [vmem:[#allocation8 + $0x40] sm:$0xff]
    %v222 = vld [vmem:[#allocation8 + $0x48] sm:$0xff]
    %v223 = vld [vmem:[#allocation8 + $0x50] sm:$0xff]
    %v224 = vld [vmem:[#allocation8 + $0x58] sm:$0xff]
    %v225 = vld [vmem:[#allocation8 + $0x60] sm:$0xff]
    %v226 = vld [vmem:[#allocation8 + $0x68] sm:$0xff]
    %v227 = vld [vmem:[#allocation8 + $0x70] sm:$0xff]
    %v228 = vld [vmem:[#allocation8 + $0x78] sm:$0xff]
    %v229 = vld [vmem:[#allocation8 + $0x80] sm:$0xff]
    %v230 = vld [vmem:[#allocation8 + $0x88] sm:$0xff]
    %v231 = vld [vmem:[#allocation8 + $0x90] sm:$0xff]
    %v232 = vld [vmem:[#allocation8 + $0x98] sm:$0xff]
    %v233 = vld [vmem:[#allocation8 + $0xa0] sm:$0xff]
    %v234 = vld [vmem:[#allocation8 + $0xa8] sm:$0xff]
    %v235 = vld [vmem:[#allocation8 + $0xb0] sm:$0xff]
    %v236 = vld [vmem:[#allocation8 + $0xb8] sm:$0xff]
    %v237 = vld [vmem:[#allocation8 + $0xc0] sm:$0xff]
    %v238 = vld [vmem:[#allocation8 + $0xc8] sm:$0xff]
    %v239 = vld [vmem:[#allocation8 + $0xd0] sm:$0xff]
    %v240 = vld [vmem:[#allocation8 + $0xd8] sm:$0xff]
    %v241 = vld [vmem:[#allocation8 + $0xe0] sm:$0xff]
    %v242 = vld [vmem:[#allocation8 + $0xe8] sm:$0xff]
    %v243 = vld [vmem:[#allocation8 + $0xf0] sm:$0xff]
    %v244 = vld [vmem:[#allocation8 + $0xf8] sm:$0xff]
    %v245 = vld [vmem:[#allocation8 + $0x100] sm:$0xff]
    %v246 = vld [vmem:[#allocation8 + $0x108] sm:$0xff]
    %v247 = vld [vmem:[#allocation8 + $0x110] sm:$0xff]
    %v248 = vld [vmem:[#allocation8 + $0x118] sm:$0xff]
    %v249 = vld [vmem:[#allocation8 + $0x120] sm:$0xff]
    %v250 = vld [vmem:[#allocation8 + $0x128] sm:$0xff]
    %v251 = vld [vmem:[#allocation8 + $0x130] sm:$0xff]
    %v252 = vld [vmem:[#allocation8 + $0x138] sm:$0xff]
    %v253 = vld [vmem:[#allocation8 + $0x140] sm:$0xff]
    %v254 = vld [vmem:[#allocation8 + $0x148] sm:$0xff]
    %v255 = vld [vmem:[#allocation8 + $0x150] sm:$0xff]
    %v256 = vld [vmem:[#allocation8 + $0x158] sm:$0xff]
    %v257 = vld [vmem:[#allocation8 + $0x160] sm:$0xff]
    %v258 = vld [vmem:[#allocation8 + $0x168] sm:$0xff]
    %v259 = vld [vmem:[#allocation8 + $0x170] sm:$0xff]
    %v260 = vld [vmem:[#allocation8 + $0x178] sm:$0xff]
    %v261 = vld [vmem:[#allocation10] sm:$0x7]
    %v262 = vld [vmem:[#allocation11] sm:$0xff]
    %v263 = vld [vmem:[#allocation11 + $0x8] sm:$0xff]
    %v264 = vld [vmem:[#allocation11 + $0x10] sm:$0xff]
    %v265 = vld [vmem:[#allocation11 + $0x18] sm:$0xff]
    %v266 = vld [vmem:[#allocation11 + $0x20] sm:$0xff]
    %v267 = vld [vmem:[#allocation11 + $0x28] sm:$0xff]
    %v268 = vld [vmem:[#allocation11 + $0x30] sm:$0xff]
    %v269 = vld [vmem:[#allocation11 + $0x38] sm:$0xff]
    %v270 = vld [vmem:[#allocation11 + $0x40] sm:$0xff]
    %v271 = vld [vmem:[#allocation11 + $0x48] sm:$0xff]
    %v272 = vld [vmem:[#allocation11 + $0x50] sm:$0xff]
    %v273 = vld [vmem:[#allocation11 + $0x58] sm:$0xff]
    %v274 = vld [vmem:[#allocation11 + $0x60] sm:$0xff]
    %v275 = vld [vmem:[#allocation11 + $0x68] sm:$0xff]
    %v276 = vld [vmem:[#allocation11 + $0x70] sm:$0xff]
    %v277 = vld [vmem:[#allocation11 + $0x78] sm:$0xff]
    %v278 = vld [vmem:[#allocation13] sm:$0x1]
    %v279 = vld [vmem:[#allocation14] sm:$0x1]
    %v280 = vld [vmem:[#allocation16] sm:$0x1]
    %v281 = vld [vmem:[#allocation17] sm:$0xff]
    %v282 = vld [vmem:[#allocation17 + $0x8] sm:$0xff]
    %v283 = vld [vmem:[#allocation17 + $0x10] sm:$0xff]
    %v284 = vld [vmem:[#allocation17 + $0x18] sm:$0xff]
    %v285 = vld [vmem:[#allocation17 + $0x20] sm:$0xff]
    %v286 = vld [vmem:[#allocation17 + $0x28] sm:$0xff]
    %v287 = vld [vmem:[#allocation17 + $0x30] sm:$0xff]
    %v288 = vld [vmem:[#allocation17 + $0x38] sm:$0xff]
    %v289 = vld [vmem:[#allocation17 + $0x40] sm:$0xff]
    %v290 = vld [vmem:[#allocation17 + $0x48] sm:$0xff]
    %v291 = vld [vmem:[#allocation17 + $0x50] sm:$0xff]
    %v292 = vld [vmem:[#allocation17 + $0x58] sm:$0xff]
    %v293 = vld [vmem:[#allocation17 + $0x60] sm:$0xff]
    %v294 = vld [vmem:[#allocation17 + $0x68] sm:$0xff]
    %v295 = vld [vmem:[#allocation17 + $0x70] sm:$0xff]
    %v296 = vld [vmem:[#allocation17 + $0x78] sm:$0xff]
    %v297 = vld [vmem:[#allocation19] sm:$0x1]
    %v298 = vld [vmem:[#allocation20] sm:$0xff]
    %v299 = vld [vmem:[#allocation20 + $0x8] sm:$0xff]
    %v300 = vld [vmem:[#allocation20 + $0x10] sm:$0xff]
    %v301 = vld [vmem:[#allocation20 + $0x18] sm:$0xff]
    %v302 = vld [vmem:[#allocation20 + $0x20] sm:$0xff]
    %v303 = vld [vmem:[#allocation20 + $0x28] sm:$0xff]
    %v304 = vld [vmem:[#allocation20 + $0x30] sm:$0xff]
    %v305 = vld [vmem:[#allocation20 + $0x38] sm:$0xff]
    %v306 = vld [vmem:[#allocation20 + $0x40] sm:$0xff]
    %v307 = vld [vmem:[#allocation20 + $0x48] sm:$0xff]
    %v308 = vld [vmem:[#allocation20 + $0x50] sm:$0xff]
    %v309 = vld [vmem:[#allocation20 + $0x58] sm:$0xff]
    %v310 = vld [vmem:[#allocation20 + $0x60] sm:$0xff]
    %v311 = vld [vmem:[#allocation20 + $0x68] sm:$0xff]
    %v312 = vld [vmem:[#allocation20 + $0x70] sm:$0xff]
    %v313 = vld [vmem:[#allocation20 + $0x78] sm:$0xff]
    %v314 = vld [vmem:[#allocation22] sm:$0x1]
    %v315 = vld [vmem:[#allocation2] sm:$0x3]
    %v316 = vld [vmem:[#allocation2 + $0x2] sm:$0x3]
    %v317 = vld [vmem:[#allocation2 + $0x4] sm:$0x3]
    %v318 = vld [vmem:[#allocation2 + $0x6] sm:$0x3]
    %v319 = vld [vmem:[#allocation2 + $0x8] sm:$0x3]
    %v320 = vld [vmem:[#allocation2 + $0xa] sm:$0x3]
    %v321 = vld [vmem:[#allocation2 + $0xc] sm:$0x3]
    %v322 = vld [vmem:[#allocation2 + $0xe] sm:$0x3]
    %v323 = vld [vmem:[#allocation2 + $0x10] sm:$0x3]
    %v324 = vld [vmem:[#allocation2 + $0x12] sm:$0x3]
    %v325 = vld [vmem:[#allocation2 + $0x14] sm:$0x3]
    %v326 = vld [vmem:[#allocation2 + $0x16] sm:$0x3]
    %v327 = vld [vmem:[#allocation2 + $0x18] sm:$0x3]
    %v328 = vld [vmem:[#allocation2 + $0x1a] sm:$0x3]
    %v329 = vld [vmem:[#allocation2 + $0x1c] sm:$0x3]
    %v330 = vld [vmem:[#allocation2 + $0x1e] sm:$0x3]
    %v331 = vld [vmem:[#allocation5] sm:$0x3]
    %v332 = vld [vmem:[#allocation5 + $0x2] sm:$0x3]
    %v333 = vld [vmem:[#allocation5 + $0x4] sm:$0x3]
    %v334 = vld [vmem:[#allocation5 + $0x6] sm:$0x3]
    %v335 = vld [vmem:[#allocation5 + $0x8] sm:$0x3]
    %v336 = vld [vmem:[#allocation5 + $0xa] sm:$0x3]
    %v337 = vld [vmem:[#allocation5 + $0xc] sm:$0x3]
    %v338 = vld [vmem:[#allocation5 + $0xe] sm:$0x3]
    %v339 = vld [vmem:[#allocation5 + $0x10] sm:$0x3]
    %v340 = vld [vmem:[#allocation5 + $0x12] sm:$0x3]
    %v341 = vld [vmem:[#allocation5 + $0x14] sm:$0x3]
    %v342 = vld [vmem:[#allocation5 + $0x16] sm:$0x3]
    %v343 = vld [vmem:[#allocation5 + $0x18] sm:$0x3]
    %v344 = vld [vmem:[#allocation5 + $0x1a] sm:$0x3]
    %v345 = vld [vmem:[#allocation5 + $0x1c] sm:$0x3]
    %v346 = vld [vmem:[#allocation5 + $0x1e] sm:$0x3]
    %v347 = vld [vmem:[#allocation5 + $0x20] sm:$0x3]
    %v348 = vld [vmem:[#allocation5 + $0x22] sm:$0x3]
    %v349 = vld [vmem:[#allocation5 + $0x24] sm:$0x3]
    %v350 = vld [vmem:[#allocation5 + $0x26] sm:$0x3]
    %v351 = vld [vmem:[#allocation5 + $0x28] sm:$0x3]
    %v352 = vld [vmem:[#allocation5 + $0x2a] sm:$0x3]
    %v353 = vld [vmem:[#allocation5 + $0x2c] sm:$0x3]
    %v354 = vld [vmem:[#allocation5 + $0x2e] sm:$0x3]
    %v355 = vld [vmem:[#allocation7] sm:$0x3]
    %v356 = vld [vmem:[#allocation7 + $0x2] sm:$0x3]
    %v357 = vld [vmem:[#allocation7 + $0x4] sm:$0x3]
    %v358 = vld [vmem:[#allocation7 + $0x6] sm:$0x3]
    %v359 = vld [vmem:[#allocation7 + $0x8] sm:$0x3]
    %v360 = vld [vmem:[#allocation7 + $0xa] sm:$0x3]
    %v361 = vld [vmem:[#allocation7 + $0xc] sm:$0x3]
    %v362 = vld [vmem:[#allocation7 + $0xe] sm:$0x3]
    %v379 = vrot.slane %v316, 7
    %vm380 = vcmask 1041409
    %v381 = vsel %vm380, %v379, %v315
    %v382 = vrot.slane %v317, 6
    %vm383 = vcmask 1042434
    %v384 = vsel %vm383, %v382, %v381
    %v385 = vrot.slane %v318, 5
    %vm386 = vcmask 1043459
    %v387 = vsel %vm386, %v385, %v384
    %v388 = vrot.slane %v319, 4
    %vm389 = vcmask 1044484
    %v390 = vsel %vm389, %v388, %v387
    %v391 = vrot.slane %v320, 3
    %vm392 = vcmask 1045509
    %v393 = vsel %vm392, %v391, %v390
    %v394 = vrot.slane %v321, 2
    %vm395 = vcmask 1046534
    %v396 = vsel %vm395, %v394, %v393
    %v397 = vrot.slane %v322, 1
    %vm398 = vcmask 1047559
    %v399 = vsel %vm398, %v397, %v396
    %v400 = vrot.slane %v324, 7
    %v401 = vsel %vm380, %v400, %v323
    %v402 = vrot.slane %v325, 6
    %v403 = vsel %vm383, %v402, %v401
    %v404 = vrot.slane %v326, 5
    %v405 = vsel %vm386, %v404, %v403
    %v406 = vrot.slane %v327, 4
    %v407 = vsel %vm389, %v406, %v405
    %v408 = vrot.slane %v328, 3
    %v409 = vsel %vm392, %v408, %v407
    %v410 = vrot.slane %v329, 2
    %v411 = vsel %vm395, %v410, %v409
    %v412 = vrot.slane %v330, 1
    %v413 = vsel %vm398, %v412, %v411
    %v440 = vrot.slane %v332, 7
    %v441 = vsel %vm380, %v440, %v331
    %v442 = vrot.slane %v333, 6
    %v443 = vsel %vm383, %v442, %v441
    %v444 = vrot.slane %v334, 5
    %v445 = vsel %vm386, %v444, %v443
    %v446 = vrot.slane %v335, 4
    %v447 = vsel %vm389, %v446, %v445
    %v448 = vrot.slane %v336, 3
    %v449 = vsel %vm392, %v448, %v447
    %v450 = vrot.slane %v337, 2
    %v451 = vsel %vm395, %v450, %v449
    %v452 = vrot.slane %v338, 1
    %v453 = vsel %vm398, %v452, %v451
    %v454 = vrot.slane %v340, 7
    %v455 = vsel %vm380, %v454, %v339
    %v456 = vrot.slane %v341, 6
    %v457 = vsel %vm383, %v456, %v455
    %v458 = vrot.slane %v342, 5
    %v459 = vsel %vm386, %v458, %v457
    %v460 = vrot.slane %v343, 4
    %v461 = vsel %vm389, %v460, %v459
    %v462 = vrot.slane %v344, 3
    %v463 = vsel %vm392, %v462, %v461
    %v464 = vrot.slane %v345, 2
    %v465 = vsel %vm395, %v464, %v463
    %v466 = vrot.slane %v346, 1
    %v467 = vsel %vm398, %v466, %v465
    %v468 = vrot.slane %v348, 7
    %v469 = vsel %vm380, %v468, %v347
    %v470 = vrot.slane %v349, 6
    %v471 = vsel %vm383, %v470, %v469
    %v472 = vrot.slane %v350, 5
    %v473 = vsel %vm386, %v472, %v471
    %v474 = vrot.slane %v351, 4
    %v475 = vsel %vm389, %v474, %v473
    %v476 = vrot.slane %v352, 3
    %v477 = vsel %vm392, %v476, %v475
    %v478 = vrot.slane %v353, 2
    %v479 = vsel %vm395, %v478, %v477
    %v480 = vrot.slane %v354, 1
    %v481 = vsel %vm398, %v480, %v479
    %v493 = vrot.slane %v356, 7
    %v494 = vsel %vm380, %v493, %v355
    %v495 = vrot.slane %v357, 6
    %v496 = vsel %vm383, %v495, %v494
    %v497 = vrot.slane %v358, 5
    %v498 = vsel %vm386, %v497, %v496
    %v499 = vrot.slane %v359, 4
    %v500 = vsel %vm389, %v499, %v498
    %v501 = vrot.slane %v360, 3
    %v502 = vsel %vm392, %v501, %v500
    %v503 = vrot.slane %v361, 2
    %v504 = vsel %vm395, %v503, %v502
    %v505 = vrot.slane %v362, 1
    %v506 = vsel %vm398, %v505, %v504
    %v509 = vlaneseq
    %v510 = vshrl.u32 %v509, 7
    %v511 = vsub.s32 0, %v510
    %v512 = vrot.slane %v261, %v511
    %v513 = vlaneseq
    %v514 = vshrl.u32 %v513, 7
    %v515 = vsub.s32 1, %v514
    %v516 = vrot.slane %v261, %v515
    %v517 = vlaneseq
    %v518 = vshrl.u32 %v517, 7
    %v519 = vsub.s32 2, %v518
    %v520 = vrot.slane %v261, %v519
    %524 = vmatprep.subr.mxu0 %v214
    %525 = vmatpush1.msra.mxu0 %v213
    %526 = vmatprep.subr.mxu0 %v217
    %527 = vmatpush1.msra.mxu0 %v216
    %528 = vmatprep.subr.mxu0 %v220
    %529 = vmatpush1.msra.mxu0 %v219
    %530 = vmatprep.subr.mxu0 %v223
    %531 = vmatpush1.msra.mxu0 %v222
    %532 = vmatprep.subr.mxu0 %v226
    %533 = vmatpush1.msra.mxu0 %v225
    %534 = vmatprep.subr.mxu0 %v229
    %535 = vmatpush1.msra.mxu0 %v228
    %536 = vmatprep.subr.mxu0 %v232
    %537 = vmatpush1.msra.mxu0 %v231
    %538 = vmatprep.subr.mxu0 %v235
    %539 = vmatpush1.msra.mxu0 %v234
    %540 = vmatprep.subr.mxu0 %v238
    %541 = vmatpush1.msra.mxu0 %v237
    %542 = vmatprep.subr.mxu0 %v241
    %543 = vmatpush1.msra.mxu0 %v240
    %544 = vmatprep.subr.mxu0 %v244
    %545 = vmatpush1.msra.mxu0 %v243
    %546 = vmatprep.subr.mxu0 %v247
    %547 = vmatpush1.msra.mxu0 %v246
    %548 = vmatprep.subr.mxu0 %v250
    %549 = vmatpush1.msra.mxu0 %v249
    %550 = vmatprep.subr.mxu0 %v253
    %551 = vmatpush1.msra.mxu0 %v252
    %552 = vmatprep.subr.mxu0 %v256
    %553 = vmatpush1.msra.mxu0 %v255
    %554 = vmatprep.subr.mxu0 %v259
    %555 = vmatpush1.msra.mxu0 %v258
    %556 = vmatprep.subr.mxu0 0.0
    %557 = vmatpush1.msra.mxu0 0.0
    %558 = vmatprep.subr.mxu0 0.0
    %559 = vmatpush1.msra.mxu0 0.0
    %560 = vmatprep.subr.mxu0 0.0
    %561 = vmatpush1.msra.mxu0 0.0
    %562 = vmatprep.subr.mxu0 0.0
    %563 = vmatpush1.msra.mxu0 0.0
    %564 = vmatprep.subr.mxu0 0.0
    %565 = vmatpush1.msra.mxu0 0.0
    %566 = vmatprep.subr.mxu0 0.0
    %567 = vmatpush1.msra.mxu0 0.0
    %568 = vmatprep.subr.mxu0 0.0
    %569 = vmatpush1.msra.mxu0 0.0
    %570 = vmatprep.subr.mxu0 0.0
    %571 = vmatpush1.msra.mxu0 0.0
    %572 = vmatprep.subr.mxu0 0.0
    %573 = vmatpush1.msra.mxu0 0.0
    %574 = vmatprep.subr.mxu0 0.0
    %575 = vmatpush1.msra.mxu0 0.0
    %576 = vmatprep.subr.mxu0 0.0
    %577 = vmatpush1.msra.mxu0 0.0
    %578 = vmatprep.subr.mxu0 0.0
    %579 = vmatpush1.msra.mxu0 0.0
    %580 = vmatprep.subr.mxu0 0.0
    %581 = vmatpush1.msra.mxu0 0.0
    %582 = vmatprep.subr.mxu0 0.0
    %583 = vmatpush1.msra.mxu0 0.0
    %584 = vmatprep.subr.mxu0 0.0
    %585 = vmatpush1.msra.mxu0 0.0
    %586 = vmatprep.subr.mxu0 0.0
    %587 = vmatpush1.msra.mxu0 0.0
    %588 = vmatprep.mubr.f32.mxu0 0.0
    %589 = vmatmul.mubr.f32.gmra.mrb[0].mxu0 %v399
    %v590 = vpop.f32.mrb[0].mxu0
    %v591 = vadd.f32 %v512, %v590
    %v592 = vpop.f32.mrb[0].mxu0
    %v593 = vadd.f32 %v516, %v592
    %594 = vmatprep.mubr.f32.mxu0 0.0
    %595 = vmatmul.mubr.f32.gmra.mrb[0].mxu0 %v413
    %v596 = vpop.f32.mrb[0].mxu0
    %v597 = vadd.f32 %v512, %v596
    %v598 = vpop.f32.mrb[0].mxu0
    %v599 = vadd.f32 %v516, %v598
    %600 = vmatprep.mubr.f32.mxu0 0.0
    %601 = vmatmul.mubr.f32.gmra.mrb[0].mxu0 %v453
    %v602 = vpop.f32.mrb[0].mxu0
    %v603 = vadd.f32 %v512, %v602
    %v604 = vpop.f32.mrb[0].mxu0
    %v605 = vadd.f32 %v516, %v604
    %606 = vmatprep.mubr.f32.mxu0 0.0
    %607 = vmatmul.mubr.f32.gmra.mrb[0].mxu0 %v467
    %v608 = vpop.f32.mrb[0].mxu0
    %v609 = vadd.f32 %v512, %v608
    %v610 = vpop.f32.mrb[0].mxu0
    %v611 = vadd.f32 %v516, %v610
    %612 = vmatprep.mubr.f32.mxu0 0.0
    %613 = vmatmul.mubr.f32.gmra.mrb[0].mxu0 %v481
    %v614 = vpop.f32.mrb[0].mxu0
    %v615 = vadd.f32 %v512, %v614
    %v616 = vpop.f32.mrb[0].mxu0
    %v617 = vadd.f32 %v516, %v616
    %618 = vmatprep.mubr.f32.mxu0 0.0
    %619 = vmatmul.mubr.f32.gmra.mrb[0].mxu0 %v506
    %v620 = vpop.f32.mrb[0].mxu0
    %v621 = vadd.f32 %v512, %v620
    %v622 = vpop.f32.mrb[0].mxu0
    %v623 = vadd.f32 %v516, %v622
    %624 = vdwg.mxu0
    %625 = vmatprep.subr.mxu0 0.0
    %626 = vmatpush1.msra.mxu0 %v215
    %627 = vmatprep.subr.mxu0 0.0
    %628 = vmatpush1.msra.mxu0 %v218
    %629 = vmatprep.subr.mxu0 0.0
    %630 = vmatpush1.msra.mxu0 %v221
    %631 = vmatprep.subr.mxu0 0.0
    %632 = vmatpush1.msra.mxu0 %v224
    %633 = vmatprep.subr.mxu0 0.0
    %634 = vmatpush1.msra.mxu0 %v227
    %635 = vmatprep.subr.mxu0 0.0
    %636 = vmatpush1.msra.mxu0 %v230
    %637 = vmatprep.subr.mxu0 0.0
    %638 = vmatpush1.msra.mxu0 %v233
    %639 = vmatprep.subr.mxu0 0.0
    %640 = vmatpush1.msra.mxu0 %v236
    %641 = vmatprep.subr.mxu0 0.0
    %642 = vmatpush1.msra.mxu0 %v239
    %643 = vmatprep.subr.mxu0 0.0
    %644 = vmatpush1.msra.mxu0 %v242
    %645 = vmatprep.subr.mxu0 0.0
    %646 = vmatpush1.msra.mxu0 %v245
    %647 = vmatprep.subr.mxu0 0.0
    %648 = vmatpush1.msra.mxu0 %v248
    %649 = vmatprep.subr.mxu0 0.0
    %650 = vmatpush1.msra.mxu0 %v251
    %651 = vmatprep.subr.mxu0 0.0
    %652 = vmatpush1.msra.mxu0 %v254
    %653 = vmatprep.subr.mxu0 0.0
    %654 = vmatpush1.msra.mxu0 %v257
    %655 = vmatprep.subr.mxu0 0.0
    %656 = vmatpush1.msra.mxu0 %v260
    %657 = vmatprep.subr.mxu0 0.0
    %658 = vmatpush1.msra.mxu0 0.0
    %659 = vmatprep.subr.mxu0 0.0
    %660 = vmatpush1.msra.mxu0 0.0
    %661 = vmatprep.subr.mxu0 0.0
    %662 = vmatpush1.msra.mxu0 0.0
    %663 = vmatprep.subr.mxu0 0.0
    %664 = vmatpush1.msra.mxu0 0.0
    %665 = vmatprep.subr.mxu0 0.0
    %666 = vmatpush1.msra.mxu0 0.0
    %667 = vmatprep.subr.mxu0 0.0
    %668 = vmatpush1.msra.mxu0 0.0
    %669 = vmatprep.subr.mxu0 0.0
    %670 = vmatpush1.msra.mxu0 0.0
    %671 = vmatprep.subr.mxu0 0.0
    %672 = vmatpush1.msra.mxu0 0.0
    %673 = vmatprep.subr.mxu0 0.0
    %674 = vmatpush1.msra.mxu0 0.0
    %675 = vmatprep.subr.mxu0 0.0
    %676 = vmatpush1.msra.mxu0 0.0
    %677 = vmatprep.subr.mxu0 0.0
    %678 = vmatpush1.msra.mxu0 0.0
    %679 = vmatprep.subr.mxu0 0.0
    %680 = vmatpush1.msra.mxu0 0.0
    %681 = vmatprep.subr.mxu0 0.0
    %682 = vmatpush1.msra.mxu0 0.0
    %683 = vmatprep.subr.mxu0 0.0
    %684 = vmatpush1.msra.mxu0 0.0
    %685 = vmatprep.subr.mxu0 0.0
    %686 = vmatpush1.msra.mxu0 0.0
    %687 = vmatprep.subr.mxu0 0.0
    %688 = vmatpush1.msra.mxu0 0.0
    %689 = vmatprep.mubr.f32.mxu0 0.0
    %690 = vmatmul.mubr.f32.gmra.mrb[0].mxu0 %v399
    %v691 = vpop.f32.mrb[0].mxu0
    %v692 = vadd.f32 %v520, %v691
    %v693 = vpop.f32.mrb[0].mxu0
    %694 = vmatprep.mubr.f32.mxu0 0.0
    %695 = vmatmul.mubr.f32.gmra.mrb[0].mxu0 %v413
    %v696 = vpop.f32.mrb[0].mxu0
    %v697 = vadd.f32 %v520, %v696
    %v698 = vpop.f32.mrb[0].mxu0
    %699 = vmatprep.mubr.f32.mxu0 0.0
    %700 = vmatmul.mubr.f32.gmra.mrb[0].mxu0 %v453
    %v701 = vpop.f32.mrb[0].mxu0
    %v702 = vadd.f32 %v520, %v701
    %v703 = vpop.f32.mrb[0].mxu0
    %704 = vmatprep.mubr.f32.mxu0 0.0
    %705 = vmatmul.mubr.f32.gmra.mrb[0].mxu0 %v467
    %v706 = vpop.f32.mrb[0].mxu0
    %v707 = vadd.f32 %v520, %v706
    %v708 = vpop.f32.mrb[0].mxu0
    %709 = vmatprep.mubr.f32.mxu0 0.0
    %710 = vmatmul.mubr.f32.gmra.mrb[0].mxu0 %v481
    %v711 = vpop.f32.mrb[0].mxu0
    %v712 = vadd.f32 %v520, %v711
    %v713 = vpop.f32.mrb[0].mxu0
    %714 = vmatprep.mubr.f32.mxu0 0.0
    %715 = vmatmul.mubr.f32.gmra.mrb[0].mxu0 %v506
    %v716 = vpop.f32.mrb[0].mxu0
    %v717 = vadd.f32 %v520, %v716
    %v718 = vpop.f32.mrb[0].mxu0
    %719 = vdwg.mxu0
    %v720 = vmul.f32 %v591, 0.17677669
    %v721 = vmul.f32 %v597, 0.17677669
    %v722 = vmul.f32 %v603, 0.17677669
    %v723 = vmul.f32 %v609, 0.17677669
    %v724 = vmul.f32 %v615, 0.17677669
    %v725 = vmul.f32 %v621, 0.17677669
    %vm726 = vcmask 261120
    %v728 = vsel %vm726, %v720, 0
    %v731 = vsel %vm726, %v721, 0
    %v734 = vsel %vm726, %v722, 0
    %v737 = vsel %vm726, %v723, 0
    %v740 = vsel %vm726, %v724, 0
    %v743 = vsel %vm726, %v725, 0
    %v746 = vsel %vm726, %v593, 0
    %v749 = vsel %vm726, %v599, 0
    %v752 = vsel %vm726, %v605, 0
    %v755 = vsel %vm726, %v611, 0
    %v758 = vsel %vm726, %v617, 0
    %v761 = vsel %vm726, %v623, 0
    %763 = vmatprep.subr.mxu0 0.0
    %764 = vmatpush1.xpose.msra.mxu0 %v746
    %765 = vmatprep.subr.mxu0 0.0
    %766 = vmatpush1.xpose.msra.mxu0 %v749
    %767 = vmatprep.subr.mxu0 0.0
    %768 = vmatpush1.xpose.msra.mxu0 %v752
    %769 = vmatprep.subr.mxu0 0.0
    %770 = vmatpush1.xpose.msra.mxu0 %v755
    %771 = vmatprep.subr.mxu0 0.0
    %772 = vmatpush1.xpose.msra.mxu0 %v758
    %773 = vmatprep.subr.mxu0 0.0
    %774 = vmatpush1.xpose.msra.mxu0 %v761
    %775 = vmatprep.subr.mxu0 0.0
    %776 = vmatpush1.xpose.msra.mxu0 0.0
    %777 = vmatprep.subr.mxu0 0.0
    %778 = vmatpush1.xpose.msra.mxu0 0.0
    %779 = vmatprep.subr.mxu0 0.0
    %780 = vmatpush1.xpose.msra.mxu0 0.0
    %781 = vmatprep.subr.mxu0 0.0
    %782 = vmatpush1.xpose.msra.mxu0 0.0
    %783 = vmatprep.subr.mxu0 0.0
    %784 = vmatpush1.xpose.msra.mxu0 0.0
    %785 = vmatprep.subr.mxu0 0.0
    %786 = vmatpush1.xpose.msra.mxu0 0.0
    %787 = vmatprep.subr.mxu0 0.0
    %788 = vmatpush1.xpose.msra.mxu0 0.0
    %789 = vmatprep.subr.mxu0 0.0
    %790 = vmatpush1.xpose.msra.mxu0 0.0
    %791 = vmatprep.subr.mxu0 0.0
    %792 = vmatpush1.xpose.msra.mxu0 0.0
    %793 = vmatprep.subr.mxu0 0.0
    %794 = vmatpush1.xpose.msra.mxu0 0.0
    %795 = vmatprep.subr.mxu0 0.0
    %796 = vmatpush1.xpose.msra.mxu0 0.0
    %797 = vmatprep.subr.mxu0 0.0
    %798 = vmatpush1.xpose.msra.mxu0 0.0
    %799 = vmatprep.subr.mxu0 0.0
    %800 = vmatpush1.xpose.msra.mxu0 0.0
    %801 = vmatprep.subr.mxu0 0.0
    %802 = vmatpush1.xpose.msra.mxu0 0.0
    %803 = vmatprep.subr.mxu0 0.0
    %804 = vmatpush1.xpose.msra.mxu0 0.0
    %805 = vmatprep.subr.mxu0 0.0
    %806 = vmatpush1.xpose.msra.mxu0 0.0
    %807 = vmatprep.subr.mxu0 0.0
    %808 = vmatpush1.xpose.msra.mxu0 0.0
    %809 = vmatprep.subr.mxu0 0.0
    %810 = vmatpush1.xpose.msra.mxu0 0.0
    %811 = vmatprep.subr.mxu0 0.0
    %812 = vmatpush1.xpose.msra.mxu0 0.0
    %813 = vmatprep.subr.mxu0 0.0
    %814 = vmatpush1.xpose.msra.mxu0 0.0
    %815 = vmatprep.subr.mxu0 0.0
    %816 = vmatpush1.xpose.msra.mxu0 0.0
    %817 = vmatprep.subr.mxu0 0.0
    %818 = vmatpush1.xpose.msra.mxu0 0.0
    %819 = vmatprep.subr.mxu0 0.0
    %820 = vmatpush1.xpose.msra.mxu0 0.0
    %821 = vmatprep.subr.mxu0 0.0
    %822 = vmatpush1.xpose.msra.mxu0 0.0
    %823 = vmatprep.subr.mxu0 0.0
    %824 = vmatpush1.xpose.msra.mxu0 0.0
    %825 = vmatprep.subr.mxu0 0.0
    %826 = vmatpush1.xpose.msra.mxu0 0.0
    %827 = vmatprep.mubr.f32.mxu0 0.0
    %828 = vmatmul.mubr.f32.gmra.mrb[0].mxu0 %v728
    %v829 = vpop.f32.mrb[0].mxu0
    %v830 = vadd.f32 0.0, %v829
    %v831 = vpop.f32.mrb[0].mxu0
    %832 = vmatprep.mubr.f32.mxu0 0.0
    %833 = vmatmul.mubr.f32.gmra.mrb[0].mxu0 %v731
    %v834 = vpop.f32.mrb[0].mxu0
    %v835 = vadd.f32 0.0, %v834
    %v836 = vpop.f32.mrb[0].mxu0
    %837 = vmatprep.mubr.f32.mxu0 0.0
    %838 = vmatmul.mubr.f32.gmra.mrb[0].mxu0 %v734
    %v839 = vpop.f32.mrb[0].mxu0
    %v840 = vadd.f32 0.0, %v839
    %v841 = vpop.f32.mrb[0].mxu0
    %842 = vmatprep.mubr.f32.mxu0 0.0
    %843 = vmatmul.mubr.f32.gmra.mrb[0].mxu0 %v737
    %v844 = vpop.f32.mrb[0].mxu0
    %v845 = vadd.f32 0.0, %v844
    %v846 = vpop.f32.mrb[0].mxu0
    %847 = vmatprep.mubr.f32.mxu0 0.0
    %848 = vmatmul.mubr.f32.gmra.mrb[0].mxu0 %v740
    %v849 = vpop.f32.mrb[0].mxu0
    %v850 = vadd.f32 0.0, %v849
    %v851 = vpop.f32.mrb[0].mxu0
    %852 = vmatprep.mubr.f32.mxu0 0.0
    %853 = vmatmul.mubr.f32.gmra.mrb[0].mxu0 %v743
    %v854 = vpop.f32.mrb[0].mxu0
    %v855 = vadd.f32 0.0, %v854
    %v856 = vpop.f32.mrb[0].mxu0
    %857 = vdwg.mxu0
    %vm858 = vcmask 392192
    %v859 = vsel %vm858, %v830, -inf
    %860 = vmax.xlane.f32.xlu0 %v859
    %v861 = vpop.xlane.xlu0 %860
    %v862 = vsel %vm858, %v835, -inf
    %863 = vmax.xlane.f32.xlu0 %v862
    %v864 = vpop.xlane.xlu0 %863
    %v865 = vsel %vm858, %v840, -inf
    %866 = vmax.xlane.f32.xlu0 %v865
    %v867 = vpop.xlane.xlu0 %866
    %v868 = vsel %vm858, %v845, -inf
    %869 = vmax.xlane.f32.xlu0 %v868
    %v870 = vpop.xlane.xlu0 %869
    %v871 = vsel %vm858, %v850, -inf
    %872 = vmax.xlane.f32.xlu0 %v871
    %v873 = vpop.xlane.xlu0 %872
    %v874 = vsel %vm858, %v855, -inf
    %875 = vmax.xlane.f32.xlu0 %v874
    %v876 = vpop.xlane.xlu0 %875
    %v877 = vsub.f32 %v830, %v861
    %v878 = vsub.f32 %v835, %v864
    %v879 = vsub.f32 %v840, %v867
    %v880 = vsub.f32 %v845, %v870
    %v881 = vsub.f32 %v850, %v873
    %v882 = vsub.f32 %v855, %v876
    %v883 = vmul.f32 %v877, 1.442695
    %v884 = vpow.pop %v883
    %v885 = vmul.f32 %v878, 1.442695
    %v886 = vpow.pop %v885
    %v887 = vmul.f32 %v879, 1.442695
    %v888 = vpow.pop %v887
    %v889 = vmul.f32 %v880, 1.442695
    %v890 = vpow.pop %v889
    %v891 = vmul.f32 %v881, 1.442695
    %v892 = vpow.pop %v891
    %v893 = vmul.f32 %v882, 1.442695
    %v894 = vpow.pop %v893
    %v895 = vsel %vm858, %v884, 0.0
    %896 = vadd.xlane.f32.xlu0 %v895
    %v897 = vpop.xlane.xlu0 %896
    %v898 = vsel %vm858, %v886, 0.0
    %899 = vadd.xlane.f32.xlu0 %v898
    %v900 = vpop.xlane.xlu0 %899
    %v901 = vsel %vm858, %v888, 0.0
    %902 = vadd.xlane.f32.xlu0 %v901
    %v903 = vpop.xlane.xlu0 %902
    %v904 = vsel %vm858, %v890, 0.0
    %905 = vadd.xlane.f32.xlu0 %v904
    %v906 = vpop.xlane.xlu0 %905
    %v907 = vsel %vm858, %v892, 0.0
    %908 = vadd.xlane.f32.xlu0 %v907
    %v909 = vpop.xlane.xlu0 %908
    %v910 = vsel %vm858, %v894, 0.0
    %911 = vadd.xlane.f32.xlu0 %v910
    %v912 = vpop.xlane.xlu0 %911
    %v913 = vrcp.pop %v897
    %v914 = vrcp.pop %v900
    %v915 = vrcp.pop %v903
    %v916 = vrcp.pop %v906
    %v917 = vrcp.pop %v909
    %v918 = vrcp.pop %v912
    %v919 = vmul.f32 %v884, %v913
    %v920 = vmul.f32 %v886, %v914
    %v921 = vmul.f32 %v888, %v915
    %v922 = vmul.f32 %v890, %v916
    %v923 = vmul.f32 %v892, %v917
    %v924 = vmul.f32 %v894, %v918
    %v926 = vsel %vm858, %v919, 0
    %v929 = vsel %vm858, %v920, 0
    %v932 = vsel %vm858, %v921, 0
    %v935 = vsel %vm858, %v922, 0
    %v938 = vsel %vm858, %v923, 0
    %v941 = vsel %vm858, %v924, 0
    %943 = vmatprep.subr.mxu0 0.0
    %944 = vmatpush1.msra.mxu0 %v692
    %945 = vmatprep.subr.mxu0 0.0
    %946 = vmatpush1.msra.mxu0 %v697
    %947 = vmatprep.subr.mxu0 0.0
    %948 = vmatpush1.msra.mxu0 %v702
    %949 = vmatprep.subr.mxu0 0.0
    %950 = vmatpush1.msra.mxu0 %v707
    %951 = vmatprep.subr.mxu0 0.0
    %952 = vmatpush1.msra.mxu0 %v712
    %953 = vmatprep.subr.mxu0 0.0
    %954 = vmatpush1.msra.mxu0 %v717
    %955 = vmatprep.subr.mxu0 0.0
    %956 = vmatpush1.msra.mxu0 0.0
    %957 = vmatprep.subr.mxu0 0.0
    %958 = vmatpush1.msra.mxu0 0.0
    %959 = vmatprep.subr.mxu0 0.0
    %960 = vmatpush1.msra.mxu0 0.0
    %961 = vmatprep.subr.mxu0 0.0
    %962 = vmatpush1.msra.mxu0 0.0
    %963 = vmatprep.subr.mxu0 0.0
    %964 = vmatpush1.msra.mxu0 0.0
    %965 = vmatprep.subr.mxu0 0.0
    %966 = vmatpush1.msra.mxu0 0.0
    %967 = vmatprep.subr.mxu0 0.0
    %968 = vmatpush1.msra.mxu0 0.0
    %969 = vmatprep.subr.mxu0 0.0
    %970 = vmatpush1.msra.mxu0 0.0
    %971 = vmatprep.subr.mxu0 0.0
    %972 = vmatpush1.msra.mxu0 0.0
    %973 = vmatprep.subr.mxu0 0.0
    %974 = vmatpush1.msra.mxu0 0.0
    %975 = vmatprep.subr.mxu0 0.0
    %976 = vmatpush1.msra.mxu0 0.0
    %977 = vmatprep.subr.mxu0 0.0
    %978 = vmatpush1.msra.mxu0 0.0
    %979 = vmatprep.subr.mxu0 0.0
    %980 = vmatpush1.msra.mxu0 0.0
    %981 = vmatprep.subr.mxu0 0.0
    %982 = vmatpush1.msra.mxu0 0.0
    %983 = vmatprep.subr.mxu0 0.0
    %984 = vmatpush1.msra.mxu0 0.0
    %985 = vmatprep.subr.mxu0 0.0
    %986 = vmatpush1.msra.mxu0 0.0
    %987 = vmatprep.subr.mxu0 0.0
    %988 = vmatpush1.msra.mxu0 0.0
    %989 = vmatprep.subr.mxu0 0.0
    %990 = vmatpush1.msra.mxu0 0.0
    %991 = vmatprep.subr.mxu0 0.0
    %992 = vmatpush1.msra.mxu0 0.0
    %993 = vmatprep.subr.mxu0 0.0
    %994 = vmatpush1.msra.mxu0 0.0
    %995 = vmatprep.subr.mxu0 0.0
    %996 = vmatpush1.msra.mxu0 0.0
    %997 = vmatprep.subr.mxu0 0.0
    %998 = vmatpush1.msra.mxu0 0.0
    %999 = vmatprep.subr.mxu0 0.0
    %1000 = vmatpush1.msra.mxu0 0.0
    %1001 = vmatprep.subr.mxu0 0.0
    %1002 = vmatpush1.msra.mxu0 0.0
    %1003 = vmatprep.subr.mxu0 0.0
    %1004 = vmatpush1.msra.mxu0 0.0
    %1005 = vmatprep.subr.mxu0 0.0
    %1006 = vmatpush1.msra.mxu0 0.0
    %1007 = vmatprep.mubr.f32.mxu0 0.0
    %1008 = vmatmul.mubr.f32.gmra.mrb[0].mxu0 %v926
    %v1009 = vpop.f32.mrb[0].mxu0
    %v1010 = vadd.f32 0.0, %v1009
    %v1011 = vpop.f32.mrb[0].mxu0
    %1012 = vmatprep.mubr.f32.mxu0 0.0
    %1013 = vmatmul.mubr.f32.gmra.mrb[0].mxu0 %v929
    %v1014 = vpop.f32.mrb[0].mxu0
    %v1015 = vadd.f32 0.0, %v1014
    %v1016 = vpop.f32.mrb[0].mxu0
    %1017 = vmatprep.mubr.f32.mxu0 0.0
    %1018 = vmatmul.mubr.f32.gmra.mrb[0].mxu0 %v932
    %v1019 = vpop.f32.mrb[0].mxu0
    %v1020 = vadd.f32 0.0, %v1019
    %v1021 = vpop.f32.mrb[0].mxu0
    %1022 = vmatprep.mubr.f32.mxu0 0.0
    %1023 = vmatmul.mubr.f32.gmra.mrb[0].mxu0 %v935
    %v1024 = vpop.f32.mrb[0].mxu0
    %v1025 = vadd.f32 0.0, %v1024
    %v1026 = vpop.f32.mrb[0].mxu0
    %1027 = vmatprep.mubr.f32.mxu0 0.0
    %1028 = vmatmul.mubr.f32.gmra.mrb[0].mxu0 %v938
    %v1029 = vpop.f32.mrb[0].mxu0
    %v1030 = vadd.f32 0.0, %v1029
    %v1031 = vpop.f32.mrb[0].mxu0
    %1032 = vmatprep.mubr.f32.mxu0 0.0
    %1033 = vmatmul.mubr.f32.gmra.mrb[0].mxu0 %v941
    %v1034 = vpop.f32.mrb[0].mxu0
    %v1035 = vadd.f32 0.0, %v1034
    %v1036 = vpop.f32.mrb[0].mxu0
    %1037 = vdwg.mxu0
    %1038 = vrot.lane.b32.xlu0 %v720, 96
    %v1039 = vpop.permute.xlu0 %1038
    %1040 = vrot.lane.b32.xlu0 %v721, 96
    %v1041 = vpop.permute.xlu0 %1040
    %1042 = vrot.lane.b32.xlu0 %v722, 96
    %v1043 = vpop.permute.xlu0 %1042
    %1044 = vrot.lane.b32.xlu0 %v723, 96
    %v1045 = vpop.permute.xlu0 %1044
    %1046 = vrot.lane.b32.xlu0 %v724, 96
    %v1047 = vpop.permute.xlu0 %1046
    %1048 = vrot.lane.b32.xlu0 %v725, 96
    %v1049 = vpop.permute.xlu0 %1048
    %1050 = vrot.lane.b32.xlu0 %v593, 96
    %v1051 = vpop.permute.xlu0 %1050
    %1052 = vrot.lane.b32.xlu0 %v599, 96
    %v1053 = vpop.permute.xlu0 %1052
    %1054 = vrot.lane.b32.xlu0 %v605, 96
    %v1055 = vpop.permute.xlu0 %1054
    %1056 = vrot.lane.b32.xlu0 %v611, 96
    %v1057 = vpop.permute.xlu0 %1056
    %1058 = vrot.lane.b32.xlu0 %v617, 96
    %v1059 = vpop.permute.xlu0 %1058
    %1060 = vrot.lane.b32.xlu0 %v623, 96
    %v1061 = vpop.permute.xlu0 %1060
    %v1062 = vsel %vm726, %v1039, 0
    %v1064 = vsel %vm726, %v1041, 0
    %v1066 = vsel %vm726, %v1043, 0
    %v1068 = vsel %vm726, %v1045, 0
    %v1070 = vsel %vm726, %v1047, 0
    %v1072 = vsel %vm726, %v1049, 0
    %v1074 = vsel %vm726, %v1051, 0
    %v1076 = vsel %vm726, %v1053, 0
    %v1078 = vsel %vm726, %v1055, 0
    %v1080 = vsel %vm726, %v1057, 0
    %v1082 = vsel %vm726, %v1059, 0
    %v1084 = vsel %vm726, %v1061, 0
    %1086 = vmatprep.subr.mxu0 0.0
    %1087 = vmatpush1.xpose.msra.mxu0 %v1074
    %1088 = vmatprep.subr.mxu0 0.0
    %1089 = vmatpush1.xpose.msra.mxu0 %v1076
    %1090 = vmatprep.subr.mxu0 0.0
    %1091 = vmatpush1.xpose.msra.mxu0 %v1078
    %1092 = vmatprep.subr.mxu0 0.0
    %1093 = vmatpush1.xpose.msra.mxu0 %v1080
    %1094 = vmatprep.subr.mxu0 0.0
    %1095 = vmatpush1.xpose.msra.mxu0 %v1082
    %1096 = vmatprep.subr.mxu0 0.0
    %1097 = vmatpush1.xpose.msra.mxu0 %v1084
    %1098 = vmatprep.subr.mxu0 0.0
    %1099 = vmatpush1.xpose.msra.mxu0 0.0
    %1100 = vmatprep.subr.mxu0 0.0
    %1101 = vmatpush1.xpose.msra.mxu0 0.0
    %1102 = vmatprep.subr.mxu0 0.0
    %1103 = vmatpush1.xpose.msra.mxu0 0.0
    %1104 = vmatprep.subr.mxu0 0.0
    %1105 = vmatpush1.xpose.msra.mxu0 0.0
    %1106 = vmatprep.subr.mxu0 0.0
    %1107 = vmatpush1.xpose.msra.mxu0 0.0
    %1108 = vmatprep.subr.mxu0 0.0
    %1109 = vmatpush1.xpose.msra.mxu0 0.0
    %1110 = vmatprep.subr.mxu0 0.0
    %1111 = vmatpush1.xpose.msra.mxu0 0.0
    %1112 = vmatprep.subr.mxu0 0.0
    %1113 = vmatpush1.xpose.msra.mxu0 0.0
    %1114 = vmatprep.subr.mxu0 0.0
    %1115 = vmatpush1.xpose.msra.mxu0 0.0
    %1116 = vmatprep.subr.mxu0 0.0
    %1117 = vmatpush1.xpose.msra.mxu0 0.0
    %1118 = vmatprep.subr.mxu0 0.0
    %1119 = vmatpush1.xpose.msra.mxu0 0.0
    %1120 = vmatprep.subr.mxu0 0.0
    %1121 = vmatpush1.xpose.msra.mxu0 0.0
    %1122 = vmatprep.subr.mxu0 0.0
    %1123 = vmatpush1.xpose.msra.mxu0 0.0
    %1124 = vmatprep.subr.mxu0 0.0
    %1125 = vmatpush1.xpose.msra.mxu0 0.0
    %1126 = vmatprep.subr.mxu0 0.0
    %1127 = vmatpush1.xpose.msra.mxu0 0.0
    %1128 = vmatprep.subr.mxu0 0.0
    %1129 = vmatpush1.xpose.msra.mxu0 0.0
    %1130 = vmatprep.subr.mxu0 0.0
    %1131 = vmatpush1.xpose.msra.mxu0 0.0
    %1132 = vmatprep.subr.mxu0 0.0
    %1133 = vmatpush1.xpose.msra.mxu0 0.0
    %1134 = vmatprep.subr.mxu0 0.0
    %1135 = vmatpush1.xpose.msra.mxu0 0.0
    %1136 = vmatprep.subr.mxu0 0.0
    %1137 = vmatpush1.xpose.msra.mxu0 0.0
    %1138 = vmatprep.subr.mxu0 0.0
    %1139 = vmatpush1.xpose.msra.mxu0 0.0
    %1140 = vmatprep.subr.mxu0 0.0
    %1141 = vmatpush1.xpose.msra.mxu0 0.0
    %1142 = vmatprep.subr.mxu0 0.0
    %1143 = vmatpush1.xpose.msra.mxu0 0.0
    %1144 = vmatprep.subr.mxu0 0.0
    %1145 = vmatpush1.xpose.msra.mxu0 0.0
    %1146 = vmatprep.subr.mxu0 0.0
    %1147 = vmatpush1.xpose.msra.mxu0 0.0
    %1148 = vmatprep.subr.mxu0 0.0
    %1149 = vmatpush1.xpose.msra.mxu0 0.0
    %1150 = vmatprep.mubr.f32.mxu0 0.0
    %1151 = vmatmul.mubr.f32.gmra.mrb[0].mxu0 %v1062
    %v1152 = vpop.f32.mrb[0].mxu0
    %v1153 = vadd.f32 0.0, %v1152
    %v1154 = vpop.f32.mrb[0].mxu0
    %1155 = vmatprep.mubr.f32.mxu0 0.0
    %1156 = vmatmul.mubr.f32.gmra.mrb[0].mxu0 %v1064
    %v1157 = vpop.f32.mrb[0].mxu0
    %v1158 = vadd.f32 0.0, %v1157
    %v1159 = vpop.f32.mrb[0].mxu0
    %1160 = vmatprep.mubr.f32.mxu0 0.0
    %1161 = vmatmul.mubr.f32.gmra.mrb[0].mxu0 %v1066
    %v1162 = vpop.f32.mrb[0].mxu0
    %v1163 = vadd.f32 0.0, %v1162
    %v1164 = vpop.f32.mrb[0].mxu0
    %1165 = vmatprep.mubr.f32.mxu0 0.0
    %1166 = vmatmul.mubr.f32.gmra.mrb[0].mxu0 %v1068
    %v1167 = vpop.f32.mrb[0].mxu0
    %v1168 = vadd.f32 0.0, %v1167
    %v1169 = vpop.f32.mrb[0].mxu0
    %1170 = vmatprep.mubr.f32.mxu0 0.0
    %1171 = vmatmul.mubr.f32.gmra.mrb[0].mxu0 %v1070
    %v1172 = vpop.f32.mrb[0].mxu0
    %v1173 = vadd.f32 0.0, %v1172
    %v1174 = vpop.f32.mrb[0].mxu0
    %1175 = vmatprep.mubr.f32.mxu0 0.0
    %1176 = vmatmul.mubr.f32.gmra.mrb[0].mxu0 %v1072
    %v1177 = vpop.f32.mrb[0].mxu0
    %v1178 = vadd.f32 0.0, %v1177
    %v1179 = vpop.f32.mrb[0].mxu0
    %1180 = vdwg.mxu0
    %v1181 = vsel %vm858, %v1153, -inf
    %1182 = vmax.xlane.f32.xlu0 %v1181
    %v1183 = vpop.xlane.xlu0 %1182
    %v1184 = vsel %vm858, %v1158, -inf
    %1185 = vmax.xlane.f32.xlu0 %v1184
    %v1186 = vpop.xlane.xlu0 %1185
    %v1187 = vsel %vm858, %v1163, -inf
    %1188 = vmax.xlane.f32.xlu0 %v1187
    %v1189 = vpop.xlane.xlu0 %1188
    %v1190 = vsel %vm858, %v1168, -inf
    %1191 = vmax.xlane.f32.xlu0 %v1190
    %v1192 = vpop.xlane.xlu0 %1191
    %v1193 = vsel %vm858, %v1173, -inf
    %1194 = vmax.xlane.f32.xlu0 %v1193
    %v1195 = vpop.xlane.xlu0 %1194
    %v1196 = vsel %vm858, %v1178, -inf
    %1197 = vmax.xlane.f32.xlu0 %v1196
    %v1198 = vpop.xlane.xlu0 %1197
    %v1199 = vsub.f32 %v1153, %v1183
    %v1200 = vsub.f32 %v1158, %v1186
    %v1201 = vsub.f32 %v1163, %v1189
    %v1202 = vsub.f32 %v1168, %v1192
    %v1203 = vsub.f32 %v1173, %v1195
    %v1204 = vsub.f32 %v1178, %v1198
    %v1205 = vmul.f32 %v1199, 1.442695
    %v1206 = vpow.pop %v1205
    %v1207 = vmul.f32 %v1200, 1.442695
    %v1208 = vpow.pop %v1207
    %v1209 = vmul.f32 %v1201, 1.442695
    %v1210 = vpow.pop %v1209
    %v1211 = vmul.f32 %v1202, 1.442695
    %v1212 = vpow.pop %v1211
    %v1213 = vmul.f32 %v1203, 1.442695
    %v1214 = vpow.pop %v1213
    %v1215 = vmul.f32 %v1204, 1.442695
    %v1216 = vpow.pop %v1215
    %v1217 = vsel %vm858, %v1206, 0.0
    %1218 = vadd.xlane.f32.xlu0 %v1217
    %v1219 = vpop.xlane.xlu0 %1218
    %v1220 = vsel %vm858, %v1208, 0.0
    %1221 = vadd.xlane.f32.xlu0 %v1220
    %v1222 = vpop.xlane.xlu0 %1221
    %v1223 = vsel %vm858, %v1210, 0.0
    %1224 = vadd.xlane.f32.xlu0 %v1223
    %v1225 = vpop.xlane.xlu0 %1224
    %v1226 = vsel %vm858, %v1212, 0.0
    %1227 = vadd.xlane.f32.xlu0 %v1226
    %v1228 = vpop.xlane.xlu0 %1227
    %v1229 = vsel %vm858, %v1214, 0.0
    %1230 = vadd.xlane.f32.xlu0 %v1229
    %v1231 = vpop.xlane.xlu0 %1230
    %v1232 = vsel %vm858, %v1216, 0.0
    %1233 = vadd.xlane.f32.xlu0 %v1232
    %v1234 = vpop.xlane.xlu0 %1233
    %v1235 = vrcp.pop %v1219
    %v1236 = vrcp.pop %v1222
    %v1237 = vrcp.pop %v1225
    %v1238 = vrcp.pop %v1228
    %v1239 = vrcp.pop %v1231
    %v1240 = vrcp.pop %v1234
    %v1241 = vmul.f32 %v1206, %v1235
    %v1242 = vmul.f32 %v1208, %v1236
    %v1243 = vmul.f32 %v1210, %v1237
    %v1244 = vmul.f32 %v1212, %v1238
    %v1245 = vmul.f32 %v1214, %v1239
    %v1246 = vmul.f32 %v1216, %v1240
    %1253 = vrot.lane.b32.xlu0 %v692, 96
    %v1254 = vpop.permute.xlu0 %1253
    %1255 = vrot.lane.b32.xlu0 %v697, 96
    %v1256 = vpop.permute.xlu0 %1255
    %1257 = vrot.lane.b32.xlu0 %v702, 96
    %v1258 = vpop.permute.xlu0 %1257
    %1259 = vrot.lane.b32.xlu0 %v707, 96
    %v1260 = vpop.permute.xlu0 %1259
    %1261 = vrot.lane.b32.xlu0 %v712, 96
    %v1262 = vpop.permute.xlu0 %1261
    %1263 = vrot.lane.b32.xlu0 %v717, 96
    %v1264 = vpop.permute.xlu0 %1263
    %v1272 = vsel %vm858, %v1241, 0
    %v1275 = vsel %vm858, %v1242, 0
    %v1278 = vsel %vm858, %v1243, 0
    %v1281 = vsel %vm858, %v1244, 0
    %v1284 = vsel %vm858, %v1245, 0
    %v1287 = vsel %vm858, %v1246, 0
    %1289 = vmatprep.subr.mxu0 0.0
    %1290 = vmatpush1.msra.mxu0 %v1254
    %1291 = vmatprep.subr.mxu0 0.0
    %1292 = vmatpush1.msra.mxu0 %v1256
    %1293 = vmatprep.subr.mxu0 0.0
    %1294 = vmatpush1.msra.mxu0 %v1258
    %1295 = vmatprep.subr.mxu0 0.0
    %1296 = vmatpush1.msra.mxu0 %v1260
    %1297 = vmatprep.subr.mxu0 0.0
    %1298 = vmatpush1.msra.mxu0 %v1262
    %1299 = vmatprep.subr.mxu0 0.0
    %1300 = vmatpush1.msra.mxu0 %v1264
    %1301 = vmatprep.subr.mxu0 0.0
    %1302 = vmatpush1.msra.mxu0 0.0
    %1303 = vmatprep.subr.mxu0 0.0
    %1304 = vmatpush1.msra.mxu0 0.0
    %1305 = vmatprep.subr.mxu0 0.0
    %1306 = vmatpush1.msra.mxu0 0.0
    %1307 = vmatprep.subr.mxu0 0.0
    %1308 = vmatpush1.msra.mxu0 0.0
    %1309 = vmatprep.subr.mxu0 0.0
    %1310 = vmatpush1.msra.mxu0 0.0
    %1311 = vmatprep.subr.mxu0 0.0
    %1312 = vmatpush1.msra.mxu0 0.0
    %1313 = vmatprep.subr.mxu0 0.0
    %1314 = vmatpush1.msra.mxu0 0.0
    %1315 = vmatprep.subr.mxu0 0.0
    %1316 = vmatpush1.msra.mxu0 0.0
    %1317 = vmatprep.subr.mxu0 0.0
    %1318 = vmatpush1.msra.mxu0 0.0
    %1319 = vmatprep.subr.mxu0 0.0
    %1320 = vmatpush1.msra.mxu0 0.0
    %1321 = vmatprep.subr.mxu0 0.0
    %1322 = vmatpush1.msra.mxu0 0.0
    %1323 = vmatprep.subr.mxu0 0.0
    %1324 = vmatpush1.msra.mxu0 0.0
    %1325 = vmatprep.subr.mxu0 0.0
    %1326 = vmatpush1.msra.mxu0 0.0
    %1327 = vmatprep.subr.mxu0 0.0
    %1328 = vmatpush1.msra.mxu0 0.0
    %1329 = vmatprep.subr.mxu0 0.0
    %1330 = vmatpush1.msra.mxu0 0.0
    %1331 = vmatprep.subr.mxu0 0.0
    %1332 = vmatpush1.msra.mxu0 0.0
    %1333 = vmatprep.subr.mxu0 0.0
    %1334 = vmatpush1.msra.mxu0 0.0
    %1335 = vmatprep.subr.mxu0 0.0
    %1336 = vmatpush1.msra.mxu0 0.0
    %1337 = vmatprep.subr.mxu0 0.0
    %1338 = vmatpush1.msra.mxu0 0.0
    %1339 = vmatprep.subr.mxu0 0.0
    %1340 = vmatpush1.msra.mxu0 0.0
    %1341 = vmatprep.subr.mxu0 0.0
    %1342 = vmatpush1.msra.mxu0 0.0
    %1343 = vmatprep.subr.mxu0 0.0
    %1344 = vmatpush1.msra.mxu0 0.0
    %1345 = vmatprep.subr.mxu0 0.0
    %1346 = vmatpush1.msra.mxu0 0.0
    %1347 = vmatprep.subr.mxu0 0.0
    %1348 = vmatpush1.msra.mxu0 0.0
    %1349 = vmatprep.subr.mxu0 0.0
    %1350 = vmatpush1.msra.mxu0 0.0
    %1351 = vmatprep.subr.mxu0 0.0
    %1352 = vmatpush1.msra.mxu0 0.0
    %1353 = vmatprep.mubr.f32.mxu0 0.0
    %1354 = vmatmul.mubr.f32.gmra.mrb[0].mxu0 %v1272
    %v1355 = vpop.f32.mrb[0].mxu0
    %v1356 = vadd.f32 0.0, %v1355
    %v1357 = vpop.f32.mrb[0].mxu0
    %1358 = vmatprep.mubr.f32.mxu0 0.0
    %1359 = vmatmul.mubr.f32.gmra.mrb[0].mxu0 %v1275
    %v1360 = vpop.f32.mrb[0].mxu0
    %v1361 = vadd.f32 0.0, %v1360
    %v1362 = vpop.f32.mrb[0].mxu0
    %1363 = vmatprep.mubr.f32.mxu0 0.0
    %1364 = vmatmul.mubr.f32.gmra.mrb[0].mxu0 %v1278
    %v1365 = vpop.f32.mrb[0].mxu0
    %v1366 = vadd.f32 0.0, %v1365
    %v1367 = vpop.f32.mrb[0].mxu0
    %1368 = vmatprep.mubr.f32.mxu0 0.0
    %1369 = vmatmul.mubr.f32.gmra.mrb[0].mxu0 %v1281
    %v1370 = vpop.f32.mrb[0].mxu0
    %v1371 = vadd.f32 0.0, %v1370
    %v1372 = vpop.f32.mrb[0].mxu0
    %1373 = vmatprep.mubr.f32.mxu0 0.0
    %1374 = vmatmul.mubr.f32.gmra.mrb[0].mxu0 %v1284
    %v1375 = vpop.f32.mrb[0].mxu0
    %v1376 = vadd.f32 0.0, %v1375
    %v1377 = vpop.f32.mrb[0].mxu0
    %1378 = vmatprep.mubr.f32.mxu0 0.0
    %1379 = vmatmul.mubr.f32.gmra.mrb[0].mxu0 %v1287
    %v1380 = vpop.f32.mrb[0].mxu0
    %v1381 = vadd.f32 0.0, %v1380
    %v1382 = vpop.f32.mrb[0].mxu0
    %1383 = vdwg.mxu0
    %1384 = vrot.lane.b32.xlu0 %v720, 64
    %v1385 = vpop.permute.xlu0 %1384
    %1386 = vrot.lane.b32.xlu0 %v721, 64
    %v1387 = vpop.permute.xlu0 %1386
    %1388 = vrot.lane.b32.xlu0 %v722, 64
    %v1389 = vpop.permute.xlu0 %1388
    %1390 = vrot.lane.b32.xlu0 %v723, 64
    %v1391 = vpop.permute.xlu0 %1390
    %1392 = vrot.lane.b32.xlu0 %v724, 64
    %v1393 = vpop.permute.xlu0 %1392
    %1394 = vrot.lane.b32.xlu0 %v725, 64
    %v1395 = vpop.permute.xlu0 %1394
    %1396 = vrot.lane.b32.xlu0 %v593, 64
    %v1397 = vpop.permute.xlu0 %1396
    %1398 = vrot.lane.b32.xlu0 %v599, 64
    %v1399 = vpop.permute.xlu0 %1398
    %1400 = vrot.lane.b32.xlu0 %v605, 64
    %v1401 = vpop.permute.xlu0 %1400
    %1402 = vrot.lane.b32.xlu0 %v611, 64
    %v1403 = vpop.permute.xlu0 %1402
    %1404 = vrot.lane.b32.xlu0 %v617, 64
    %v1405 = vpop.permute.xlu0 %1404
    %1406 = vrot.lane.b32.xlu0 %v623, 64
    %v1407 = vpop.permute.xlu0 %1406
    %v1408 = vsel %vm726, %v1385, 0
    %v1410 = vsel %vm726, %v1387, 0
    %v1412 = vsel %vm726, %v1389, 0
    %v1414 = vsel %vm726, %v1391, 0
    %v1416 = vsel %vm726, %v1393, 0
    %v1418 = vsel %vm726, %v1395, 0
    %v1420 = vsel %vm726, %v1397, 0
    %v1422 = vsel %vm726, %v1399, 0
    %v1424 = vsel %vm726, %v1401, 0
    %v1426 = vsel %vm726, %v1403, 0
    %v1428 = vsel %vm726, %v1405, 0
    %v1430 = vsel %vm726, %v1407, 0
    %1432 = vmatprep.subr.mxu0 0.0
    %1433 = vmatpush1.xpose.msra.mxu0 %v1420
    %1434 = vmatprep.subr.mxu0 0.0
    %1435 = vmatpush1.xpose.msra.mxu0 %v1422
    %1436 = vmatprep.subr.mxu0 0.0
    %1437 = vmatpush1.xpose.msra.mxu0 %v1424
    %1438 = vmatprep.subr.mxu0 0.0
    %1439 = vmatpush1.xpose.msra.mxu0 %v1426
    %1440 = vmatprep.subr.mxu0 0.0
    %1441 = vmatpush1.xpose.msra.mxu0 %v1428
    %1442 = vmatprep.subr.mxu0 0.0
    %1443 = vmatpush1.xpose.msra.mxu0 %v1430
    %1444 = vmatprep.subr.mxu0 0.0
    %1445 = vmatpush1.xpose.msra.mxu0 0.0
    %1446 = vmatprep.subr.mxu0 0.0
    %1447 = vmatpush1.xpose.msra.mxu0 0.0
    %1448 = vmatprep.subr.mxu0 0.0
    %1449 = vmatpush1.xpose.msra.mxu0 0.0
    %1450 = vmatprep.subr.mxu0 0.0
    %1451 = vmatpush1.xpose.msra.mxu0 0.0
    %1452 = vmatprep.subr.mxu0 0.0
    %1453 = vmatpush1.xpose.msra.mxu0 0.0
    %1454 = vmatprep.subr.mxu0 0.0
    %1455 = vmatpush1.xpose.msra.mxu0 0.0
    %1456 = vmatprep.subr.mxu0 0.0
    %1457 = vmatpush1.xpose.msra.mxu0 0.0
    %1458 = vmatprep.subr.mxu0 0.0
    %1459 = vmatpush1.xpose.msra.mxu0 0.0
    %1460 = vmatprep.subr.mxu0 0.0
    %1461 = vmatpush1.xpose.msra.mxu0 0.0
    %1462 = vmatprep.subr.mxu0 0.0
    %1463 = vmatpush1.xpose.msra.mxu0 0.0
    %1464 = vmatprep.subr.mxu0 0.0
    %1465 = vmatpush1.xpose.msra.mxu0 0.0
    %1466 = vmatprep.subr.mxu0 0.0
    %1467 = vmatpush1.xpose.msra.mxu0 0.0
    %1468 = vmatprep.subr.mxu0 0.0
    %1469 = vmatpush1.xpose.msra.mxu0 0.0
    %1470 = vmatprep.subr.mxu0 0.0
    %1471 = vmatpush1.xpose.msra.mxu0 0.0
    %1472 = vmatprep.subr.mxu0 0.0
    %1473 = vmatpush1.xpose.msra.mxu0 0.0
    %1474 = vmatprep.subr.mxu0 0.0
    %1475 = vmatpush1.xpose.msra.mxu0 0.0
    %1476 = vmatprep.subr.mxu0 0.0
    %1477 = vmatpush1.xpose.msra.mxu0 0.0
    %1478 = vmatprep.subr.mxu0 0.0
    %1479 = vmatpush1.xpose.msra.mxu0 0.0
    %1480 = vmatprep.subr.mxu0 0.0
    %1481 = vmatpush1.xpose.msra.mxu0 0.0
    %1482 = vmatprep.subr.mxu0 0.0
    %1483 = vmatpush1.xpose.msra.mxu0 0.0
    %1484 = vmatprep.subr.mxu0 0.0
    %1485 = vmatpush1.xpose.msra.mxu0 0.0
    %1486 = vmatprep.subr.mxu0 0.0
    %1487 = vmatpush1.xpose.msra.mxu0 0.0
    %1488 = vmatprep.subr.mxu0 0.0
    %1489 = vmatpush1.xpose.msra.mxu0 0.0
    %1490 = vmatprep.subr.mxu0 0.0
    %1491 = vmatpush1.xpose.msra.mxu0 0.0
    %1492 = vmatprep.subr.mxu0 0.0
    %1493 = vmatpush1.xpose.msra.mxu0 0.0
    %1494 = vmatprep.subr.mxu0 0.0
    %1495 = vmatpush1.xpose.msra.mxu0 0.0
    %1496 = vmatprep.mubr.f32.mxu0 0.0
    %1497 = vmatmul.mubr.f32.gmra.mrb[0].mxu0 %v1408
    %v1498 = vpop.f32.mrb[0].mxu0
    %v1499 = vadd.f32 0.0, %v1498
    %v1500 = vpop.f32.mrb[0].mxu0
    %1501 = vmatprep.mubr.f32.mxu0 0.0
    %1502 = vmatmul.mubr.f32.gmra.mrb[0].mxu0 %v1410
    %v1503 = vpop.f32.mrb[0].mxu0
    %v1504 = vadd.f32 0.0, %v1503
    %v1505 = vpop.f32.mrb[0].mxu0
    %1506 = vmatprep.mubr.f32.mxu0 0.0
    %1507 = vmatmul.mubr.f32.gmra.mrb[0].mxu0 %v1412
    %v1508 = vpop.f32.mrb[0].mxu0
    %v1509 = vadd.f32 0.0, %v1508
    %v1510 = vpop.f32.mrb[0].mxu0
    %1511 = vmatprep.mubr.f32.mxu0 0.0
    %1512 = vmatmul.mubr.f32.gmra.mrb[0].mxu0 %v1414
    %v1513 = vpop.f32.mrb[0].mxu0
    %v1514 = vadd.f32 0.0, %v1513
    %v1515 = vpop.f32.mrb[0].mxu0
    %1516 = vmatprep.mubr.f32.mxu0 0.0
    %1517 = vmatmul.mubr.f32.gmra.mrb[0].mxu0 %v1416
    %v1518 = vpop.f32.mrb[0].mxu0
    %v1519 = vadd.f32 0.0, %v1518
    %v1520 = vpop.f32.mrb[0].mxu0
    %1521 = vmatprep.mubr.f32.mxu0 0.0
    %1522 = vmatmul.mubr.f32.gmra.mrb[0].mxu0 %v1418
    %v1523 = vpop.f32.mrb[0].mxu0
    %v1524 = vadd.f32 0.0, %v1523
    %v1525 = vpop.f32.mrb[0].mxu0
    %1526 = vdwg.mxu0
    %v1527 = vsel %vm858, %v1499, -inf
    %1528 = vmax.xlane.f32.xlu0 %v1527
    %v1529 = vpop.xlane.xlu0 %1528
    %v1530 = vsel %vm858, %v1504, -inf
    %1531 = vmax.xlane.f32.xlu0 %v1530
    %v1532 = vpop.xlane.xlu0 %1531
    %v1533 = vsel %vm858, %v1509, -inf
    %1534 = vmax.xlane.f32.xlu0 %v1533
    %v1535 = vpop.xlane.xlu0 %1534
    %v1536 = vsel %vm858, %v1514, -inf
    %1537 = vmax.xlane.f32.xlu0 %v1536
    %v1538 = vpop.xlane.xlu0 %1537
    %v1539 = vsel %vm858, %v1519, -inf
    %1540 = vmax.xlane.f32.xlu0 %v1539
    %v1541 = vpop.xlane.xlu0 %1540
    %v1542 = vsel %vm858, %v1524, -inf
    %1543 = vmax.xlane.f32.xlu0 %v1542
    %v1544 = vpop.xlane.xlu0 %1543
    %v1545 = vsub.f32 %v1499, %v1529
    %v1546 = vsub.f32 %v1504, %v1532
    %v1547 = vsub.f32 %v1509, %v1535
    %v1548 = vsub.f32 %v1514, %v1538
    %v1549 = vsub.f32 %v1519, %v1541
    %v1550 = vsub.f32 %v1524, %v1544
    %v1551 = vmul.f32 %v1545, 1.442695
    %v1552 = vpow.pop %v1551
    %v1553 = vmul.f32 %v1546, 1.442695
    %v1554 = vpow.pop %v1553
    %v1555 = vmul.f32 %v1547, 1.442695
    %v1556 = vpow.pop %v1555
    %v1557 = vmul.f32 %v1548, 1.442695
    %v1558 = vpow.pop %v1557
    %v1559 = vmul.f32 %v1549, 1.442695
    %v1560 = vpow.pop %v1559
    %v1561 = vmul.f32 %v1550, 1.442695
    %v1562 = vpow.pop %v1561
    %v1563 = vsel %vm858, %v1552, 0.0
    %1564 = vadd.xlane.f32.xlu0 %v1563
    %v1565 = vpop.xlane.xlu0 %1564
    %v1566 = vsel %vm858, %v1554, 0.0
    %1567 = vadd.xlane.f32.xlu0 %v1566
    %v1568 = vpop.xlane.xlu0 %1567
    %v1569 = vsel %vm858, %v1556, 0.0
    %1570 = vadd.xlane.f32.xlu0 %v1569
    %v1571 = vpop.xlane.xlu0 %1570
    %v1572 = vsel %vm858, %v1558, 0.0
    %1573 = vadd.xlane.f32.xlu0 %v1572
    %v1574 = vpop.xlane.xlu0 %1573
    %v1575 = vsel %vm858, %v1560, 0.0
    %1576 = vadd.xlane.f32.xlu0 %v1575
    %v1577 = vpop.xlane.xlu0 %1576
    %v1578 = vsel %vm858, %v1562, 0.0
    %1579 = vadd.xlane.f32.xlu0 %v1578
    %v1580 = vpop.xlane.xlu0 %1579
    %v1581 = vrcp.pop %v1565
    %v1582 = vrcp.pop %v1568
    %v1583 = vrcp.pop %v1571
    %v1584 = vrcp.pop %v1574
    %v1585 = vrcp.pop %v1577
    %v1586 = vrcp.pop %v1580
    %v1587 = vmul.f32 %v1552, %v1581
    %v1588 = vmul.f32 %v1554, %v1582
    %v1589 = vmul.f32 %v1556, %v1583
    %v1590 = vmul.f32 %v1558, %v1584
    %v1591 = vmul.f32 %v1560, %v1585
    %v1592 = vmul.f32 %v1562, %v1586
    %1593 = vrot.lane.b32.xlu0 %v692, 64
    %v1594 = vpop.permute.xlu0 %1593
    %1595 = vrot.lane.b32.xlu0 %v697, 64
    %v1596 = vpop.permute.xlu0 %1595
    %1597 = vrot.lane.b32.xlu0 %v702, 64
    %v1598 = vpop.permute.xlu0 %1597
    %1599 = vrot.lane.b32.xlu0 %v707, 64
    %v1600 = vpop.permute.xlu0 %1599
    %1601 = vrot.lane.b32.xlu0 %v712, 64
    %v1602 = vpop.permute.xlu0 %1601
    %1603 = vrot.lane.b32.xlu0 %v717, 64
    %v1604 = vpop.permute.xlu0 %1603
    %v1612 = vsel %vm858, %v1587, 0
    %v1615 = vsel %vm858, %v1588, 0
    %v1618 = vsel %vm858, %v1589, 0
    %v1621 = vsel %vm858, %v1590, 0
    %v1624 = vsel %vm858, %v1591, 0
    %v1627 = vsel %vm858, %v1592, 0
    %1629 = vmatprep.subr.mxu0 0.0
    %1630 = vmatpush1.msra.mxu0 %v1594
    %1631 = vmatprep.subr.mxu0 0.0
    %1632 = vmatpush1.msra.mxu0 %v1596
    %1633 = vmatprep.subr.mxu0 0.0
    %1634 = vmatpush1.msra.mxu0 %v1598
    %1635 = vmatprep.subr.mxu0 0.0
    %1636 = vmatpush1.msra.mxu0 %v1600
    %1637 = vmatprep.subr.mxu0 0.0
    %1638 = vmatpush1.msra.mxu0 %v1602
    %1639 = vmatprep.subr.mxu0 0.0
    %1640 = vmatpush1.msra.mxu0 %v1604
    %1641 = vmatprep.subr.mxu0 0.0
    %1642 = vmatpush1.msra.mxu0 0.0
    %1643 = vmatprep.subr.mxu0 0.0
    %1644 = vmatpush1.msra.mxu0 0.0
    %1645 = vmatprep.subr.mxu0 0.0
    %1646 = vmatpush1.msra.mxu0 0.0
    %1647 = vmatprep.subr.mxu0 0.0
    %1648 = vmatpush1.msra.mxu0 0.0
    %1649 = vmatprep.subr.mxu0 0.0
    %1650 = vmatpush1.msra.mxu0 0.0
    %1651 = vmatprep.subr.mxu0 0.0
    %1652 = vmatpush1.msra.mxu0 0.0
    %1653 = vmatprep.subr.mxu0 0.0
    %1654 = vmatpush1.msra.mxu0 0.0
    %1655 = vmatprep.subr.mxu0 0.0
    %1656 = vmatpush1.msra.mxu0 0.0
    %1657 = vmatprep.subr.mxu0 0.0
    %1658 = vmatpush1.msra.mxu0 0.0
    %1659 = vmatprep.subr.mxu0 0.0
    %1660 = vmatpush1.msra.mxu0 0.0
    %1661 = vmatprep.subr.mxu0 0.0
    %1662 = vmatpush1.msra.mxu0 0.0
    %1663 = vmatprep.subr.mxu0 0.0
    %1664 = vmatpush1.msra.mxu0 0.0
    %1665 = vmatprep.subr.mxu0 0.0
    %1666 = vmatpush1.msra.mxu0 0.0
    %1667 = vmatprep.subr.mxu0 0.0
    %1668 = vmatpush1.msra.mxu0 0.0
    %1669 = vmatprep.subr.mxu0 0.0
    %1670 = vmatpush1.msra.mxu0 0.0
    %1671 = vmatprep.subr.mxu0 0.0
    %1672 = vmatpush1.msra.mxu0 0.0
    %1673 = vmatprep.subr.mxu0 0.0
    %1674 = vmatpush1.msra.mxu0 0.0
    %1675 = vmatprep.subr.mxu0 0.0
    %1676 = vmatpush1.msra.mxu0 0.0
    %1677 = vmatprep.subr.mxu0 0.0
    %1678 = vmatpush1.msra.mxu0 0.0
    %1679 = vmatprep.subr.mxu0 0.0
    %1680 = vmatpush1.msra.mxu0 0.0
    %1681 = vmatprep.subr.mxu0 0.0
    %1682 = vmatpush1.msra.mxu0 0.0
    %1683 = vmatprep.subr.mxu0 0.0
    %1684 = vmatpush1.msra.mxu0 0.0
    %1685 = vmatprep.subr.mxu0 0.0
    %1686 = vmatpush1.msra.mxu0 0.0
    %1687 = vmatprep.subr.mxu0 0.0
    %1688 = vmatpush1.msra.mxu0 0.0
    %1689 = vmatprep.subr.mxu0 0.0
    %1690 = vmatpush1.msra.mxu0 0.0
    %1691 = vmatprep.subr.mxu0 0.0
    %1692 = vmatpush1.msra.mxu0 0.0
    %1693 = vmatprep.mubr.f32.mxu0 0.0
    %1694 = vmatmul.mubr.f32.gmra.mrb[0].mxu0 %v1612
    %v1695 = vpop.f32.mrb[0].mxu0
    %v1696 = vadd.f32 0.0, %v1695
    %v1697 = vpop.f32.mrb[0].mxu0
    %1698 = vmatprep.mubr.f32.mxu0 0.0
    %1699 = vmatmul.mubr.f32.gmra.mrb[0].mxu0 %v1615
    %v1700 = vpop.f32.mrb[0].mxu0
    %v1701 = vadd.f32 0.0, %v1700
    %v1702 = vpop.f32.mrb[0].mxu0
    %1703 = vmatprep.mubr.f32.mxu0 0.0
    %1704 = vmatmul.mubr.f32.gmra.mrb[0].mxu0 %v1618
    %v1705 = vpop.f32.mrb[0].mxu0
    %v1706 = vadd.f32 0.0, %v1705
    %v1707 = vpop.f32.mrb[0].mxu0
    %1708 = vmatprep.mubr.f32.mxu0 0.0
    %1709 = vmatmul.mubr.f32.gmra.mrb[0].mxu0 %v1621
    %v1710 = vpop.f32.mrb[0].mxu0
    %v1711 = vadd.f32 0.0, %v1710
    %v1712 = vpop.f32.mrb[0].mxu0
    %1713 = vmatprep.mubr.f32.mxu0 0.0
    %1714 = vmatmul.mubr.f32.gmra.mrb[0].mxu0 %v1624
    %v1715 = vpop.f32.mrb[0].mxu0
    %v1716 = vadd.f32 0.0, %v1715
    %v1717 = vpop.f32.mrb[0].mxu0
    %1718 = vmatprep.mubr.f32.mxu0 0.0
    %1719 = vmatmul.mubr.f32.gmra.mrb[0].mxu0 %v1627
    %v1720 = vpop.f32.mrb[0].mxu0
    %v1721 = vadd.f32 0.0, %v1720
    %v1722 = vpop.f32.mrb[0].mxu0
    %1723 = vdwg.mxu0
    %1724 = vrot.lane.b32.xlu0 %v720, 32
    %v1725 = vpop.permute.xlu0 %1724
    %1726 = vrot.lane.b32.xlu0 %v721, 32
    %v1727 = vpop.permute.xlu0 %1726
    %1728 = vrot.lane.b32.xlu0 %v722, 32
    %v1729 = vpop.permute.xlu0 %1728
    %1730 = vrot.lane.b32.xlu0 %v723, 32
    %v1731 = vpop.permute.xlu0 %1730
    %1732 = vrot.lane.b32.xlu0 %v724, 32
    %v1733 = vpop.permute.xlu0 %1732
    %1734 = vrot.lane.b32.xlu0 %v725, 32
    %v1735 = vpop.permute.xlu0 %1734
    %1736 = vrot.lane.b32.xlu0 %v593, 32
    %v1737 = vpop.permute.xlu0 %1736
    %1738 = vrot.lane.b32.xlu0 %v599, 32
    %v1739 = vpop.permute.xlu0 %1738
    %1740 = vrot.lane.b32.xlu0 %v605, 32
    %v1741 = vpop.permute.xlu0 %1740
    %1742 = vrot.lane.b32.xlu0 %v611, 32
    %v1743 = vpop.permute.xlu0 %1742
    %1744 = vrot.lane.b32.xlu0 %v617, 32
    %v1745 = vpop.permute.xlu0 %1744
    %1746 = vrot.lane.b32.xlu0 %v623, 32
    %v1747 = vpop.permute.xlu0 %1746
    %v1748 = vsel %vm726, %v1725, 0
    %v1750 = vsel %vm726, %v1727, 0
    %v1752 = vsel %vm726, %v1729, 0
    %v1754 = vsel %vm726, %v1731, 0
    %v1756 = vsel %vm726, %v1733, 0
    %v1758 = vsel %vm726, %v1735, 0
    %v1760 = vsel %vm726, %v1737, 0
    %v1762 = vsel %vm726, %v1739, 0
    %v1764 = vsel %vm726, %v1741, 0
    %v1766 = vsel %vm726, %v1743, 0
    %v1768 = vsel %vm726, %v1745, 0
    %v1770 = vsel %vm726, %v1747, 0
    %1772 = vmatprep.subr.mxu0 0.0
    %1773 = vmatpush1.xpose.msra.mxu0 %v1760
    %1774 = vmatprep.subr.mxu0 0.0
    %1775 = vmatpush1.xpose.msra.mxu0 %v1762
    %1776 = vmatprep.subr.mxu0 0.0
    %1777 = vmatpush1.xpose.msra.mxu0 %v1764
    %1778 = vmatprep.subr.mxu0 0.0
    %1779 = vmatpush1.xpose.msra.mxu0 %v1766
    %1780 = vmatprep.subr.mxu0 0.0
    %1781 = vmatpush1.xpose.msra.mxu0 %v1768
    %1782 = vmatprep.subr.mxu0 0.0
    %1783 = vmatpush1.xpose.msra.mxu0 %v1770
    %1784 = vmatprep.subr.mxu0 0.0
    %1785 = vmatpush1.xpose.msra.mxu0 0.0
    %1786 = vmatprep.subr.mxu0 0.0
    %1787 = vmatpush1.xpose.msra.mxu0 0.0
    %1788 = vmatprep.subr.mxu0 0.0
    %1789 = vmatpush1.xpose.msra.mxu0 0.0
    %1790 = vmatprep.subr.mxu0 0.0
    %1791 = vmatpush1.xpose.msra.mxu0 0.0
    %1792 = vmatprep.subr.mxu0 0.0
    %1793 = vmatpush1.xpose.msra.mxu0 0.0
    %1794 = vmatprep.subr.mxu0 0.0
    %1795 = vmatpush1.xpose.msra.mxu0 0.0
    %1796 = vmatprep.subr.mxu0 0.0
    %1797 = vmatpush1.xpose.msra.mxu0 0.0
    %1798 = vmatprep.subr.mxu0 0.0
    %1799 = vmatpush1.xpose.msra.mxu0 0.0
    %1800 = vmatprep.subr.mxu0 0.0
    %1801 = vmatpush1.xpose.msra.mxu0 0.0
    %1802 = vmatprep.subr.mxu0 0.0
    %1803 = vmatpush1.xpose.msra.mxu0 0.0
    %1804 = vmatprep.subr.mxu0 0.0
    %1805 = vmatpush1.xpose.msra.mxu0 0.0
    %1806 = vmatprep.subr.mxu0 0.0
    %1807 = vmatpush1.xpose.msra.mxu0 0.0
    %1808 = vmatprep.subr.mxu0 0.0
    %1809 = vmatpush1.xpose.msra.mxu0 0.0
    %1810 = vmatprep.subr.mxu0 0.0
    %1811 = vmatpush1.xpose.msra.mxu0 0.0
    %1812 = vmatprep.subr.mxu0 0.0
    %1813 = vmatpush1.xpose.msra.mxu0 0.0
    %1814 = vmatprep.subr.mxu0 0.0
    %1815 = vmatpush1.xpose.msra.mxu0 0.0
    %1816 = vmatprep.subr.mxu0 0.0
    %1817 = vmatpush1.xpose.msra.mxu0 0.0
    %1818 = vmatprep.subr.mxu0 0.0
    %1819 = vmatpush1.xpose.msra.mxu0 0.0
    %1820 = vmatprep.subr.mxu0 0.0
    %1821 = vmatpush1.xpose.msra.mxu0 0.0
    %1822 = vmatprep.subr.mxu0 0.0
    %1823 = vmatpush1.xpose.msra.mxu0 0.0
    %1824 = vmatprep.subr.mxu0 0.0
    %1825 = vmatpush1.xpose.msra.mxu0 0.0
    %1826 = vmatprep.subr.mxu0 0.0
    %1827 = vmatpush1.xpose.msra.mxu0 0.0
    %1828 = vmatprep.subr.mxu0 0.0
    %1829 = vmatpush1.xpose.msra.mxu0 0.0
    %1830 = vmatprep.subr.mxu0 0.0
    %1831 = vmatpush1.xpose.msra.mxu0 0.0
    %1832 = vmatprep.subr.mxu0 0.0
    %1833 = vmatpush1.xpose.msra.mxu0 0.0
    %1834 = vmatprep.subr.mxu0 0.0
    %1835 = vmatpush1.xpose.msra.mxu0 0.0
    %1836 = vmatprep.mubr.f32.mxu0 0.0
    %1837 = vmatmul.mubr.f32.gmra.mrb[0].mxu0 %v1748
    %v1838 = vpop.f32.mrb[0].mxu0
    %v1839 = vadd.f32 0.0, %v1838
    %v1840 = vpop.f32.mrb[0].mxu0
    %1841 = vmatprep.mubr.f32.mxu0 0.0
    %1842 = vmatmul.mubr.f32.gmra.mrb[0].mxu0 %v1750
    %v1843 = vpop.f32.mrb[0].mxu0
    %v1844 = vadd.f32 0.0, %v1843
    %v1845 = vpop.f32.mrb[0].mxu0
    %1846 = vmatprep.mubr.f32.mxu0 0.0
    %1847 = vmatmul.mubr.f32.gmra.mrb[0].mxu0 %v1752
    %v1848 = vpop.f32.mrb[0].mxu0
    %v1849 = vadd.f32 0.0, %v1848
    %v1850 = vpop.f32.mrb[0].mxu0
    %1851 = vmatprep.mubr.f32.mxu0 0.0
    %1852 = vmatmul.mubr.f32.gmra.mrb[0].mxu0 %v1754
    %v1853 = vpop.f32.mrb[0].mxu0
    %v1854 = vadd.f32 0.0, %v1853
    %v1855 = vpop.f32.mrb[0].mxu0
    %1856 = vmatprep.mubr.f32.mxu0 0.0
    %1857 = vmatmul.mubr.f32.gmra.mrb[0].mxu0 %v1756
    %v1858 = vpop.f32.mrb[0].mxu0
    %v1859 = vadd.f32 0.0, %v1858
    %v1860 = vpop.f32.mrb[0].mxu0
    %1861 = vmatprep.mubr.f32.mxu0 0.0
    %1862 = vmatmul.mubr.f32.gmra.mrb[0].mxu0 %v1758
    %v1863 = vpop.f32.mrb[0].mxu0
    %v1864 = vadd.f32 0.0, %v1863
    %v1865 = vpop.f32.mrb[0].mxu0
    %1866 = vdwg.mxu0
    %v1867 = vsel %vm858, %v1839, -inf
    %1868 = vmax.xlane.f32.xlu0 %v1867
    %v1869 = vpop.xlane.xlu0 %1868
    %v1870 = vsel %vm858, %v1844, -inf
    %1871 = vmax.xlane.f32.xlu0 %v1870
    %v1872 = vpop.xlane.xlu0 %1871
    %v1873 = vsel %vm858, %v1849, -inf
    %1874 = vmax.xlane.f32.xlu0 %v1873
    %v1875 = vpop.xlane.xlu0 %1874
    %v1876 = vsel %vm858, %v1854, -inf
    %1877 = vmax.xlane.f32.xlu0 %v1876
    %v1878 = vpop.xlane.xlu0 %1877
    %v1879 = vsel %vm858, %v1859, -inf
    %1880 = vmax.xlane.f32.xlu0 %v1879
    %v1881 = vpop.xlane.xlu0 %1880
    %v1882 = vsel %vm858, %v1864, -inf
    %1883 = vmax.xlane.f32.xlu0 %v1882
    %v1884 = vpop.xlane.xlu0 %1883
    %v1885 = vsub.f32 %v1839, %v1869
    %v1886 = vsub.f32 %v1844, %v1872
    %v1887 = vsub.f32 %v1849, %v1875
    %v1888 = vsub.f32 %v1854, %v1878
    %v1889 = vsub.f32 %v1859, %v1881
    %v1890 = vsub.f32 %v1864, %v1884
    %v1891 = vmul.f32 %v1885, 1.442695
    %v1892 = vpow.pop %v1891
    %v1893 = vmul.f32 %v1886, 1.442695
    %v1894 = vpow.pop %v1893
    %v1895 = vmul.f32 %v1887, 1.442695
    %v1896 = vpow.pop %v1895
    %v1897 = vmul.f32 %v1888, 1.442695
    %v1898 = vpow.pop %v1897
    %v1899 = vmul.f32 %v1889, 1.442695
    %v1900 = vpow.pop %v1899
    %v1901 = vmul.f32 %v1890, 1.442695
    %v1902 = vpow.pop %v1901
    %v1903 = vsel %vm858, %v1892, 0.0
    %1904 = vadd.xlane.f32.xlu0 %v1903
    %v1905 = vpop.xlane.xlu0 %1904
    %v1906 = vsel %vm858, %v1894, 0.0
    %1907 = vadd.xlane.f32.xlu0 %v1906
    %v1908 = vpop.xlane.xlu0 %1907
    %v1909 = vsel %vm858, %v1896, 0.0
    %1910 = vadd.xlane.f32.xlu0 %v1909
    %v1911 = vpop.xlane.xlu0 %1910
    %v1912 = vsel %vm858, %v1898, 0.0
    %1913 = vadd.xlane.f32.xlu0 %v1912
    %v1914 = vpop.xlane.xlu0 %1913
    %v1915 = vsel %vm858, %v1900, 0.0
    %1916 = vadd.xlane.f32.xlu0 %v1915
    %v1917 = vpop.xlane.xlu0 %1916
    %v1918 = vsel %vm858, %v1902, 0.0
    %1919 = vadd.xlane.f32.xlu0 %v1918
    %v1920 = vpop.xlane.xlu0 %1919
    %v1921 = vrcp.pop %v1905
    %v1922 = vrcp.pop %v1908
    %v1923 = vrcp.pop %v1911
    %v1924 = vrcp.pop %v1914
    %v1925 = vrcp.pop %v1917
    %v1926 = vrcp.pop %v1920
    %v1927 = vmul.f32 %v1892, %v1921
    %v1928 = vmul.f32 %v1894, %v1922
    %v1929 = vmul.f32 %v1896, %v1923
    %v1930 = vmul.f32 %v1898, %v1924
    %v1931 = vmul.f32 %v1900, %v1925
    %v1932 = vmul.f32 %v1902, %v1926
    %1933 = vrot.lane.b32.xlu0 %v692, 32
    %v1934 = vpop.permute.xlu0 %1933
    %1935 = vrot.lane.b32.xlu0 %v697, 32
    %v1936 = vpop.permute.xlu0 %1935
    %1937 = vrot.lane.b32.xlu0 %v702, 32
    %v1938 = vpop.permute.xlu0 %1937
    %1939 = vrot.lane.b32.xlu0 %v707, 32
    %v1940 = vpop.permute.xlu0 %1939
    %1941 = vrot.lane.b32.xlu0 %v712, 32
    %v1942 = vpop.permute.xlu0 %1941
    %1943 = vrot.lane.b32.xlu0 %v717, 32
    %v1944 = vpop.permute.xlu0 %1943
    %v1952 = vsel %vm858, %v1927, 0
    %v1955 = vsel %vm858, %v1928, 0
    %v1958 = vsel %vm858, %v1929, 0
    %v1961 = vsel %vm858, %v1930, 0
    %v1964 = vsel %vm858, %v1931, 0
    %v1967 = vsel %vm858, %v1932, 0
    %1969 = vmatprep.subr.mxu0 0.0
    %1970 = vmatpush1.msra.mxu0 %v1934
    %1971 = vmatprep.subr.mxu0 0.0
    %1972 = vmatpush1.msra.mxu0 %v1936
    %1973 = vmatprep.subr.mxu0 0.0
    %1974 = vmatpush1.msra.mxu0 %v1938
    %1975 = vmatprep.subr.mxu0 0.0
    %1976 = vmatpush1.msra.mxu0 %v1940
    %1977 = vmatprep.subr.mxu0 0.0
    %1978 = vmatpush1.msra.mxu0 %v1942
    %1979 = vmatprep.subr.mxu0 0.0
    %1980 = vmatpush1.msra.mxu0 %v1944
    %1981 = vmatprep.subr.mxu0 0.0
    %1982 = vmatpush1.msra.mxu0 0.0
    %1983 = vmatprep.subr.mxu0 0.0
    %1984 = vmatpush1.msra.mxu0 0.0
    %1985 = vmatprep.subr.mxu0 0.0
    %1986 = vmatpush1.msra.mxu0 0.0
    %1987 = vmatprep.subr.mxu0 0.0
    %1988 = vmatpush1.msra.mxu0 0.0
    %1989 = vmatprep.subr.mxu0 0.0
    %1990 = vmatpush1.msra.mxu0 0.0
    %1991 = vmatprep.subr.mxu0 0.0
    %1992 = vmatpush1.msra.mxu0 0.0
    %1993 = vmatprep.subr.mxu0 0.0
    %1994 = vmatpush1.msra.mxu0 0.0
    %1995 = vmatprep.subr.mxu0 0.0
    %1996 = vmatpush1.msra.mxu0 0.0
    %1997 = vmatprep.subr.mxu0 0.0
    %1998 = vmatpush1.msra.mxu0 0.0
    %1999 = vmatprep.subr.mxu0 0.0
    %2000 = vmatpush1.msra.mxu0 0.0
    %2001 = vmatprep.subr.mxu0 0.0
    %2002 = vmatpush1.msra.mxu0 0.0
    %2003 = vmatprep.subr.mxu0 0.0
    %2004 = vmatpush1.msra.mxu0 0.0
    %2005 = vmatprep.subr.mxu0 0.0
    %2006 = vmatpush1.msra.mxu0 0.0
    %2007 = vmatprep.subr.mxu0 0.0
    %2008 = vmatpush1.msra.mxu0 0.0
    %2009 = vmatprep.subr.mxu0 0.0
    %2010 = vmatpush1.msra.mxu0 0.0
    %2011 = vmatprep.subr.mxu0 0.0
    %2012 = vmatpush1.msra.mxu0 0.0
    %2013 = vmatprep.subr.mxu0 0.0
    %2014 = vmatpush1.msra.mxu0 0.0
    %2015 = vmatprep.subr.mxu0 0.0
    %2016 = vmatpush1.msra.mxu0 0.0
    %2017 = vmatprep.subr.mxu0 0.0
    %2018 = vmatpush1.msra.mxu0 0.0
    %2019 = vmatprep.subr.mxu0 0.0
    %2020 = vmatpush1.msra.mxu0 0.0
    %2021 = vmatprep.subr.mxu0 0.0
    %2022 = vmatpush1.msra.mxu0 0.0
    %2023 = vmatprep.subr.mxu0 0.0
    %2024 = vmatpush1.msra.mxu0 0.0
    %2025 = vmatprep.subr.mxu0 0.0
    %2026 = vmatpush1.msra.mxu0 0.0
    %2027 = vmatprep.subr.mxu0 0.0
    %2028 = vmatpush1.msra.mxu0 0.0
    %2029 = vmatprep.subr.mxu0 0.0
    %2030 = vmatpush1.msra.mxu0 0.0
    %2031 = vmatprep.subr.mxu0 0.0
    %2032 = vmatpush1.msra.mxu0 0.0
    %2033 = vmatprep.mubr.f32.mxu0 0.0
    %2034 = vmatmul.mubr.f32.gmra.mrb[0].mxu0 %v1952
    %v2035 = vpop.f32.mrb[0].mxu0
    %v2036 = vadd.f32 0.0, %v2035
    %v2037 = vpop.f32.mrb[0].mxu0
    %2038 = vmatprep.mubr.f32.mxu0 0.0
    %2039 = vmatmul.mubr.f32.gmra.mrb[0].mxu0 %v1955
    %v2040 = vpop.f32.mrb[0].mxu0
    %v2041 = vadd.f32 0.0, %v2040
    %v2042 = vpop.f32.mrb[0].mxu0
    %2043 = vmatprep.mubr.f32.mxu0 0.0
    %2044 = vmatmul.mubr.f32.gmra.mrb[0].mxu0 %v1958
    %v2045 = vpop.f32.mrb[0].mxu0
    %v2046 = vadd.f32 0.0, %v2045
    %v2047 = vpop.f32.mrb[0].mxu0
    %2048 = vmatprep.mubr.f32.mxu0 0.0
    %2049 = vmatmul.mubr.f32.gmra.mrb[0].mxu0 %v1961
    %v2050 = vpop.f32.mrb[0].mxu0
    %v2051 = vadd.f32 0.0, %v2050
    %v2052 = vpop.f32.mrb[0].mxu0
    %2053 = vmatprep.mubr.f32.mxu0 0.0
    %2054 = vmatmul.mubr.f32.gmra.mrb[0].mxu0 %v1964
    %v2055 = vpop.f32.mrb[0].mxu0
    %v2056 = vadd.f32 0.0, %v2055
    %v2057 = vpop.f32.mrb[0].mxu0
    %2058 = vmatprep.mubr.f32.mxu0 0.0
    %2059 = vmatmul.mubr.f32.gmra.mrb[0].mxu0 %v1967
    %v2060 = vpop.f32.mrb[0].mxu0
    %v2061 = vadd.f32 0.0, %v2060
    %v2062 = vpop.f32.mrb[0].mxu0
    %2063 = vdwg.mxu0
    %2070 = vrot.lane.b32.xlu0 %v1356, 32
    %v2071 = vpop.permute.xlu0 %2070
    %2072 = vrot.lane.b32.xlu0 %v1361, 32
    %v2073 = vpop.permute.xlu0 %2072
    %2074 = vrot.lane.b32.xlu0 %v1366, 32
    %v2075 = vpop.permute.xlu0 %2074
    %2076 = vrot.lane.b32.xlu0 %v1371, 32
    %v2077 = vpop.permute.xlu0 %2076
    %2078 = vrot.lane.b32.xlu0 %v1376, 32
    %v2079 = vpop.permute.xlu0 %2078
    %2080 = vrot.lane.b32.xlu0 %v1381, 32
    %v2081 = vpop.permute.xlu0 %2080
    %2094 = vrot.lane.b32.xlu0 %v1696, 64
    %v2095 = vpop.permute.xlu0 %2094
    %2096 = vrot.lane.b32.xlu0 %v1701, 64
    %v2097 = vpop.permute.xlu0 %2096
    %2098 = vrot.lane.b32.xlu0 %v1706, 64
    %v2099 = vpop.permute.xlu0 %2098
    %2100 = vrot.lane.b32.xlu0 %v1711, 64
    %v2101 = vpop.permute.xlu0 %2100
    %2102 = vrot.lane.b32.xlu0 %v1716, 64
    %v2103 = vpop.permute.xlu0 %2102
    %2104 = vrot.lane.b32.xlu0 %v1721, 64
    %v2105 = vpop.permute.xlu0 %2104
    %2118 = vrot.lane.b32.xlu0 %v2036, 96
    %v2119 = vpop.permute.xlu0 %2118
    %2120 = vrot.lane.b32.xlu0 %v2041, 96
    %v2121 = vpop.permute.xlu0 %2120
    %2122 = vrot.lane.b32.xlu0 %v2046, 96
    %v2123 = vpop.permute.xlu0 %2122
    %2124 = vrot.lane.b32.xlu0 %v2051, 96
    %v2125 = vpop.permute.xlu0 %2124
    %2126 = vrot.lane.b32.xlu0 %v2056, 96
    %v2127 = vpop.permute.xlu0 %2126
    %2128 = vrot.lane.b32.xlu0 %v2061, 96
    %v2129 = vpop.permute.xlu0 %2128
    %v2136 = vsel %vm726, %v1010, %v2071
    %v2137 = vsel %vm726, %v1015, %v2073
    %v2138 = vsel %vm726, %v1020, %v2075
    %v2139 = vsel %vm726, %v1025, %v2077
    %v2140 = vsel %vm726, %v1030, %v2079
    %v2141 = vsel %vm726, %v1035, %v2081
    %vm2142 = vcmask 523264
    %v2143 = vsel %vm2142, %v2136, %v2095
    %v2144 = vsel %vm2142, %v2137, %v2097
    %v2145 = vsel %vm2142, %v2138, %v2099
    %v2146 = vsel %vm2142, %v2139, %v2101
    %v2147 = vsel %vm2142, %v2140, %v2103
    %v2148 = vsel %vm2142, %v2141, %v2105
    %vm2149 = vcmask 785408
    %v2150 = vsel %vm2149, %v2143, %v2119
    %v2151 = vsel %vm2149, %v2144, %v2121
    %v2152 = vsel %vm2149, %v2145, %v2123
    %v2153 = vsel %vm2149, %v2146, %v2125
    %v2154 = vsel %vm2149, %v2147, %v2127
    %v2155 = vsel %vm2149, %v2148, %v2129
    %v2157 = vlaneseq
    %v2158 = vshrl.u32 %v2157, 7
    %v2159 = vsub.s32 0, %v2158
    %v2160 = vrot.slane %v278, %v2159
    %2162 = vmatprep.subr.mxu0 0.0
    %2163 = vmatpush1.msra.mxu0 %v262
    %2164 = vmatprep.subr.mxu0 0.0
    %2165 = vmatpush1.msra.mxu0 %v263
    %2166 = vmatprep.subr.mxu0 0.0
    %2167 = vmatpush1.msra.mxu0 %v264
    %2168 = vmatprep.subr.mxu0 0.0
    %2169 = vmatpush1.msra.mxu0 %v265
    %2170 = vmatprep.subr.mxu0 0.0
    %2171 = vmatpush1.msra.mxu0 %v266
    %2172 = vmatprep.subr.mxu0 0.0
    %2173 = vmatpush1.msra.mxu0 %v267
    %2174 = vmatprep.subr.mxu0 0.0
    %2175 = vmatpush1.msra.mxu0 %v268
    %2176 = vmatprep.subr.mxu0 0.0
    %2177 = vmatpush1.msra.mxu0 %v269
    %2178 = vmatprep.subr.mxu0 0.0
    %2179 = vmatpush1.msra.mxu0 %v270
    %2180 = vmatprep.subr.mxu0 0.0
    %2181 = vmatpush1.msra.mxu0 %v271
    %2182 = vmatprep.subr.mxu0 0.0
    %2183 = vmatpush1.msra.mxu0 %v272
    %2184 = vmatprep.subr.mxu0 0.0
    %2185 = vmatpush1.msra.mxu0 %v273
    %2186 = vmatprep.subr.mxu0 0.0
    %2187 = vmatpush1.msra.mxu0 %v274
    %2188 = vmatprep.subr.mxu0 0.0
    %2189 = vmatpush1.msra.mxu0 %v275
    %2190 = vmatprep.subr.mxu0 0.0
    %2191 = vmatpush1.msra.mxu0 %v276
    %2192 = vmatprep.subr.mxu0 0.0
    %2193 = vmatpush1.msra.mxu0 %v277
    %2194 = vmatprep.subr.mxu0 0.0
    %2195 = vmatpush1.msra.mxu0 0.0
    %2196 = vmatprep.subr.mxu0 0.0
    %2197 = vmatpush1.msra.mxu0 0.0
    %2198 = vmatprep.subr.mxu0 0.0
    %2199 = vmatpush1.msra.mxu0 0.0
    %2200 = vmatprep.subr.mxu0 0.0
    %2201 = vmatpush1.msra.mxu0 0.0
    %2202 = vmatprep.subr.mxu0 0.0
    %2203 = vmatpush1.msra.mxu0 0.0
    %2204 = vmatprep.subr.mxu0 0.0
    %2205 = vmatpush1.msra.mxu0 0.0
    %2206 = vmatprep.subr.mxu0 0.0
    %2207 = vmatpush1.msra.mxu0 0.0
    %2208 = vmatprep.subr.mxu0 0.0
    %2209 = vmatpush1.msra.mxu0 0.0
    %2210 = vmatprep.subr.mxu0 0.0
    %2211 = vmatpush1.msra.mxu0 0.0
    %2212 = vmatprep.subr.mxu0 0.0
    %2213 = vmatpush1.msra.mxu0 0.0
    %2214 = vmatprep.subr.mxu0 0.0
    %2215 = vmatpush1.msra.mxu0 0.0
    %2216 = vmatprep.subr.mxu0 0.0
    %2217 = vmatpush1.msra.mxu0 0.0
    %2218 = vmatprep.subr.mxu0 0.0
    %2219 = vmatpush1.msra.mxu0 0.0
    %2220 = vmatprep.subr.mxu0 0.0
    %2221 = vmatpush1.msra.mxu0 0.0
    %2222 = vmatprep.subr.mxu0 0.0
    %2223 = vmatpush1.msra.mxu0 0.0
    %2224 = vmatprep.subr.mxu0 0.0
    %2225 = vmatpush1.msra.mxu0 0.0
    %2226 = vmatprep.mubr.f32.mxu0 0.0
    %2227 = vmatmul.mubr.f32.gmra.mrb[0].mxu0 %v2150
    %v2228 = vpop.f32.mrb[0].mxu0
    %v2229 = vadd.f32 %v2160, %v2228
    %v2230 = vpop.f32.mrb[0].mxu0
    %2231 = vmatprep.mubr.f32.mxu0 0.0
    %2232 = vmatmul.mubr.f32.gmra.mrb[0].mxu0 %v2151
    %v2233 = vpop.f32.mrb[0].mxu0
    %v2234 = vadd.f32 %v2160, %v2233
    %v2235 = vpop.f32.mrb[0].mxu0
    %2236 = vmatprep.mubr.f32.mxu0 0.0
    %2237 = vmatmul.mubr.f32.gmra.mrb[0].mxu0 %v2152
    %v2238 = vpop.f32.mrb[0].mxu0
    %v2239 = vadd.f32 %v2160, %v2238
    %v2240 = vpop.f32.mrb[0].mxu0
    %2241 = vmatprep.mubr.f32.mxu0 0.0
    %2242 = vmatmul.mubr.f32.gmra.mrb[0].mxu0 %v2153
    %v2243 = vpop.f32.mrb[0].mxu0
    %v2244 = vadd.f32 %v2160, %v2243
    %v2245 = vpop.f32.mrb[0].mxu0
    %2246 = vmatprep.mubr.f32.mxu0 0.0
    %2247 = vmatmul.mubr.f32.gmra.mrb[0].mxu0 %v2154
    %v2248 = vpop.f32.mrb[0].mxu0
    %v2249 = vadd.f32 %v2160, %v2248
    %v2250 = vpop.f32.mrb[0].mxu0
    %2251 = vmatprep.mubr.f32.mxu0 0.0
    %2252 = vmatmul.mubr.f32.gmra.mrb[0].mxu0 %v2155
    %v2253 = vpop.f32.mrb[0].mxu0
    %v2254 = vadd.f32 %v2160, %v2253
    %v2255 = vpop.f32.mrb[0].mxu0
    %2256 = vdwg.mxu0
    %v2257 = vadd.f32 %v399, %v2229
    %v2258 = vadd.f32 %v413, %v2234
    %v2259 = vadd.f32 %v453, %v2239
    %v2260 = vadd.f32 %v467, %v2244
    %v2261 = vadd.f32 %v481, %v2249
    %v2262 = vadd.f32 %v506, %v2254
    %2263 = vadd.xlane.f32.xlu0 %v2257
    %v2264 = vpop.xlane.xlu0 %2263
    %2265 = vadd.xlane.f32.xlu0 %v2258
    %v2266 = vpop.xlane.xlu0 %2265
    %2267 = vadd.xlane.f32.xlu0 %v2259
    %v2268 = vpop.xlane.xlu0 %2267
    %2269 = vadd.xlane.f32.xlu0 %v2260
    %v2270 = vpop.xlane.xlu0 %2269
    %2271 = vadd.xlane.f32.xlu0 %v2261
    %v2272 = vpop.xlane.xlu0 %2271
    %2273 = vadd.xlane.f32.xlu0 %v2262
    %v2274 = vpop.xlane.xlu0 %2273
    %v2275 = vrcp.pop 128.0
    %v2276 = vmul.f32 %v2264, %v2275
    %v2277 = vmul.f32 %v2266, %v2275
    %v2278 = vmul.f32 %v2268, %v2275
    %v2279 = vmul.f32 %v2270, %v2275
    %v2280 = vmul.f32 %v2272, %v2275
    %v2281 = vmul.f32 %v2274, %v2275
    %v2282 = vsub.f32 %v2257, %v2276
    %v2283 = vsub.f32 %v2258, %v2277
    %v2284 = vsub.f32 %v2259, %v2278
    %v2285 = vsub.f32 %v2260, %v2279
    %v2286 = vsub.f32 %v2261, %v2280
    %v2287 = vsub.f32 %v2262, %v2281
    %v2288 = vmul.f32 %v2282, %v2282
    %v2289 = vmul.f32 %v2283, %v2283
    %v2290 = vmul.f32 %v2284, %v2284
    %v2291 = vmul.f32 %v2285, %v2285
    %v2292 = vmul.f32 %v2286, %v2286
    %v2293 = vmul.f32 %v2287, %v2287
    %2294 = vadd.xlane.f32.xlu0 %v2288
    %v2295 = vpop.xlane.xlu0 %2294
    %2296 = vadd.xlane.f32.xlu0 %v2289
    %v2297 = vpop.xlane.xlu0 %2296
    %2298 = vadd.xlane.f32.xlu0 %v2290
    %v2299 = vpop.xlane.xlu0 %2298
    %2300 = vadd.xlane.f32.xlu0 %v2291
    %v2301 = vpop.xlane.xlu0 %2300
    %2302 = vadd.xlane.f32.xlu0 %v2292
    %v2303 = vpop.xlane.xlu0 %2302
    %2304 = vadd.xlane.f32.xlu0 %v2293
    %v2305 = vpop.xlane.xlu0 %2304
    %v2306 = vmul.f32 %v2295, %v2275
    %v2307 = vmul.f32 %v2297, %v2275
    %v2308 = vmul.f32 %v2299, %v2275
    %v2309 = vmul.f32 %v2301, %v2275
    %v2310 = vmul.f32 %v2303, %v2275
    %v2311 = vmul.f32 %v2305, %v2275
    %v2312 = vadd.f32 %v2306, 1e-05
    %v2313 = vadd.f32 %v2307, 1e-05
    %v2314 = vadd.f32 %v2308, 1e-05
    %v2315 = vadd.f32 %v2309, 1e-05
    %v2316 = vadd.f32 %v2310, 1e-05
    %v2317 = vadd.f32 %v2311, 1e-05
    %v2318 = vrsqrt.pop %v2312
    %v2319 = vrsqrt.pop %v2313
    %v2320 = vrsqrt.pop %v2314
    %v2321 = vrsqrt.pop %v2315
    %v2322 = vrsqrt.pop %v2316
    %v2323 = vrsqrt.pop %v2317
    %v2324 = vmul.f32 %v2282, %v2318
    %v2325 = vmul.f32 %v2283, %v2319
    %v2326 = vmul.f32 %v2284, %v2320
    %v2327 = vmul.f32 %v2285, %v2321
    %v2328 = vmul.f32 %v2286, %v2322
    %v2329 = vmul.f32 %v2287, %v2323
    %v2331 = vlaneseq
    %v2332 = vshrl.u32 %v2331, 7
    %v2333 = vsub.s32 0, %v2332
    %v2334 = vrot.slane %v279, %v2333
    %v2336 = vmul.f32 %v2324, %v2334
    %v2337 = vmul.f32 %v2325, %v2334
    %v2338 = vmul.f32 %v2326, %v2334
    %v2339 = vmul.f32 %v2327, %v2334
    %v2340 = vmul.f32 %v2328, %v2334
    %v2341 = vmul.f32 %v2329, %v2334
    %v2343 = vlaneseq
    %v2344 = vshrl.u32 %v2343, 7
    %v2345 = vsub.s32 0, %v2344
    %v2346 = vrot.slane %v280, %v2345
    %v2348 = vadd.f32 %v2336, %v2346
    %v2349 = vadd.f32 %v2337, %v2346
    %v2350 = vadd.f32 %v2338, %v2346
    %v2351 = vadd.f32 %v2339, %v2346
    %v2352 = vadd.f32 %v2340, %v2346
    %v2353 = vadd.f32 %v2341, %v2346
    %v2355 = vlaneseq
    %v2356 = vshrl.u32 %v2355, 7
    %v2357 = vsub.s32 0, %v2356
    %v2358 = vrot.slane %v297, %v2357
    %2360 = vmatprep.subr.mxu0 0.0
    %2361 = vmatpush1.msra.mxu0 %v281
    %2362 = vmatprep.subr.mxu0 0.0
    %2363 = vmatpush1.msra.mxu0 %v282
    %2364 = vmatprep.subr.mxu0 0.0
    %2365 = vmatpush1.msra.mxu0 %v283
    %2366 = vmatprep.subr.mxu0 0.0
    %2367 = vmatpush1.msra.mxu0 %v284
    %2368 = vmatprep.subr.mxu0 0.0
    %2369 = vmatpush1.msra.mxu0 %v285
    %2370 = vmatprep.subr.mxu0 0.0
    %2371 = vmatpush1.msra.mxu0 %v286
    %2372 = vmatprep.subr.mxu0 0.0
    %2373 = vmatpush1.msra.mxu0 %v287
    %2374 = vmatprep.subr.mxu0 0.0
    %2375 = vmatpush1.msra.mxu0 %v288
    %2376 = vmatprep.subr.mxu0 0.0
    %2377 = vmatpush1.msra.mxu0 %v289
    %2378 = vmatprep.subr.mxu0 0.0
    %2379 = vmatpush1.msra.mxu0 %v290
    %2380 = vmatprep.subr.mxu0 0.0
    %2381 = vmatpush1.msra.mxu0 %v291
    %2382 = vmatprep.subr.mxu0 0.0
    %2383 = vmatpush1.msra.mxu0 %v292
    %2384 = vmatprep.subr.mxu0 0.0
    %2385 = vmatpush1.msra.mxu0 %v293
    %2386 = vmatprep.subr.mxu0 0.0
    %2387 = vmatpush1.msra.mxu0 %v294
    %2388 = vmatprep.subr.mxu0 0.0
    %2389 = vmatpush1.msra.mxu0 %v295
    %2390 = vmatprep.subr.mxu0 0.0
    %2391 = vmatpush1.msra.mxu0 %v296
    %2392 = vmatprep.subr.mxu0 0.0
    %2393 = vmatpush1.msra.mxu0 0.0
    %2394 = vmatprep.subr.mxu0 0.0
    %2395 = vmatpush1.msra.mxu0 0.0
    %2396 = vmatprep.subr.mxu0 0.0
    %2397 = vmatpush1.msra.mxu0 0.0
    %2398 = vmatprep.subr.mxu0 0.0
    %2399 = vmatpush1.msra.mxu0 0.0
    %2400 = vmatprep.subr.mxu0 0.0
    %2401 = vmatpush1.msra.mxu0 0.0
    %2402 = vmatprep.subr.mxu0 0.0
    %2403 = vmatpush1.msra.mxu0 0.0
    %2404 = vmatprep.subr.mxu0 0.0
    %2405 = vmatpush1.msra.mxu0 0.0
    %2406 = vmatprep.subr.mxu0 0.0
    %2407 = vmatpush1.msra.mxu0 0.0
    %2408 = vmatprep.subr.mxu0 0.0
    %2409 = vmatpush1.msra.mxu0 0.0
    %2410 = vmatprep.subr.mxu0 0.0
    %2411 = vmatpush1.msra.mxu0 0.0
    %2412 = vmatprep.subr.mxu0 0.0
    %2413 = vmatpush1.msra.mxu0 0.0
    %2414 = vmatprep.subr.mxu0 0.0
    %2415 = vmatpush1.msra.mxu0 0.0
    %2416 = vmatprep.subr.mxu0 0.0
    %2417 = vmatpush1.msra.mxu0 0.0
    %2418 = vmatprep.subr.mxu0 0.0
    %2419 = vmatpush1.msra.mxu0 0.0
    %2420 = vmatprep.subr.mxu0 0.0
    %2421 = vmatpush1.msra.mxu0 0.0
    %2422 = vmatprep.subr.mxu0 0.0
    %2423 = vmatpush1.msra.mxu0 0.0
    %2424 = vmatprep.mubr.f32.mxu0 0.0
    %2425 = vmatmul.mubr.f32.gmra.mrb[0].mxu0 %v2348
    %v2426 = vpop.f32.mrb[0].mxu0
    %v2427 = vadd.f32 %v2358, %v2426
    %v2428 = vpop.f32.mrb[0].mxu0
    %2429 = vmatprep.mubr.f32.mxu0 0.0
    %2430 = vmatmul.mubr.f32.gmra.mrb[0].mxu0 %v2349
    %v2431 = vpop.f32.mrb[0].mxu0
    %v2432 = vadd.f32 %v2358, %v2431
    %v2433 = vpop.f32.mrb[0].mxu0
    %2434 = vmatprep.mubr.f32.mxu0 0.0
    %2435 = vmatmul.mubr.f32.gmra.mrb[0].mxu0 %v2350
    %v2436 = vpop.f32.mrb[0].mxu0
    %v2437 = vadd.f32 %v2358, %v2436
    %v2438 = vpop.f32.mrb[0].mxu0
    %2439 = vmatprep.mubr.f32.mxu0 0.0
    %2440 = vmatmul.mubr.f32.gmra.mrb[0].mxu0 %v2351
    %v2441 = vpop.f32.mrb[0].mxu0
    %v2442 = vadd.f32 %v2358, %v2441
    %v2443 = vpop.f32.mrb[0].mxu0
    %2444 = vmatprep.mubr.f32.mxu0 0.0
    %2445 = vmatmul.mubr.f32.gmra.mrb[0].mxu0 %v2352
    %v2446 = vpop.f32.mrb[0].mxu0
    %v2447 = vadd.f32 %v2358, %v2446
    %v2448 = vpop.f32.mrb[0].mxu0
    %2449 = vmatprep.mubr.f32.mxu0 0.0
    %2450 = vmatmul.mubr.f32.gmra.mrb[0].mxu0 %v2353
    %v2451 = vpop.f32.mrb[0].mxu0
    %v2452 = vadd.f32 %v2358, %v2451
    %v2453 = vpop.f32.mrb[0].mxu0
    %2454 = vdwg.mxu0
    %v2455 = vmax.f32 %v2427, 0.0
    %v2456 = vmax.f32 %v2432, 0.0
    %v2457 = vmax.f32 %v2437, 0.0
    %v2458 = vmax.f32 %v2442, 0.0
    %v2459 = vmax.f32 %v2447, 0.0
    %v2460 = vmax.f32 %v2452, 0.0
    %v2462 = vlaneseq
    %v2463 = vshrl.u32 %v2462, 7
    %v2464 = vsub.s32 0, %v2463
    %v2465 = vrot.slane %v314, %v2464
    %2467 = vmatprep.subr.mxu0 0.0
    %2468 = vmatpush1.msra.mxu0 %v298
    %2469 = vmatprep.subr.mxu0 0.0
    %2470 = vmatpush1.msra.mxu0 %v299
    %2471 = vmatprep.subr.mxu0 0.0
    %2472 = vmatpush1.msra.mxu0 %v300
    %2473 = vmatprep.subr.mxu0 0.0
    %2474 = vmatpush1.msra.mxu0 %v301
    %2475 = vmatprep.subr.mxu0 0.0
    %2476 = vmatpush1.msra.mxu0 %v302
    %2477 = vmatprep.subr.mxu0 0.0
    %2478 = vmatpush1.msra.mxu0 %v303
    %2479 = vmatprep.subr.mxu0 0.0
    %2480 = vmatpush1.msra.mxu0 %v304
    %2481 = vmatprep.subr.mxu0 0.0
    %2482 = vmatpush1.msra.mxu0 %v305
    %2483 = vmatprep.subr.mxu0 0.0
    %2484 = vmatpush1.msra.mxu0 %v306
    %2485 = vmatprep.subr.mxu0 0.0
    %2486 = vmatpush1.msra.mxu0 %v307
    %2487 = vmatprep.subr.mxu0 0.0
    %2488 = vmatpush1.msra.mxu0 %v308
    %2489 = vmatprep.subr.mxu0 0.0
    %2490 = vmatpush1.msra.mxu0 %v309
    %2491 = vmatprep.subr.mxu0 0.0
    %2492 = vmatpush1.msra.mxu0 %v310
    %2493 = vmatprep.subr.mxu0 0.0
    %2494 = vmatpush1.msra.mxu0 %v311
    %2495 = vmatprep.subr.mxu0 0.0
    %2496 = vmatpush1.msra.mxu0 %v312
    %2497 = vmatprep.subr.mxu0 0.0
    %2498 = vmatpush1.msra.mxu0 %v313
    %2499 = vmatprep.subr.mxu0 0.0
    %2500 = vmatpush1.msra.mxu0 0.0
    %2501 = vmatprep.subr.mxu0 0.0
    %2502 = vmatpush1.msra.mxu0 0.0
    %2503 = vmatprep.subr.mxu0 0.0
    %2504 = vmatpush1.msra.mxu0 0.0
    %2505 = vmatprep.subr.mxu0 0.0
    %2506 = vmatpush1.msra.mxu0 0.0
    %2507 = vmatprep.subr.mxu0 0.0
    %2508 = vmatpush1.msra.mxu0 0.0
    %2509 = vmatprep.subr.mxu0 0.0
    %2510 = vmatpush1.msra.mxu0 0.0
    %2511 = vmatprep.subr.mxu0 0.0
    %2512 = vmatpush1.msra.mxu0 0.0
    %2513 = vmatprep.subr.mxu0 0.0
    %2514 = vmatpush1.msra.mxu0 0.0
    %2515 = vmatprep.subr.mxu0 0.0
    %2516 = vmatpush1.msra.mxu0 0.0
    %2517 = vmatprep.subr.mxu0 0.0
    %2518 = vmatpush1.msra.mxu0 0.0
    %2519 = vmatprep.subr.mxu0 0.0
    %2520 = vmatpush1.msra.mxu0 0.0
    %2521 = vmatprep.subr.mxu0 0.0
    %2522 = vmatpush1.msra.mxu0 0.0
    %2523 = vmatprep.subr.mxu0 0.0
    %2524 = vmatpush1.msra.mxu0 0.0
    %2525 = vmatprep.subr.mxu0 0.0
    %2526 = vmatpush1.msra.mxu0 0.0
    %2527 = vmatprep.subr.mxu0 0.0
    %2528 = vmatpush1.msra.mxu0 0.0
    %2529 = vmatprep.subr.mxu0 0.0
    %2530 = vmatpush1.msra.mxu0 0.0
    %2531 = vmatprep.mubr.f32.mxu0 0.0
    %2532 = vmatmul.mubr.f32.gmra.mrb[0].mxu0 %v2455
    %v2533 = vpop.f32.mrb[0].mxu0
    %v2534 = vadd.f32 %v2465, %v2533
    %v2535 = vpop.f32.mrb[0].mxu0
    %2536 = vmatprep.mubr.f32.mxu0 0.0
    %2537 = vmatmul.mubr.f32.gmra.mrb[0].mxu0 %v2456
    %v2538 = vpop.f32.mrb[0].mxu0
    %v2539 = vadd.f32 %v2465, %v2538
    %v2540 = vpop.f32.mrb[0].mxu0
    %2541 = vmatprep.mubr.f32.mxu0 0.0
    %2542 = vmatmul.mubr.f32.gmra.mrb[0].mxu0 %v2457
    %v2543 = vpop.f32.mrb[0].mxu0
    %v2544 = vadd.f32 %v2465, %v2543
    %v2545 = vpop.f32.mrb[0].mxu0
    %2546 = vmatprep.mubr.f32.mxu0 0.0
    %2547 = vmatmul.mubr.f32.gmra.mrb[0].mxu0 %v2458
    %v2548 = vpop.f32.mrb[0].mxu0
    %v2549 = vadd.f32 %v2465, %v2548
    %v2550 = vpop.f32.mrb[0].mxu0
    %2551 = vmatprep.mubr.f32.mxu0 0.0
    %2552 = vmatmul.mubr.f32.gmra.mrb[0].mxu0 %v2459
    %v2553 = vpop.f32.mrb[0].mxu0
    %v2554 = vadd.f32 %v2465, %v2553
    %v2555 = vpop.f32.mrb[0].mxu0
    %2556 = vmatprep.mubr.f32.mxu0 0.0
    %2557 = vmatmul.mubr.f32.gmra.mrb[0].mxu0 %v2460
    %v2558 = vpop.f32.mrb[0].mxu0
    %v2559 = vadd.f32 %v2465, %v2558
    %v2560 = vpop.f32.mrb[0].mxu0
    %2561 = vdwg.mxu0
    %v2562 = vadd.f32 %v2348, %v2534
    %v2563 = vadd.f32 %v2349, %v2539
    %v2564 = vadd.f32 %v2350, %v2544
    %v2565 = vadd.f32 %v2351, %v2549
    %v2566 = vadd.f32 %v2352, %v2554
    %v2567 = vadd.f32 %v2353, %v2559
    %v2570 = vcombine.high %v2562, %v2562
    %v2572 = vunpack.c.l.s4 1966171168
    %v2573 = vunpack.c.0.s8 %v2572
    %v2574 = vlaneseq
    %v2575 = vshrl.u32 %v2574, 7
    %v2576 = vsub.s32 %v2573, %v2575
    %v2577 = vrot.slane %v2562, %v2576
    %v2579 = vunpack.c.l.s4 1966171168
    %v2580 = vunpack.c.0.s8 %v2579
    %v2581 = vlaneseq
    %v2582 = vshrl.u32 %v2581, 7
    %v2583 = vsub.s32 %v2580, %v2582
    %v2584 = vrot.slane %v2570, %v2583
    %v2585 = vcombine.high %v2577, %v2577
    %v2586 = vcombine.high %v2584, %v2584
    %v2588 = vunpack.c.l.s4 1966171168
    %v2589 = vunpack.c.0.s8 %v2588
    %v2590 = vlaneseq
    %v2591 = vshrl.u32 %v2590, 7
    %v2592 = vsub.s32 %v2589, %v2591
    %v2593 = vrot.slane %v2577, %v2592
    %v2595 = vunpack.c.l.s4 1966171168
    %v2596 = vunpack.c.0.s8 %v2595
    %v2597 = vlaneseq
    %v2598 = vshrl.u32 %v2597, 7
    %v2599 = vsub.s32 %v2596, %v2598
    %v2600 = vrot.slane %v2584, %v2599
    %v2602 = vunpack.c.l.s4 1966171168
    %v2603 = vunpack.c.0.s8 %v2602
    %v2604 = vlaneseq
    %v2605 = vshrl.u32 %v2604, 7
    %v2606 = vsub.s32 %v2603, %v2605
    %v2607 = vrot.slane %v2585, %v2606
    %v2609 = vunpack.c.l.s4 1966171168
    %v2610 = vunpack.c.0.s8 %v2609
    %v2611 = vlaneseq
    %v2612 = vshrl.u32 %v2611, 7
    %v2613 = vsub.s32 %v2610, %v2612
    %v2614 = vrot.slane %v2586, %v2613
    %v2615 = vcombine.high %v2593, %v2593
    %v2616 = vcombine.high %v2600, %v2600
    %v2617 = vcombine.high %v2607, %v2607
    %v2618 = vcombine.high %v2614, %v2614
    %v2619 = vcombine.high %v2563, %v2563
    %v2621 = vunpack.c.l.s4 1966171168
    %v2622 = vunpack.c.0.s8 %v2621
    %v2623 = vlaneseq
    %v2624 = vshrl.u32 %v2623, 7
    %v2625 = vsub.s32 %v2622, %v2624
    %v2626 = vrot.slane %v2563, %v2625
    %v2628 = vunpack.c.l.s4 1966171168
    %v2629 = vunpack.c.0.s8 %v2628
    %v2630 = vlaneseq
    %v2631 = vshrl.u32 %v2630, 7
    %v2632 = vsub.s32 %v2629, %v2631
    %v2633 = vrot.slane %v2619, %v2632
    %v2634 = vcombine.high %v2626, %v2626
    %v2635 = vcombine.high %v2633, %v2633
    %v2637 = vunpack.c.l.s4 1966171168
    %v2638 = vunpack.c.0.s8 %v2637
    %v2639 = vlaneseq
    %v2640 = vshrl.u32 %v2639, 7
    %v2641 = vsub.s32 %v2638, %v2640
    %v2642 = vrot.slane %v2626, %v2641
    %v2644 = vunpack.c.l.s4 1966171168
    %v2645 = vunpack.c.0.s8 %v2644
    %v2646 = vlaneseq
    %v2647 = vshrl.u32 %v2646, 7
    %v2648 = vsub.s32 %v2645, %v2647
    %v2649 = vrot.slane %v2633, %v2648
    %v2651 = vunpack.c.l.s4 1966171168
    %v2652 = vunpack.c.0.s8 %v2651
    %v2653 = vlaneseq
    %v2654 = vshrl.u32 %v2653, 7
    %v2655 = vsub.s32 %v2652, %v2654
    %v2656 = vrot.slane %v2634, %v2655
    %v2658 = vunpack.c.l.s4 1966171168
    %v2659 = vunpack.c.0.s8 %v2658
    %v2660 = vlaneseq
    %v2661 = vshrl.u32 %v2660, 7
    %v2662 = vsub.s32 %v2659, %v2661
    %v2663 = vrot.slane %v2635, %v2662
    %v2664 = vcombine.high %v2642, %v2642
    %v2665 = vcombine.high %v2649, %v2649
    %v2666 = vcombine.high %v2656, %v2656
    %v2667 = vcombine.high %v2663, %v2663
    %2684 = vst [vmem:[#allocation26] sm:$0x1] %v2593
    %2685 = vst [vmem:[#allocation26 + $0x2] sm:$0x1] %v2607
    %2686 = vst [vmem:[#allocation26 + $0x4] sm:$0x1] %v2615
    %2687 = vst [vmem:[#allocation26 + $0x6] sm:$0x1] %v2617
    %2688 = vst [vmem:[#allocation26 + $0x8] sm:$0x1] %v2600
    %2689 = vst [vmem:[#allocation26 + $0xa] sm:$0x1] %v2614
    %2690 = vst [vmem:[#allocation26 + $0xc] sm:$0x1] %v2616
    %2691 = vst [vmem:[#allocation26 + $0xe] sm:$0x1] %v2618
    %2692 = vst [vmem:[#allocation26 + $0x10] sm:$0x1] %v2642
    %2693 = vst [vmem:[#allocation26 + $0x12] sm:$0x1] %v2656
    %2694 = vst [vmem:[#allocation26 + $0x14] sm:$0x1] %v2664
    %2695 = vst [vmem:[#allocation26 + $0x16] sm:$0x1] %v2666
    %2696 = vst [vmem:[#allocation26 + $0x18] sm:$0x1] %v2649
    %2697 = vst [vmem:[#allocation26 + $0x1a] sm:$0x1] %v2663
    %2698 = vst [vmem:[#allocation26 + $0x1c] sm:$0x1] %v2665
    %2699 = vst [vmem:[#allocation26 + $0x1e] sm:$0x1] %v2667
    %v2703 = vcombine.high %v2564, %v2564
    %v2705 = vunpack.c.l.s4 1966171168
    %v2706 = vunpack.c.0.s8 %v2705
    %v2707 = vlaneseq
    %v2708 = vshrl.u32 %v2707, 7
    %v2709 = vsub.s32 %v2706, %v2708
    %v2710 = vrot.slane %v2564, %v2709
    %v2712 = vunpack.c.l.s4 1966171168
    %v2713 = vunpack.c.0.s8 %v2712
    %v2714 = vlaneseq
    %v2715 = vshrl.u32 %v2714, 7
    %v2716 = vsub.s32 %v2713, %v2715
    %v2717 = vrot.slane %v2703, %v2716
    %v2718 = vcombine.high %v2710, %v2710
    %v2719 = vcombine.high %v2717, %v2717
    %v2721 = vunpack.c.l.s4 1966171168
    %v2722 = vunpack.c.0.s8 %v2721
    %v2723 = vlaneseq
    %v2724 = vshrl.u32 %v2723, 7
    %v2725 = vsub.s32 %v2722, %v2724
    %v2726 = vrot.slane %v2710, %v2725
    %v2728 = vunpack.c.l.s4 1966171168
    %v2729 = vunpack.c.0.s8 %v2728
    %v2730 = vlaneseq
    %v2731 = vshrl.u32 %v2730, 7
    %v2732 = vsub.s32 %v2729, %v2731
    %v2733 = vrot.slane %v2717, %v2732
    %v2735 = vunpack.c.l.s4 1966171168
    %v2736 = vunpack.c.0.s8 %v2735
    %v2737 = vlaneseq
    %v2738 = vshrl.u32 %v2737, 7
    %v2739 = vsub.s32 %v2736, %v2738
    %v2740 = vrot.slane %v2718, %v2739
    %v2742 = vunpack.c.l.s4 1966171168
    %v2743 = vunpack.c.0.s8 %v2742
    %v2744 = vlaneseq
    %v2745 = vshrl.u32 %v2744, 7
    %v2746 = vsub.s32 %v2743, %v2745
    %v2747 = vrot.slane %v2719, %v2746
    %v2748 = vcombine.high %v2726, %v2726
    %v2749 = vcombine.high %v2733, %v2733
    %v2750 = vcombine.high %v2740, %v2740
    %v2751 = vcombine.high %v2747, %v2747
    %v2752 = vcombine.high %v2565, %v2565
    %v2754 = vunpack.c.l.s4 1966171168
    %v2755 = vunpack.c.0.s8 %v2754
    %v2756 = vlaneseq
    %v2757 = vshrl.u32 %v2756, 7
    %v2758 = vsub.s32 %v2755, %v2757
    %v2759 = vrot.slane %v2565, %v2758
    %v2761 = vunpack.c.l.s4 1966171168
    %v2762 = vunpack.c.0.s8 %v2761
    %v2763 = vlaneseq
    %v2764 = vshrl.u32 %v2763, 7
    %v2765 = vsub.s32 %v2762, %v2764
    %v2766 = vrot.slane %v2752, %v2765
    %v2767 = vcombine.high %v2759, %v2759
    %v2768 = vcombine.high %v2766, %v2766
    %v2770 = vunpack.c.l.s4 1966171168
    %v2771 = vunpack.c.0.s8 %v2770
    %v2772 = vlaneseq
    %v2773 = vshrl.u32 %v2772, 7
    %v2774 = vsub.s32 %v2771, %v2773
    %v2775 = vrot.slane %v2759, %v2774
    %v2777 = vunpack.c.l.s4 1966171168
    %v2778 = vunpack.c.0.s8 %v2777
    %v2779 = vlaneseq
    %v2780 = vshrl.u32 %v2779, 7
    %v2781 = vsub.s32 %v2778, %v2780
    %v2782 = vrot.slane %v2766, %v2781
    %v2784 = vunpack.c.l.s4 1966171168
    %v2785 = vunpack.c.0.s8 %v2784
    %v2786 = vlaneseq
    %v2787 = vshrl.u32 %v2786, 7
    %v2788 = vsub.s32 %v2785, %v2787
    %v2789 = vrot.slane %v2767, %v2788
    %v2791 = vunpack.c.l.s4 1966171168
    %v2792 = vunpack.c.0.s8 %v2791
    %v2793 = vlaneseq
    %v2794 = vshrl.u32 %v2793, 7
    %v2795 = vsub.s32 %v2792, %v2794
    %v2796 = vrot.slane %v2768, %v2795
    %v2797 = vcombine.high %v2775, %v2775
    %v2798 = vcombine.high %v2782, %v2782
    %v2799 = vcombine.high %v2789, %v2789
    %v2800 = vcombine.high %v2796, %v2796
    %v2801 = vcombine.high %v2566, %v2566
    %v2803 = vunpack.c.l.s4 1966171168
    %v2804 = vunpack.c.0.s8 %v2803
    %v2805 = vlaneseq
    %v2806 = vshrl.u32 %v2805, 7
    %v2807 = vsub.s32 %v2804, %v2806
    %v2808 = vrot.slane %v2566, %v2807
    %v2810 = vunpack.c.l.s4 1966171168
    %v2811 = vunpack.c.0.s8 %v2810
    %v2812 = vlaneseq
    %v2813 = vshrl.u32 %v2812, 7
    %v2814 = vsub.s32 %v2811, %v2813
    %v2815 = vrot.slane %v2801, %v2814
    %v2816 = vcombine.high %v2808, %v2808
    %v2817 = vcombine.high %v2815, %v2815
    %v2819 = vunpack.c.l.s4 1966171168
    %v2820 = vunpack.c.0.s8 %v2819
    %v2821 = vlaneseq
    %v2822 = vshrl.u32 %v2821, 7
    %v2823 = vsub.s32 %v2820, %v2822
    %v2824 = vrot.slane %v2808, %v2823
    %v2826 = vunpack.c.l.s4 1966171168
    %v2827 = vunpack.c.0.s8 %v2826
    %v2828 = vlaneseq
    %v2829 = vshrl.u32 %v2828, 7
    %v2830 = vsub.s32 %v2827, %v2829
    %v2831 = vrot.slane %v2815, %v2830
    %v2833 = vunpack.c.l.s4 1966171168
    %v2834 = vunpack.c.0.s8 %v2833
    %v2835 = vlaneseq
    %v2836 = vshrl.u32 %v2835, 7
    %v2837 = vsub.s32 %v2834, %v2836
    %v2838 = vrot.slane %v2816, %v2837
    %v2840 = vunpack.c.l.s4 1966171168
    %v2841 = vunpack.c.0.s8 %v2840
    %v2842 = vlaneseq
    %v2843 = vshrl.u32 %v2842, 7
    %v2844 = vsub.s32 %v2841, %v2843
    %v2845 = vrot.slane %v2817, %v2844
    %v2846 = vcombine.high %v2824, %v2824
    %v2847 = vcombine.high %v2831, %v2831
    %v2848 = vcombine.high %v2838, %v2838
    %v2849 = vcombine.high %v2845, %v2845
    %2874 = vst [vmem:[#allocation23] sm:$0x1] %v2726
    %2875 = vst [vmem:[#allocation23 + $0x2] sm:$0x1] %v2740
    %2876 = vst [vmem:[#allocation23 + $0x4] sm:$0x1] %v2748
    %2877 = vst [vmem:[#allocation23 + $0x6] sm:$0x1] %v2750
    %2878 = vst [vmem:[#allocation23 + $0x8] sm:$0x1] %v2733
    %2879 = vst [vmem:[#allocation23 + $0xa] sm:$0x1] %v2747
    %2880 = vst [vmem:[#allocation23 + $0xc] sm:$0x1] %v2749
    %2881 = vst [vmem:[#allocation23 + $0xe] sm:$0x1] %v2751
    %2882 = vst [vmem:[#allocation23 + $0x10] sm:$0x1] %v2775
    %2883 = vst [vmem:[#allocation23 + $0x12] sm:$0x1] %v2789
    %2884 = vst [vmem:[#allocation23 + $0x14] sm:$0x1] %v2797
    %2885 = vst [vmem:[#allocation23 + $0x16] sm:$0x1] %v2799
    %2886 = vst [vmem:[#allocation23 + $0x18] sm:$0x1] %v2782
    %2887 = vst [vmem:[#allocation23 + $0x1a] sm:$0x1] %v2796
    %2888 = vst [vmem:[#allocation23 + $0x1c] sm:$0x1] %v2798
    %2889 = vst [vmem:[#allocation23 + $0x1e] sm:$0x1] %v2800
    %2890 = vst [vmem:[#allocation23 + $0x20] sm:$0x1] %v2824
    %2891 = vst [vmem:[#allocation23 + $0x22] sm:$0x1] %v2838
    %2892 = vst [vmem:[#allocation23 + $0x24] sm:$0x1] %v2846
    %2893 = vst [vmem:[#allocation23 + $0x26] sm:$0x1] %v2848
    %2894 = vst [vmem:[#allocation23 + $0x28] sm:$0x1] %v2831
    %2895 = vst [vmem:[#allocation23 + $0x2a] sm:$0x1] %v2845
    %2896 = vst [vmem:[#allocation23 + $0x2c] sm:$0x1] %v2847
    %2897 = vst [vmem:[#allocation23 + $0x2e] sm:$0x1] %v2849
    %v2899 = vcombine.high %v2567, %v2567
    %v2901 = vunpack.c.l.s4 1966171168
    %v2902 = vunpack.c.0.s8 %v2901
    %v2903 = vlaneseq
    %v2904 = vshrl.u32 %v2903, 7
    %v2905 = vsub.s32 %v2902, %v2904
    %v2906 = vrot.slane %v2567, %v2905
    %v2908 = vunpack.c.l.s4 1966171168
    %v2909 = vunpack.c.0.s8 %v2908
    %v2910 = vlaneseq
    %v2911 = vshrl.u32 %v2910, 7
    %v2912 = vsub.s32 %v2909, %v2911
    %v2913 = vrot.slane %v2899, %v2912
    %v2914 = vcombine.high %v2906, %v2906
    %v2915 = vcombine.high %v2913, %v2913
    %v2917 = vunpack.c.l.s4 1966171168
    %v2918 = vunpack.c.0.s8 %v2917
    %v2919 = vlaneseq
    %v2920 = vshrl.u32 %v2919, 7
    %v2921 = vsub.s32 %v2918, %v2920
    %v2922 = vrot.slane %v2906, %v2921
    %v2924 = vunpack.c.l.s4 1966171168
    %v2925 = vunpack.c.0.s8 %v2924
    %v2926 = vlaneseq
    %v2927 = vshrl.u32 %v2926, 7
    %v2928 = vsub.s32 %v2925, %v2927
    %v2929 = vrot.slane %v2913, %v2928
    %v2931 = vunpack.c.l.s4 1966171168
    %v2932 = vunpack.c.0.s8 %v2931
    %v2933 = vlaneseq
    %v2934 = vshrl.u32 %v2933, 7
    %v2935 = vsub.s32 %v2932, %v2934
    %v2936 = vrot.slane %v2914, %v2935
    %v2938 = vunpack.c.l.s4 1966171168
    %v2939 = vunpack.c.0.s8 %v2938
    %v2940 = vlaneseq
    %v2941 = vshrl.u32 %v2940, 7
    %v2942 = vsub.s32 %v2939, %v2941
    %v2943 = vrot.slane %v2915, %v2942
    %v2944 = vcombine.high %v2922, %v2922
    %v2945 = vcombine.high %v2929, %v2929
    %v2946 = vcombine.high %v2936, %v2936
    %v2947 = vcombine.high %v2943, %v2943
    %2956 = vst [vmem:[#allocation24] sm:$0x1] %v2922
    %2957 = vst [vmem:[#allocation24 + $0x2] sm:$0x1] %v2936
    %2958 = vst [vmem:[#allocation24 + $0x4] sm:$0x1] %v2944
    %2959 = vst [vmem:[#allocation24 + $0x6] sm:$0x1] %v2946
    %2960 = vst [vmem:[#allocation24 + $0x8] sm:$0x1] %v2929
    %2961 = vst [vmem:[#allocation24 + $0xa] sm:$0x1] %v2943
    %2962 = vst [vmem:[#allocation24 + $0xc] sm:$0x1] %v2945
    %2963 = vst [vmem:[#allocation24 + $0xe] sm:$0x1] %v2947
    %v2964 = vrot.slane %v315, 1
    %v2965 = vsel %vm380, %v316, %v2964
    %v2966 = vrot.slane %v317, 7
    %v2967 = vsel %vm383, %v2966, %v2965
    %v2968 = vrot.slane %v318, 6
    %v2969 = vsel %vm386, %v2968, %v2967
    %v2970 = vrot.slane %v319, 5
    %v2971 = vsel %vm389, %v2970, %v2969
    %v2972 = vrot.slane %v320, 4
    %v2973 = vsel %vm392, %v2972, %v2971
    %v2974 = vrot.slane %v321, 3
    %v2975 = vsel %vm395, %v2974, %v2973
    %v2976 = vrot.slane %v322, 2
    %v2977 = vsel %vm398, %v2976, %v2975
    %v2978 = vrot.slane %v323, 1
    %v2979 = vsel %vm380, %v324, %v2978
    %v2980 = vrot.slane %v325, 7
    %v2981 = vsel %vm383, %v2980, %v2979
    %v2982 = vrot.slane %v326, 6
    %v2983 = vsel %vm386, %v2982, %v2981
    %v2984 = vrot.slane %v327, 5
    %v2985 = vsel %vm389, %v2984, %v2983
    %v2986 = vrot.slane %v328, 4
    %v2987 = vsel %vm392, %v2986, %v2985
    %v2988 = vrot.slane %v329, 3
    %v2989 = vsel %vm395, %v2988, %v2987
    %v2990 = vrot.slane %v330, 2
    %v2991 = vsel %vm398, %v2990, %v2989
    %v2994 = vrot.slane %v331, 1
    %v2995 = vsel %vm380, %v332, %v2994
    %v2996 = vrot.slane %v333, 7
    %v2997 = vsel %vm383, %v2996, %v2995
    %v2998 = vrot.slane %v334, 6
    %v2999 = vsel %vm386, %v2998, %v2997
    %v3000 = vrot.slane %v335, 5
    %v3001 = vsel %vm389, %v3000, %v2999
    %v3002 = vrot.slane %v336, 4
    %v3003 = vsel %vm392, %v3002, %v3001
    %v3004 = vrot.slane %v337, 3
    %v3005 = vsel %vm395, %v3004, %v3003
    %v3006 = vrot.slane %v338, 2
    %v3007 = vsel %vm398, %v3006, %v3005
    %v3008 = vrot.slane %v339, 1
    %v3009 = vsel %vm380, %v340, %v3008
    %v3010 = vrot.slane %v341, 7
    %v3011 = vsel %vm383, %v3010, %v3009
    %v3012 = vrot.slane %v342, 6
    %v3013 = vsel %vm386, %v3012, %v3011
    %v3014 = vrot.slane %v343, 5
    %v3015 = vsel %vm389, %v3014, %v3013
    %v3016 = vrot.slane %v344, 4
    %v3017 = vsel %vm392, %v3016, %v3015
    %v3018 = vrot.slane %v345, 3
    %v3019 = vsel %vm395, %v3018, %v3017
    %v3020 = vrot.slane %v346, 2
    %v3021 = vsel %vm398, %v3020, %v3019
    %v3022 = vrot.slane %v347, 1
    %v3023 = vsel %vm380, %v348, %v3022
    %v3024 = vrot.slane %v349, 7
    %v3025 = vsel %vm383, %v3024, %v3023
    %v3026 = vrot.slane %v350, 6
    %v3027 = vsel %vm386, %v3026, %v3025
    %v3028 = vrot.slane %v351, 5
    %v3029 = vsel %vm389, %v3028, %v3027
    %v3030 = vrot.slane %v352, 4
    %v3031 = vsel %vm392, %v3030, %v3029
    %v3032 = vrot.slane %v353, 3
    %v3033 = vsel %vm395, %v3032, %v3031
    %v3034 = vrot.slane %v354, 2
    %v3035 = vsel %vm398, %v3034, %v3033
    %v3039 = vrot.slane %v355, 1
    %v3040 = vsel %vm380, %v356, %v3039
    %v3041 = vrot.slane %v357, 7
    %v3042 = vsel %vm383, %v3041, %v3040
    %v3043 = vrot.slane %v358, 6
    %v3044 = vsel %vm386, %v3043, %v3042
    %v3045 = vrot.slane %v359, 5
    %v3046 = vsel %vm389, %v3045, %v3044
    %v3047 = vrot.slane %v360, 4
    %v3048 = vsel %vm392, %v3047, %v3046
    %v3049 = vrot.slane %v361, 3
    %v3050 = vsel %vm395, %v3049, %v3048
    %v3051 = vrot.slane %v362, 2
    %v3052 = vsel %vm398, %v3051, %v3050
    %3054 = vmatprep.subr.mxu0 %v214
    %3055 = vmatpush1.msra.mxu0 %v213
    %3056 = vmatprep.subr.mxu0 %v217
    %3057 = vmatpush1.msra.mxu0 %v216
    %3058 = vmatprep.subr.mxu0 %v220
    %3059 = vmatpush1.msra.mxu0 %v219
    %3060 = vmatprep.subr.mxu0 %v223
    %3061 = vmatpush1.msra.mxu0 %v222
    %3062 = vmatprep.subr.mxu0 %v226
    %3063 = vmatpush1.msra.mxu0 %v225
    %3064 = vmatprep.subr.mxu0 %v229
    %3065 = vmatpush1.msra.mxu0 %v228
    %3066 = vmatprep.subr.mxu0 %v232
    %3067 = vmatpush1.msra.mxu0 %v231
    %3068 = vmatprep.subr.mxu0 %v235
    %3069 = vmatpush1.msra.mxu0 %v234
    %3070 = vmatprep.subr.mxu0 %v238
    %3071 = vmatpush1.msra.mxu0 %v237
    %3072 = vmatprep.subr.mxu0 %v241
    %3073 = vmatpush1.msra.mxu0 %v240
    %3074 = vmatprep.subr.mxu0 %v244
    %3075 = vmatpush1.msra.mxu0 %v243
    %3076 = vmatprep.subr.mxu0 %v247
    %3077 = vmatpush1.msra.mxu0 %v246
    %3078 = vmatprep.subr.mxu0 %v250
    %3079 = vmatpush1.msra.mxu0 %v249
    %3080 = vmatprep.subr.mxu0 %v253
    %3081 = vmatpush1.msra.mxu0 %v252
    %3082 = vmatprep.subr.mxu0 %v256
    %3083 = vmatpush1.msra.mxu0 %v255
    %3084 = vmatprep.subr.mxu0 %v259
    %3085 = vmatpush1.msra.mxu0 %v258
    %3086 = vmatprep.subr.mxu0 0.0
    %3087 = vmatpush1.msra.mxu0 0.0
    %3088 = vmatprep.subr.mxu0 0.0
    %3089 = vmatpush1.msra.mxu0 0.0
    %3090 = vmatprep.subr.mxu0 0.0
    %3091 = vmatpush1.msra.mxu0 0.0
    %3092 = vmatprep.subr.mxu0 0.0
    %3093 = vmatpush1.msra.mxu0 0.0
    %3094 = vmatprep.subr.mxu0 0.0
    %3095 = vmatpush1.msra.mxu0 0.0
    %3096 = vmatprep.subr.mxu0 0.0
    %3097 = vmatpush1.msra.mxu0 0.0
    %3098 = vmatprep.subr.mxu0 0.0
    %3099 = vmatpush1.msra.mxu0 0.0
    %3100 = vmatprep.subr.mxu0 0.0
    %3101 = vmatpush1.msra.mxu0 0.0
    %3102 = vmatprep.subr.mxu0 0.0
    %3103 = vmatpush1.msra.mxu0 0.0
    %3104 = vmatprep.subr.mxu0 0.0
    %3105 = vmatpush1.msra.mxu0 0.0
    %3106 = vmatprep.subr.mxu0 0.0
    %3107 = vmatpush1.msra.mxu0 0.0
    %3108 = vmatprep.subr.mxu0 0.0
    %3109 = vmatpush1.msra.mxu0 0.0
    %3110 = vmatprep.subr.mxu0 0.0
    %3111 = vmatpush1.msra.mxu0 0.0
    %3112 = vmatprep.subr.mxu0 0.0
    %3113 = vmatpush1.msra.mxu0 0.0
    %3114 = vmatprep.subr.mxu0 0.0
    %3115 = vmatpush1.msra.mxu0 0.0
    %3116 = vmatprep.subr.mxu0 0.0
    %3117 = vmatpush1.msra.mxu0 0.0
    %3118 = vmatprep.mubr.f32.mxu0 0.0
    %3119 = vmatmul.mubr.f32.gmra.mrb[0].mxu0 %v2977
    %v3120 = vpop.f32.mrb[0].mxu0
    %v3121 = vadd.f32 %v512, %v3120
    %v3122 = vpop.f32.mrb[0].mxu0
    %v3123 = vadd.f32 %v516, %v3122
    %3124 = vmatprep.mubr.f32.mxu0 0.0
    %3125 = vmatmul.mubr.f32.gmra.mrb[0].mxu0 %v2991
    %v3126 = vpop.f32.mrb[0].mxu0
    %v3127 = vadd.f32 %v512, %v3126
    %v3128 = vpop.f32.mrb[0].mxu0
    %v3129 = vadd.f32 %v516, %v3128
    %3130 = vmatprep.mubr.f32.mxu0 0.0
    %3131 = vmatmul.mubr.f32.gmra.mrb[0].mxu0 %v3007
    %v3132 = vpop.f32.mrb[0].mxu0
    %v3133 = vadd.f32 %v512, %v3132
    %v3134 = vpop.f32.mrb[0].mxu0
    %v3135 = vadd.f32 %v516, %v3134
    %3136 = vmatprep.mubr.f32.mxu0 0.0
    %3137 = vmatmul.mubr.f32.gmra.mrb[0].mxu0 %v3021
    %v3138 = vpop.f32.mrb[0].mxu0
    %v3139 = vadd.f32 %v512, %v3138
    %v3140 = vpop.f32.mrb[0].mxu0
    %v3141 = vadd.f32 %v516, %v3140
    %3142 = vmatprep.mubr.f32.mxu0 0.0
    %3143 = vmatmul.mubr.f32.gmra.mrb[0].mxu0 %v3035
    %v3144 = vpop.f32.mrb[0].mxu0
    %v3145 = vadd.f32 %v512, %v3144
    %v3146 = vpop.f32.mrb[0].mxu0
    %v3147 = vadd.f32 %v516, %v3146
    %3148 = vmatprep.mubr.f32.mxu0 0.0
    %3149 = vmatmul.mubr.f32.gmra.mrb[0].mxu0 %v3052
    %v3150 = vpop.f32.mrb[0].mxu0
    %v3151 = vadd.f32 %v512, %v3150
    %v3152 = vpop.f32.mrb[0].mxu0
    %v3153 = vadd.f32 %v516, %v3152
    %3154 = vdwg.mxu0
    %3155 = vmatprep.subr.mxu0 0.0
    %3156 = vmatpush1.msra.mxu0 %v215
    %3157 = vmatprep.subr.mxu0 0.0
    %3158 = vmatpush1.msra.mxu0 %v218
    %3159 = vmatprep.subr.mxu0 0.0
    %3160 = vmatpush1.msra.mxu0 %v221
    %3161 = vmatprep.subr.mxu0 0.0
    %3162 = vmatpush1.msra.mxu0 %v224
    %3163 = vmatprep.subr.mxu0 0.0
    %3164 = vmatpush1.msra.mxu0 %v227
    %3165 = vmatprep.subr.mxu0 0.0
    %3166 = vmatpush1.msra.mxu0 %v230
    %3167 = vmatprep.subr.mxu0 0.0
    %3168 = vmatpush1.msra.mxu0 %v233
    %3169 = vmatprep.subr.mxu0 0.0
    %3170 = vmatpush1.msra.mxu0 %v236
    %3171 = vmatprep.subr.mxu0 0.0
    %3172 = vmatpush1.msra.mxu0 %v239
    %3173 = vmatprep.subr.mxu0 0.0
    %3174 = vmatpush1.msra.mxu0 %v242
    %3175 = vmatprep.subr.mxu0 0.0
    %3176 = vmatpush1.msra.mxu0 %v245
    %3177 = vmatprep.subr.mxu0 0.0
    %3178 = vmatpush1.msra.mxu0 %v248
    %3179 = vmatprep.subr.mxu0 0.0
    %3180 = vmatpush1.msra.mxu0 %v251
    %3181 = vmatprep.subr.mxu0 0.0
    %3182 = vmatpush1.msra.mxu0 %v254
    %3183 = vmatprep.subr.mxu0 0.0
    %3184 = vmatpush1.msra.mxu0 %v257
    %3185 = vmatprep.subr.mxu0 0.0
    %3186 = vmatpush1.msra.mxu0 %v260
    %3187 = vmatprep.subr.mxu0 0.0
    %3188 = vmatpush1.msra.mxu0 0.0
    %3189 = vmatprep.subr.mxu0 0.0
    %3190 = vmatpush1.msra.mxu0 0.0
    %3191 = vmatprep.subr.mxu0 0.0
    %3192 = vmatpush1.msra.mxu0 0.0
    %3193 = vmatprep.subr.mxu0 0.0
    %3194 = vmatpush1.msra.mxu0 0.0
    %3195 = vmatprep.subr.mxu0 0.0
    %3196 = vmatpush1.msra.mxu0 0.0
    %3197 = vmatprep.subr.mxu0 0.0
    %3198 = vmatpush1.msra.mxu0 0.0
    %3199 = vmatprep.subr.mxu0 0.0
    %3200 = vmatpush1.msra.mxu0 0.0
    %3201 = vmatprep.subr.mxu0 0.0
    %3202 = vmatpush1.msra.mxu0 0.0
    %3203 = vmatprep.subr.mxu0 0.0
    %3204 = vmatpush1.msra.mxu0 0.0
    %3205 = vmatprep.subr.mxu0 0.0
    %3206 = vmatpush1.msra.mxu0 0.0
    %3207 = vmatprep.subr.mxu0 0.0
    %3208 = vmatpush1.msra.mxu0 0.0
    %3209 = vmatprep.subr.mxu0 0.0
    %3210 = vmatpush1.msra.mxu0 0.0
    %3211 = vmatprep.subr.mxu0 0.0
    %3212 = vmatpush1.msra.mxu0 0.0
    %3213 = vmatprep.subr.mxu0 0.0
    %3214 = vmatpush1.msra.mxu0 0.0
    %3215 = vmatprep.subr.mxu0 0.0
    %3216 = vmatpush1.msra.mxu0 0.0
    %3217 = vmatprep.subr.mxu0 0.0
    %3218 = vmatpush1.msra.mxu0 0.0
    %3219 = vmatprep.mubr.f32.mxu0 0.0
    %3220 = vmatmul.mubr.f32.gmra.mrb[0].mxu0 %v2977
    %v3221 = vpop.f32.mrb[0].mxu0
    %v3222 = vadd.f32 %v520, %v3221
    %v3223 = vpop.f32.mrb[0].mxu0
    %3224 = vmatprep.mubr.f32.mxu0 0.0
    %3225 = vmatmul.mubr.f32.gmra.mrb[0].mxu0 %v2991
    %v3226 = vpop.f32.mrb[0].mxu0
    %v3227 = vadd.f32 %v520, %v3226
    %v3228 = vpop.f32.mrb[0].mxu0
    %3229 = vmatprep.mubr.f32.mxu0 0.0
    %3230 = vmatmul.mubr.f32.gmra.mrb[0].mxu0 %v3007
    %v3231 = vpop.f32.mrb[0].mxu0
    %v3232 = vadd.f32 %v520, %v3231
    %v3233 = vpop.f32.mrb[0].mxu0
    %3234 = vmatprep.mubr.f32.mxu0 0.0
    %3235 = vmatmul.mubr.f32.gmra.mrb[0].mxu0 %v3021
    %v3236 = vpop.f32.mrb[0].mxu0
    %v3237 = vadd.f32 %v520, %v3236
    %v3238 = vpop.f32.mrb[0].mxu0
    %3239 = vmatprep.mubr.f32.mxu0 0.0
    %3240 = vmatmul.mubr.f32.gmra.mrb[0].mxu0 %v3035
    %v3241 = vpop.f32.mrb[0].mxu0
    %v3242 = vadd.f32 %v520, %v3241
    %v3243 = vpop.f32.mrb[0].mxu0
    %3244 = vmatprep.mubr.f32.mxu0 0.0
    %3245 = vmatmul.mubr.f32.gmra.mrb[0].mxu0 %v3052
    %v3246 = vpop.f32.mrb[0].mxu0
    %v3247 = vadd.f32 %v520, %v3246
    %v3248 = vpop.f32.mrb[0].mxu0
    %3249 = vdwg.mxu0
    %v3250 = vmul.f32 %v3121, 0.17677669
    %v3251 = vmul.f32 %v3127, 0.17677669
    %v3252 = vmul.f32 %v3133, 0.17677669
    %v3253 = vmul.f32 %v3139, 0.17677669
    %v3254 = vmul.f32 %v3145, 0.17677669
    %v3255 = vmul.f32 %v3151, 0.17677669
    %v3257 = vsel %vm726, %v3250, 0
    %v3260 = vsel %vm726, %v3251, 0
    %v3263 = vsel %vm726, %v3252, 0
    %v3266 = vsel %vm726, %v3253, 0
    %v3269 = vsel %vm726, %v3254, 0
    %v3272 = vsel %vm726, %v3255, 0
    %v3275 = vsel %vm726, %v3123, 0
    %v3278 = vsel %vm726, %v3129, 0
    %v3281 = vsel %vm726, %v3135, 0
    %v3284 = vsel %vm726, %v3141, 0
    %v3287 = vsel %vm726, %v3147, 0
    %v3290 = vsel %vm726, %v3153, 0
    %3292 = vmatprep.subr.mxu0 0.0
    %3293 = vmatpush1.xpose.msra.mxu0 %v3275
    %3294 = vmatprep.subr.mxu0 0.0
    %3295 = vmatpush1.xpose.msra.mxu0 %v3278
    %3296 = vmatprep.subr.mxu0 0.0
    %3297 = vmatpush1.xpose.msra.mxu0 %v3281
    %3298 = vmatprep.subr.mxu0 0.0
    %3299 = vmatpush1.xpose.msra.mxu0 %v3284
    %3300 = vmatprep.subr.mxu0 0.0
    %3301 = vmatpush1.xpose.msra.mxu0 %v3287
    %3302 = vmatprep.subr.mxu0 0.0
    %3303 = vmatpush1.xpose.msra.mxu0 %v3290
    %3304 = vmatprep.subr.mxu0 0.0
    %3305 = vmatpush1.xpose.msra.mxu0 0.0
    %3306 = vmatprep.subr.mxu0 0.0
    %3307 = vmatpush1.xpose.msra.mxu0 0.0
    %3308 = vmatprep.subr.mxu0 0.0
    %3309 = vmatpush1.xpose.msra.mxu0 0.0
    %3310 = vmatprep.subr.mxu0 0.0
    %3311 = vmatpush1.xpose.msra.mxu0 0.0
    %3312 = vmatprep.subr.mxu0 0.0
    %3313 = vmatpush1.xpose.msra.mxu0 0.0
    %3314 = vmatprep.subr.mxu0 0.0
    %3315 = vmatpush1.xpose.msra.mxu0 0.0
    %3316 = vmatprep.subr.mxu0 0.0
    %3317 = vmatpush1.xpose.msra.mxu0 0.0
    %3318 = vmatprep.subr.mxu0 0.0
    %3319 = vmatpush1.xpose.msra.mxu0 0.0
    %3320 = vmatprep.subr.mxu0 0.0
    %3321 = vmatpush1.xpose.msra.mxu0 0.0
    %3322 = vmatprep.subr.mxu0 0.0
    %3323 = vmatpush1.xpose.msra.mxu0 0.0
    %3324 = vmatprep.subr.mxu0 0.0
    %3325 = vmatpush1.xpose.msra.mxu0 0.0
    %3326 = vmatprep.subr.mxu0 0.0
    %3327 = vmatpush1.xpose.msra.mxu0 0.0
    %3328 = vmatprep.subr.mxu0 0.0
    %3329 = vmatpush1.xpose.msra.mxu0 0.0
    %3330 = vmatprep.subr.mxu0 0.0
    %3331 = vmatpush1.xpose.msra.mxu0 0.0
    %3332 = vmatprep.subr.mxu0 0.0
    %3333 = vmatpush1.xpose.msra.mxu0 0.0
    %3334 = vmatprep.subr.mxu0 0.0
    %3335 = vmatpush1.xpose.msra.mxu0 0.0
    %3336 = vmatprep.subr.mxu0 0.0
    %3337 = vmatpush1.xpose.msra.mxu0 0.0
    %3338 = vmatprep.subr.mxu0 0.0
    %3339 = vmatpush1.xpose.msra.mxu0 0.0
    %3340 = vmatprep.subr.mxu0 0.0
    %3341 = vmatpush1.xpose.msra.mxu0 0.0
    %3342 = vmatprep.subr.mxu0 0.0
    %3343 = vmatpush1.xpose.msra.mxu0 0.0
    %3344 = vmatprep.subr.mxu0 0.0
    %3345 = vmatpush1.xpose.msra.mxu0 0.0
    %3346 = vmatprep.subr.mxu0 0.0
    %3347 = vmatpush1.xpose.msra.mxu0 0.0
    %3348 = vmatprep.subr.mxu0 0.0
    %3349 = vmatpush1.xpose.msra.mxu0 0.0
    %3350 = vmatprep.subr.mxu0 0.0
    %3351 = vmatpush1.xpose.msra.mxu0 0.0
    %3352 = vmatprep.subr.mxu0 0.0
    %3353 = vmatpush1.xpose.msra.mxu0 0.0
    %3354 = vmatprep.subr.mxu0 0.0
    %3355 = vmatpush1.xpose.msra.mxu0 0.0
    %3356 = vmatprep.mubr.f32.mxu0 0.0
    %3357 = vmatmul.mubr.f32.gmra.mrb[0].mxu0 %v3257
    %v3358 = vpop.f32.mrb[0].mxu0
    %v3359 = vadd.f32 0.0, %v3358
    %v3360 = vpop.f32.mrb[0].mxu0
    %3361 = vmatprep.mubr.f32.mxu0 0.0
    %3362 = vmatmul.mubr.f32.gmra.mrb[0].mxu0 %v3260
    %v3363 = vpop.f32.mrb[0].mxu0
    %v3364 = vadd.f32 0.0, %v3363
    %v3365 = vpop.f32.mrb[0].mxu0
    %3366 = vmatprep.mubr.f32.mxu0 0.0
    %3367 = vmatmul.mubr.f32.gmra.mrb[0].mxu0 %v3263
    %v3368 = vpop.f32.mrb[0].mxu0
    %v3369 = vadd.f32 0.0, %v3368
    %v3370 = vpop.f32.mrb[0].mxu0
    %3371 = vmatprep.mubr.f32.mxu0 0.0
    %3372 = vmatmul.mubr.f32.gmra.mrb[0].mxu0 %v3266
    %v3373 = vpop.f32.mrb[0].mxu0
    %v3374 = vadd.f32 0.0, %v3373
    %v3375 = vpop.f32.mrb[0].mxu0
    %3376 = vmatprep.mubr.f32.mxu0 0.0
    %3377 = vmatmul.mubr.f32.gmra.mrb[0].mxu0 %v3269
    %v3378 = vpop.f32.mrb[0].mxu0
    %v3379 = vadd.f32 0.0, %v3378
    %v3380 = vpop.f32.mrb[0].mxu0
    %3381 = vmatprep.mubr.f32.mxu0 0.0
    %3382 = vmatmul.mubr.f32.gmra.mrb[0].mxu0 %v3272
    %v3383 = vpop.f32.mrb[0].mxu0
    %v3384 = vadd.f32 0.0, %v3383
    %v3385 = vpop.f32.mrb[0].mxu0
    %3386 = vdwg.mxu0
    %v3387 = vsel %vm858, %v3359, -inf
    %3388 = vmax.xlane.f32.xlu0 %v3387
    %v3389 = vpop.xlane.xlu0 %3388
    %v3390 = vsel %vm858, %v3364, -inf
    %3391 = vmax.xlane.f32.xlu0 %v3390
    %v3392 = vpop.xlane.xlu0 %3391
    %v3393 = vsel %vm858, %v3369, -inf
    %3394 = vmax.xlane.f32.xlu0 %v3393
    %v3395 = vpop.xlane.xlu0 %3394
    %v3396 = vsel %vm858, %v3374, -inf
    %3397 = vmax.xlane.f32.xlu0 %v3396
    %v3398 = vpop.xlane.xlu0 %3397
    %v3399 = vsel %vm858, %v3379, -inf
    %3400 = vmax.xlane.f32.xlu0 %v3399
    %v3401 = vpop.xlane.xlu0 %3400
    %v3402 = vsel %vm858, %v3384, -inf
    %3403 = vmax.xlane.f32.xlu0 %v3402
    %v3404 = vpop.xlane.xlu0 %3403
    %v3405 = vsub.f32 %v3359, %v3389
    %v3406 = vsub.f32 %v3364, %v3392
    %v3407 = vsub.f32 %v3369, %v3395
    %v3408 = vsub.f32 %v3374, %v3398
    %v3409 = vsub.f32 %v3379, %v3401
    %v3410 = vsub.f32 %v3384, %v3404
    %v3411 = vmul.f32 %v3405, 1.442695
    %v3412 = vpow.pop %v3411
    %v3413 = vmul.f32 %v3406, 1.442695
    %v3414 = vpow.pop %v3413
    %v3415 = vmul.f32 %v3407, 1.442695
    %v3416 = vpow.pop %v3415
    %v3417 = vmul.f32 %v3408, 1.442695
    %v3418 = vpow.pop %v3417
    %v3419 = vmul.f32 %v3409, 1.442695
    %v3420 = vpow.pop %v3419
    %v3421 = vmul.f32 %v3410, 1.442695
    %v3422 = vpow.pop %v3421
    %v3423 = vsel %vm858, %v3412, 0.0
    %3424 = vadd.xlane.f32.xlu0 %v3423
    %v3425 = vpop.xlane.xlu0 %3424
    %v3426 = vsel %vm858, %v3414, 0.0
    %3427 = vadd.xlane.f32.xlu0 %v3426
    %v3428 = vpop.xlane.xlu0 %3427
    %v3429 = vsel %vm858, %v3416, 0.0
    %3430 = vadd.xlane.f32.xlu0 %v3429
    %v3431 = vpop.xlane.xlu0 %3430
    %v3432 = vsel %vm858, %v3418, 0.0
    %3433 = vadd.xlane.f32.xlu0 %v3432
    %v3434 = vpop.xlane.xlu0 %3433
    %v3435 = vsel %vm858, %v3420, 0.0
    %3436 = vadd.xlane.f32.xlu0 %v3435
    %v3437 = vpop.xlane.xlu0 %3436
    %v3438 = vsel %vm858, %v3422, 0.0
    %3439 = vadd.xlane.f32.xlu0 %v3438
    %v3440 = vpop.xlane.xlu0 %3439
    %v3441 = vrcp.pop %v3425
    %v3442 = vrcp.pop %v3428
    %v3443 = vrcp.pop %v3431
    %v3444 = vrcp.pop %v3434
    %v3445 = vrcp.pop %v3437
    %v3446 = vrcp.pop %v3440
    %v3447 = vmul.f32 %v3412, %v3441
    %v3448 = vmul.f32 %v3414, %v3442
    %v3449 = vmul.f32 %v3416, %v3443
    %v3450 = vmul.f32 %v3418, %v3444
    %v3451 = vmul.f32 %v3420, %v3445
    %v3452 = vmul.f32 %v3422, %v3446
    %v3454 = vsel %vm858, %v3447, 0
    %v3457 = vsel %vm858, %v3448, 0
    %v3460 = vsel %vm858, %v3449, 0
    %v3463 = vsel %vm858, %v3450, 0
    %v3466 = vsel %vm858, %v3451, 0
    %v3469 = vsel %vm858, %v3452, 0
    %3471 = vmatprep.subr.mxu0 0.0
    %3472 = vmatpush1.msra.mxu0 %v3222
    %3473 = vmatprep.subr.mxu0 0.0
    %3474 = vmatpush1.msra.mxu0 %v3227
    %3475 = vmatprep.subr.mxu0 0.0
    %3476 = vmatpush1.msra.mxu0 %v3232
    %3477 = vmatprep.subr.mxu0 0.0
    %3478 = vmatpush1.msra.mxu0 %v3237
    %3479 = vmatprep.subr.mxu0 0.0
    %3480 = vmatpush1.msra.mxu0 %v3242
    %3481 = vmatprep.subr.mxu0 0.0
    %3482 = vmatpush1.msra.mxu0 %v3247
    %3483 = vmatprep.subr.mxu0 0.0
    %3484 = vmatpush1.msra.mxu0 0.0
    %3485 = vmatprep.subr.mxu0 0.0
    %3486 = vmatpush1.msra.mxu0 0.0
    %3487 = vmatprep.subr.mxu0 0.0
    %3488 = vmatpush1.msra.mxu0 0.0
    %3489 = vmatprep.subr.mxu0 0.0
    %3490 = vmatpush1.msra.mxu0 0.0
    %3491 = vmatprep.subr.mxu0 0.0
    %3492 = vmatpush1.msra.mxu0 0.0
    %3493 = vmatprep.subr.mxu0 0.0
    %3494 = vmatpush1.msra.mxu0 0.0
    %3495 = vmatprep.subr.mxu0 0.0
    %3496 = vmatpush1.msra.mxu0 0.0
    %3497 = vmatprep.subr.mxu0 0.0
    %3498 = vmatpush1.msra.mxu0 0.0
    %3499 = vmatprep.subr.mxu0 0.0
    %3500 = vmatpush1.msra.mxu0 0.0
    %3501 = vmatprep.subr.mxu0 0.0
    %3502 = vmatpush1.msra.mxu0 0.0
    %3503 = vmatprep.subr.mxu0 0.0
    %3504 = vmatpush1.msra.mxu0 0.0
    %3505 = vmatprep.subr.mxu0 0.0
    %3506 = vmatpush1.msra.mxu0 0.0
    %3507 = vmatprep.subr.mxu0 0.0
    %3508 = vmatpush1.msra.mxu0 0.0
    %3509 = vmatprep.subr.mxu0 0.0
    %3510 = vmatpush1.msra.mxu0 0.0
    %3511 = vmatprep.subr.mxu0 0.0
    %3512 = vmatpush1.msra.mxu0 0.0
    %3513 = vmatprep.subr.mxu0 0.0
    %3514 = vmatpush1.msra.mxu0 0.0
    %3515 = vmatprep.subr.mxu0 0.0
    %3516 = vmatpush1.msra.mxu0 0.0
    %3517 = vmatprep.subr.mxu0 0.0
    %3518 = vmatpush1.msra.mxu0 0.0
    %3519 = vmatprep.subr.mxu0 0.0
    %3520 = vmatpush1.msra.mxu0 0.0
    %3521 = vmatprep.subr.mxu0 0.0
    %3522 = vmatpush1.msra.mxu0 0.0
    %3523 = vmatprep.subr.mxu0 0.0
    %3524 = vmatpush1.msra.mxu0 0.0
    %3525 = vmatprep.subr.mxu0 0.0
    %3526 = vmatpush1.msra.mxu0 0.0
    %3527 = vmatprep.subr.mxu0 0.0
    %3528 = vmatpush1.msra.mxu0 0.0
    %3529 = vmatprep.subr.mxu0 0.0
    %3530 = vmatpush1.msra.mxu0 0.0
    %3531 = vmatprep.subr.mxu0 0.0
    %3532 = vmatpush1.msra.mxu0 0.0
    %3533 = vmatprep.subr.mxu0 0.0
    %3534 = vmatpush1.msra.mxu0 0.0
    %3535 = vmatprep.mubr.f32.mxu0 0.0
    %3536 = vmatmul.mubr.f32.gmra.mrb[0].mxu0 %v3454
    %v3537 = vpop.f32.mrb[0].mxu0
    %v3538 = vadd.f32 0.0, %v3537
    %v3539 = vpop.f32.mrb[0].mxu0
    %3540 = vmatprep.mubr.f32.mxu0 0.0
    %3541 = vmatmul.mubr.f32.gmra.mrb[0].mxu0 %v3457
    %v3542 = vpop.f32.mrb[0].mxu0
    %v3543 = vadd.f32 0.0, %v3542
    %v3544 = vpop.f32.mrb[0].mxu0
    %3545 = vmatprep.mubr.f32.mxu0 0.0
    %3546 = vmatmul.mubr.f32.gmra.mrb[0].mxu0 %v3460
    %v3547 = vpop.f32.mrb[0].mxu0
    %v3548 = vadd.f32 0.0, %v3547
    %v3549 = vpop.f32.mrb[0].mxu0
    %3550 = vmatprep.mubr.f32.mxu0 0.0
    %3551 = vmatmul.mubr.f32.gmra.mrb[0].mxu0 %v3463
    %v3552 = vpop.f32.mrb[0].mxu0
    %v3553 = vadd.f32 0.0, %v3552
    %v3554 = vpop.f32.mrb[0].mxu0
    %3555 = vmatprep.mubr.f32.mxu0 0.0
    %3556 = vmatmul.mubr.f32.gmra.mrb[0].mxu0 %v3466
    %v3557 = vpop.f32.mrb[0].mxu0
    %v3558 = vadd.f32 0.0, %v3557
    %v3559 = vpop.f32.mrb[0].mxu0
    %3560 = vmatprep.mubr.f32.mxu0 0.0
    %3561 = vmatmul.mubr.f32.gmra.mrb[0].mxu0 %v3469
    %v3562 = vpop.f32.mrb[0].mxu0
    %v3563 = vadd.f32 0.0, %v3562
    %v3564 = vpop.f32.mrb[0].mxu0
    %3565 = vdwg.mxu0
    %3566 = vrot.lane.b32.xlu0 %v3250, 96
    %v3567 = vpop.permute.xlu0 %3566
    %3568 = vrot.lane.b32.xlu0 %v3251, 96
    %v3569 = vpop.permute.xlu0 %3568
    %3570 = vrot.lane.b32.xlu0 %v3252, 96
    %v3571 = vpop.permute.xlu0 %3570
    %3572 = vrot.lane.b32.xlu0 %v3253, 96
    %v3573 = vpop.permute.xlu0 %3572
    %3574 = vrot.lane.b32.xlu0 %v3254, 96
    %v3575 = vpop.permute.xlu0 %3574
    %3576 = vrot.lane.b32.xlu0 %v3255, 96
    %v3577 = vpop.permute.xlu0 %3576
    %3578 = vrot.lane.b32.xlu0 %v3123, 96
    %v3579 = vpop.permute.xlu0 %3578
    %3580 = vrot.lane.b32.xlu0 %v3129, 96
    %v3581 = vpop.permute.xlu0 %3580
    %3582 = vrot.lane.b32.xlu0 %v3135, 96
    %v3583 = vpop.permute.xlu0 %3582
    %3584 = vrot.lane.b32.xlu0 %v3141, 96
    %v3585 = vpop.permute.xlu0 %3584
    %3586 = vrot.lane.b32.xlu0 %v3147, 96
    %v3587 = vpop.permute.xlu0 %3586
    %3588 = vrot.lane.b32.xlu0 %v3153, 96
    %v3589 = vpop.permute.xlu0 %3588
    %v3590 = vsel %vm726, %v3567, 0
    %v3592 = vsel %vm726, %v3569, 0
    %v3594 = vsel %vm726, %v3571, 0
    %v3596 = vsel %vm726, %v3573, 0
    %v3598 = vsel %vm726, %v3575, 0
    %v3600 = vsel %vm726, %v3577, 0
    %v3602 = vsel %vm726, %v3579, 0
    %v3604 = vsel %vm726, %v3581, 0
    %v3606 = vsel %vm726, %v3583, 0
    %v3608 = vsel %vm726, %v3585, 0
    %v3610 = vsel %vm726, %v3587, 0
    %v3612 = vsel %vm726, %v3589, 0
    %3614 = vmatprep.subr.mxu0 0.0
    %3615 = vmatpush1.xpose.msra.mxu0 %v3602
    %3616 = vmatprep.subr.mxu0 0.0
    %3617 = vmatpush1.xpose.msra.mxu0 %v3604
    %3618 = vmatprep.subr.mxu0 0.0
    %3619 = vmatpush1.xpose.msra.mxu0 %v3606
    %3620 = vmatprep.subr.mxu0 0.0
    %3621 = vmatpush1.xpose.msra.mxu0 %v3608
    %3622 = vmatprep.subr.mxu0 0.0
    %3623 = vmatpush1.xpose.msra.mxu0 %v3610
    %3624 = vmatprep.subr.mxu0 0.0
    %3625 = vmatpush1.xpose.msra.mxu0 %v3612
    %3626 = vmatprep.subr.mxu0 0.0
    %3627 = vmatpush1.xpose.msra.mxu0 0.0
    %3628 = vmatprep.subr.mxu0 0.0
    %3629 = vmatpush1.xpose.msra.mxu0 0.0
    %3630 = vmatprep.subr.mxu0 0.0
    %3631 = vmatpush1.xpose.msra.mxu0 0.0
    %3632 = vmatprep.subr.mxu0 0.0
    %3633 = vmatpush1.xpose.msra.mxu0 0.0
    %3634 = vmatprep.subr.mxu0 0.0
    %3635 = vmatpush1.xpose.msra.mxu0 0.0
    %3636 = vmatprep.subr.mxu0 0.0
    %3637 = vmatpush1.xpose.msra.mxu0 0.0
    %3638 = vmatprep.subr.mxu0 0.0
    %3639 = vmatpush1.xpose.msra.mxu0 0.0
    %3640 = vmatprep.subr.mxu0 0.0
    %3641 = vmatpush1.xpose.msra.mxu0 0.0
    %3642 = vmatprep.subr.mxu0 0.0
    %3643 = vmatpush1.xpose.msra.mxu0 0.0
    %3644 = vmatprep.subr.mxu0 0.0
    %3645 = vmatpush1.xpose.msra.mxu0 0.0
    %3646 = vmatprep.subr.mxu0 0.0
    %3647 = vmatpush1.xpose.msra.mxu0 0.0
    %3648 = vmatprep.subr.mxu0 0.0
    %3649 = vmatpush1.xpose.msra.mxu0 0.0
    %3650 = vmatprep.subr.mxu0 0.0
    %3651 = vmatpush1.xpose.msra.mxu0 0.0
    %3652 = vmatprep.subr.mxu0 0.0
    %3653 = vmatpush1.xpose.msra.mxu0 0.0
    %3654 = vmatprep.subr.mxu0 0.0
    %3655 = vmatpush1.xpose.msra.mxu0 0.0
    %3656 = vmatprep.subr.mxu0 0.0
    %3657 = vmatpush1.xpose.msra.mxu0 0.0
    %3658 = vmatprep.subr.mxu0 0.0
    %3659 = vmatpush1.xpose.msra.mxu0 0.0
    %3660 = vmatprep.subr.mxu0 0.0
    %3661 = vmatpush1.xpose.msra.mxu0 0.0
    %3662 = vmatprep.subr.mxu0 0.0
    %3663 = vmatpush1.xpose.msra.mxu0 0.0
    %3664 = vmatprep.subr.mxu0 0.0
    %3665 = vmatpush1.xpose.msra.mxu0 0.0
    %3666 = vmatprep.subr.mxu0 0.0
    %3667 = vmatpush1.xpose.msra.mxu0 0.0
    %3668 = vmatprep.subr.mxu0 0.0
    %3669 = vmatpush1.xpose.msra.mxu0 0.0
    %3670 = vmatprep.subr.mxu0 0.0
    %3671 = vmatpush1.xpose.msra.mxu0 0.0
    %3672 = vmatprep.subr.mxu0 0.0
    %3673 = vmatpush1.xpose.msra.mxu0 0.0
    %3674 = vmatprep.subr.mxu0 0.0
    %3675 = vmatpush1.xpose.msra.mxu0 0.0
    %3676 = vmatprep.subr.mxu0 0.0
    %3677 = vmatpush1.xpose.msra.mxu0 0.0
    %3678 = vmatprep.mubr.f32.mxu0 0.0
    %3679 = vmatmul.mubr.f32.gmra.mrb[0].mxu0 %v3590
    %v3680 = vpop.f32.mrb[0].mxu0
    %v3681 = vadd.f32 0.0, %v3680
    %v3682 = vpop.f32.mrb[0].mxu0
    %3683 = vmatprep.mubr.f32.mxu0 0.0
    %3684 = vmatmul.mubr.f32.gmra.mrb[0].mxu0 %v3592
    %v3685 = vpop.f32.mrb[0].mxu0
    %v3686 = vadd.f32 0.0, %v3685
    %v3687 = vpop.f32.mrb[0].mxu0
    %3688 = vmatprep.mubr.f32.mxu0 0.0
    %3689 = vmatmul.mubr.f32.gmra.mrb[0].mxu0 %v3594
    %v3690 = vpop.f32.mrb[0].mxu0
    %v3691 = vadd.f32 0.0, %v3690
    %v3692 = vpop.f32.mrb[0].mxu0
    %3693 = vmatprep.mubr.f32.mxu0 0.0
    %3694 = vmatmul.mubr.f32.gmra.mrb[0].mxu0 %v3596
    %v3695 = vpop.f32.mrb[0].mxu0
    %v3696 = vadd.f32 0.0, %v3695
    %v3697 = vpop.f32.mrb[0].mxu0
    %3698 = vmatprep.mubr.f32.mxu0 0.0
    %3699 = vmatmul.mubr.f32.gmra.mrb[0].mxu0 %v3598
    %v3700 = vpop.f32.mrb[0].mxu0
    %v3701 = vadd.f32 0.0, %v3700
    %v3702 = vpop.f32.mrb[0].mxu0
    %3703 = vmatprep.mubr.f32.mxu0 0.0
    %3704 = vmatmul.mubr.f32.gmra.mrb[0].mxu0 %v3600
    %v3705 = vpop.f32.mrb[0].mxu0
    %v3706 = vadd.f32 0.0, %v3705
    %v3707 = vpop.f32.mrb[0].mxu0
    %3708 = vdwg.mxu0
    %v3709 = vsel %vm858, %v3681, -inf
    %3710 = vmax.xlane.f32.xlu0 %v3709
    %v3711 = vpop.xlane.xlu0 %3710
    %v3712 = vsel %vm858, %v3686, -inf
    %3713 = vmax.xlane.f32.xlu0 %v3712
    %v3714 = vpop.xlane.xlu0 %3713
    %v3715 = vsel %vm858, %v3691, -inf
    %3716 = vmax.xlane.f32.xlu0 %v3715
    %v3717 = vpop.xlane.xlu0 %3716
    %v3718 = vsel %vm858, %v3696, -inf
    %3719 = vmax.xlane.f32.xlu0 %v3718
    %v3720 = vpop.xlane.xlu0 %3719
    %v3721 = vsel %vm858, %v3701, -inf
    %3722 = vmax.xlane.f32.xlu0 %v3721
    %v3723 = vpop.xlane.xlu0 %3722
    %v3724 = vsel %vm858, %v3706, -inf
    %3725 = vmax.xlane.f32.xlu0 %v3724
    %v3726 = vpop.xlane.xlu0 %3725
    %v3727 = vsub.f32 %v3681, %v3711
    %v3728 = vsub.f32 %v3686, %v3714
    %v3729 = vsub.f32 %v3691, %v3717
    %v3730 = vsub.f32 %v3696, %v3720
    %v3731 = vsub.f32 %v3701, %v3723
    %v3732 = vsub.f32 %v3706, %v3726
    %v3733 = vmul.f32 %v3727, 1.442695
    %v3734 = vpow.pop %v3733
    %v3735 = vmul.f32 %v3728, 1.442695
    %v3736 = vpow.pop %v3735
    %v3737 = vmul.f32 %v3729, 1.442695
    %v3738 = vpow.pop %v3737
    %v3739 = vmul.f32 %v3730, 1.442695
    %v3740 = vpow.pop %v3739
    %v3741 = vmul.f32 %v3731, 1.442695
    %v3742 = vpow.pop %v3741
    %v3743 = vmul.f32 %v3732, 1.442695
    %v3744 = vpow.pop %v3743
    %v3745 = vsel %vm858, %v3734, 0.0
    %3746 = vadd.xlane.f32.xlu0 %v3745
    %v3747 = vpop.xlane.xlu0 %3746
    %v3748 = vsel %vm858, %v3736, 0.0
    %3749 = vadd.xlane.f32.xlu0 %v3748
    %v3750 = vpop.xlane.xlu0 %3749
    %v3751 = vsel %vm858, %v3738, 0.0
    %3752 = vadd.xlane.f32.xlu0 %v3751
    %v3753 = vpop.xlane.xlu0 %3752
    %v3754 = vsel %vm858, %v3740, 0.0
    %3755 = vadd.xlane.f32.xlu0 %v3754
    %v3756 = vpop.xlane.xlu0 %3755
    %v3757 = vsel %vm858, %v3742, 0.0
    %3758 = vadd.xlane.f32.xlu0 %v3757
    %v3759 = vpop.xlane.xlu0 %3758
    %v3760 = vsel %vm858, %v3744, 0.0
    %3761 = vadd.xlane.f32.xlu0 %v3760
    %v3762 = vpop.xlane.xlu0 %3761
    %v3763 = vrcp.pop %v3747
    %v3764 = vrcp.pop %v3750
    %v3765 = vrcp.pop %v3753
    %v3766 = vrcp.pop %v3756
    %v3767 = vrcp.pop %v3759
    %v3768 = vrcp.pop %v3762
    %v3769 = vmul.f32 %v3734, %v3763
    %v3770 = vmul.f32 %v3736, %v3764
    %v3771 = vmul.f32 %v3738, %v3765
    %v3772 = vmul.f32 %v3740, %v3766
    %v3773 = vmul.f32 %v3742, %v3767
    %v3774 = vmul.f32 %v3744, %v3768
    %3781 = vrot.lane.b32.xlu0 %v3222, 96
    %v3782 = vpop.permute.xlu0 %3781
    %3783 = vrot.lane.b32.xlu0 %v3227, 96
    %v3784 = vpop.permute.xlu0 %3783
    %3785 = vrot.lane.b32.xlu0 %v3232, 96
    %v3786 = vpop.permute.xlu0 %3785
    %3787 = vrot.lane.b32.xlu0 %v3237, 96
    %v3788 = vpop.permute.xlu0 %3787
    %3789 = vrot.lane.b32.xlu0 %v3242, 96
    %v3790 = vpop.permute.xlu0 %3789
    %3791 = vrot.lane.b32.xlu0 %v3247, 96
    %v3792 = vpop.permute.xlu0 %3791
    %v3800 = vsel %vm858, %v3769, 0
    %v3803 = vsel %vm858, %v3770, 0
    %v3806 = vsel %vm858, %v3771, 0
    %v3809 = vsel %vm858, %v3772, 0
    %v3812 = vsel %vm858, %v3773, 0
    %v3815 = vsel %vm858, %v3774, 0
    %3817 = vmatprep.subr.mxu0 0.0
    %3818 = vmatpush1.msra.mxu0 %v3782
    %3819 = vmatprep.subr.mxu0 0.0
    %3820 = vmatpush1.msra.mxu0 %v3784
    %3821 = vmatprep.subr.mxu0 0.0
    %3822 = vmatpush1.msra.mxu0 %v3786
    %3823 = vmatprep.subr.mxu0 0.0
    %3824 = vmatpush1.msra.mxu0 %v3788
    %3825 = vmatprep.subr.mxu0 0.0
    %3826 = vmatpush1.msra.mxu0 %v3790
    %3827 = vmatprep.subr.mxu0 0.0
    %3828 = vmatpush1.msra.mxu0 %v3792
    %3829 = vmatprep.subr.mxu0 0.0
    %3830 = vmatpush1.msra.mxu0 0.0
    %3831 = vmatprep.subr.mxu0 0.0
    %3832 = vmatpush1.msra.mxu0 0.0
    %3833 = vmatprep.subr.mxu0 0.0
    %3834 = vmatpush1.msra.mxu0 0.0
    %3835 = vmatprep.subr.mxu0 0.0
    %3836 = vmatpush1.msra.mxu0 0.0
    %3837 = vmatprep.subr.mxu0 0.0
    %3838 = vmatpush1.msra.mxu0 0.0
    %3839 = vmatprep.subr.mxu0 0.0
    %3840 = vmatpush1.msra.mxu0 0.0
    %3841 = vmatprep.subr.mxu0 0.0
    %3842 = vmatpush1.msra.mxu0 0.0
    %3843 = vmatprep.subr.mxu0 0.0
    %3844 = vmatpush1.msra.mxu0 0.0
    %3845 = vmatprep.subr.mxu0 0.0
    %3846 = vmatpush1.msra.mxu0 0.0
    %3847 = vmatprep.subr.mxu0 0.0
    %3848 = vmatpush1.msra.mxu0 0.0
    %3849 = vmatprep.subr.mxu0 0.0
    %3850 = vmatpush1.msra.mxu0 0.0
    %3851 = vmatprep.subr.mxu0 0.0
    %3852 = vmatpush1.msra.mxu0 0.0
    %3853 = vmatprep.subr.mxu0 0.0
    %3854 = vmatpush1.msra.mxu0 0.0
    %3855 = vmatprep.subr.mxu0 0.0
    %3856 = vmatpush1.msra.mxu0 0.0
    %3857 = vmatprep.subr.mxu0 0.0
    %3858 = vmatpush1.msra.mxu0 0.0
    %3859 = vmatprep.subr.mxu0 0.0
    %3860 = vmatpush1.msra.mxu0 0.0
    %3861 = vmatprep.subr.mxu0 0.0
    %3862 = vmatpush1.msra.mxu0 0.0
    %3863 = vmatprep.subr.mxu0 0.0
    %3864 = vmatpush1.msra.mxu0 0.0
    %3865 = vmatprep.subr.mxu0 0.0
    %3866 = vmatpush1.msra.mxu0 0.0
    %3867 = vmatprep.subr.mxu0 0.0
    %3868 = vmatpush1.msra.mxu0 0.0
    %3869 = vmatprep.subr.mxu0 0.0
    %3870 = vmatpush1.msra.mxu0 0.0
    %3871 = vmatprep.subr.mxu0 0.0
    %3872 = vmatpush1.msra.mxu0 0.0
    %3873 = vmatprep.subr.mxu0 0.0
    %3874 = vmatpush1.msra.mxu0 0.0
    %3875 = vmatprep.subr.mxu0 0.0
    %3876 = vmatpush1.msra.mxu0 0.0
    %3877 = vmatprep.subr.mxu0 0.0
    %3878 = vmatpush1.msra.mxu0 0.0
    %3879 = vmatprep.subr.mxu0 0.0
    %3880 = vmatpush1.msra.mxu0 0.0
    %3881 = vmatprep.mubr.f32.mxu0 0.0
    %3882 = vmatmul.mubr.f32.gmra.mrb[0].mxu0 %v3800
    %v3883 = vpop.f32.mrb[0].mxu0
    %v3884 = vadd.f32 0.0, %v3883
    %v3885 = vpop.f32.mrb[0].mxu0
    %3886 = vmatprep.mubr.f32.mxu0 0.0
    %3887 = vmatmul.mubr.f32.gmra.mrb[0].mxu0 %v3803
    %v3888 = vpop.f32.mrb[0].mxu0
    %v3889 = vadd.f32 0.0, %v3888
    %v3890 = vpop.f32.mrb[0].mxu0
    %3891 = vmatprep.mubr.f32.mxu0 0.0
    %3892 = vmatmul.mubr.f32.gmra.mrb[0].mxu0 %v3806
    %v3893 = vpop.f32.mrb[0].mxu0
    %v3894 = vadd.f32 0.0, %v3893
    %v3895 = vpop.f32.mrb[0].mxu0
    %3896 = vmatprep.mubr.f32.mxu0 0.0
    %3897 = vmatmul.mubr.f32.gmra.mrb[0].mxu0 %v3809
    %v3898 = vpop.f32.mrb[0].mxu0
    %v3899 = vadd.f32 0.0, %v3898
    %v3900 = vpop.f32.mrb[0].mxu0
    %3901 = vmatprep.mubr.f32.mxu0 0.0
    %3902 = vmatmul.mubr.f32.gmra.mrb[0].mxu0 %v3812
    %v3903 = vpop.f32.mrb[0].mxu0
    %v3904 = vadd.f32 0.0, %v3903
    %v3905 = vpop.f32.mrb[0].mxu0
    %3906 = vmatprep.mubr.f32.mxu0 0.0
    %3907 = vmatmul.mubr.f32.gmra.mrb[0].mxu0 %v3815
    %v3908 = vpop.f32.mrb[0].mxu0
    %v3909 = vadd.f32 0.0, %v3908
    %v3910 = vpop.f32.mrb[0].mxu0
    %3911 = vdwg.mxu0
    %3912 = vrot.lane.b32.xlu0 %v3250, 64
    %v3913 = vpop.permute.xlu0 %3912
    %3914 = vrot.lane.b32.xlu0 %v3251, 64
    %v3915 = vpop.permute.xlu0 %3914
    %3916 = vrot.lane.b32.xlu0 %v3252, 64
    %v3917 = vpop.permute.xlu0 %3916
    %3918 = vrot.lane.b32.xlu0 %v3253, 64
    %v3919 = vpop.permute.xlu0 %3918
    %3920 = vrot.lane.b32.xlu0 %v3254, 64
    %v3921 = vpop.permute.xlu0 %3920
    %3922 = vrot.lane.b32.xlu0 %v3255, 64
    %v3923 = vpop.permute.xlu0 %3922
    %3924 = vrot.lane.b32.xlu0 %v3123, 64
    %v3925 = vpop.permute.xlu0 %3924
    %3926 = vrot.lane.b32.xlu0 %v3129, 64
    %v3927 = vpop.permute.xlu0 %3926
    %3928 = vrot.lane.b32.xlu0 %v3135, 64
    %v3929 = vpop.permute.xlu0 %3928
    %3930 = vrot.lane.b32.xlu0 %v3141, 64
    %v3931 = vpop.permute.xlu0 %3930
    %3932 = vrot.lane.b32.xlu0 %v3147, 64
    %v3933 = vpop.permute.xlu0 %3932
    %3934 = vrot.lane.b32.xlu0 %v3153, 64
    %v3935 = vpop.permute.xlu0 %3934
    %v3936 = vsel %vm726, %v3913, 0
    %v3938 = vsel %vm726, %v3915, 0
    %v3940 = vsel %vm726, %v3917, 0
    %v3942 = vsel %vm726, %v3919, 0
    %v3944 = vsel %vm726, %v3921, 0
    %v3946 = vsel %vm726, %v3923, 0
    %v3948 = vsel %vm726, %v3925, 0
    %v3950 = vsel %vm726, %v3927, 0
    %v3952 = vsel %vm726, %v3929, 0
    %v3954 = vsel %vm726, %v3931, 0
    %v3956 = vsel %vm726, %v3933, 0
    %v3958 = vsel %vm726, %v3935, 0
    %3960 = vmatprep.subr.mxu0 0.0
    %3961 = vmatpush1.xpose.msra.mxu0 %v3948
    %3962 = vmatprep.subr.mxu0 0.0
    %3963 = vmatpush1.xpose.msra.mxu0 %v3950
    %3964 = vmatprep.subr.mxu0 0.0
    %3965 = vmatpush1.xpose.msra.mxu0 %v3952
    %3966 = vmatprep.subr.mxu0 0.0
    %3967 = vmatpush1.xpose.msra.mxu0 %v3954
    %3968 = vmatprep.subr.mxu0 0.0
    %3969 = vmatpush1.xpose.msra.mxu0 %v3956
    %3970 = vmatprep.subr.mxu0 0.0
    %3971 = vmatpush1.xpose.msra.mxu0 %v3958
    %3972 = vmatprep.subr.mxu0 0.0
    %3973 = vmatpush1.xpose.msra.mxu0 0.0
    %3974 = vmatprep.subr.mxu0 0.0
    %3975 = vmatpush1.xpose.msra.mxu0 0.0
    %3976 = vmatprep.subr.mxu0 0.0
    %3977 = vmatpush1.xpose.msra.mxu0 0.0
    %3978 = vmatprep.subr.mxu0 0.0
    %3979 = vmatpush1.xpose.msra.mxu0 0.0
    %3980 = vmatprep.subr.mxu0 0.0
    %3981 = vmatpush1.xpose.msra.mxu0 0.0
    %3982 = vmatprep.subr.mxu0 0.0
    %3983 = vmatpush1.xpose.msra.mxu0 0.0
    %3984 = vmatprep.subr.mxu0 0.0
    %3985 = vmatpush1.xpose.msra.mxu0 0.0
    %3986 = vmatprep.subr.mxu0 0.0
    %3987 = vmatpush1.xpose.msra.mxu0 0.0
    %3988 = vmatprep.subr.mxu0 0.0
    %3989 = vmatpush1.xpose.msra.mxu0 0.0
    %3990 = vmatprep.subr.mxu0 0.0
    %3991 = vmatpush1.xpose.msra.mxu0 0.0
    %3992 = vmatprep.subr.mxu0 0.0
    %3993 = vmatpush1.xpose.msra.mxu0 0.0
    %3994 = vmatprep.subr.mxu0 0.0
    %3995 = vmatpush1.xpose.msra.mxu0 0.0
    %3996 = vmatprep.subr.mxu0 0.0
    %3997 = vmatpush1.xpose.msra.mxu0 0.0
    %3998 = vmatprep.subr.mxu0 0.0
    %3999 = vmatpush1.xpose.msra.mxu0 0.0
    %4000 = vmatprep.subr.mxu0 0.0
    %4001 = vmatpush1.xpose.msra.mxu0 0.0
    %4002 = vmatprep.subr.mxu0 0.0
    %4003 = vmatpush1.xpose.msra.mxu0 0.0
    %4004 = vmatprep.subr.mxu0 0.0
    %4005 = vmatpush1.xpose.msra.mxu0 0.0
    %4006 = vmatprep.subr.mxu0 0.0
    %4007 = vmatpush1.xpose.msra.mxu0 0.0
    %4008 = vmatprep.subr.mxu0 0.0
    %4009 = vmatpush1.xpose.msra.mxu0 0.0
    %4010 = vmatprep.subr.mxu0 0.0
    %4011 = vmatpush1.xpose.msra.mxu0 0.0
    %4012 = vmatprep.subr.mxu0 0.0
    %4013 = vmatpush1.xpose.msra.mxu0 0.0
    %4014 = vmatprep.subr.mxu0 0.0
    %4015 = vmatpush1.xpose.msra.mxu0 0.0
    %4016 = vmatprep.subr.mxu0 0.0
    %4017 = vmatpush1.xpose.msra.mxu0 0.0
    %4018 = vmatprep.subr.mxu0 0.0
    %4019 = vmatpush1.xpose.msra.mxu0 0.0
    %4020 = vmatprep.subr.mxu0 0.0
    %4021 = vmatpush1.xpose.msra.mxu0 0.0
    %4022 = vmatprep.subr.mxu0 0.0
    %4023 = vmatpush1.xpose.msra.mxu0 0.0
    %4024 = vmatprep.mubr.f32.mxu0 0.0
    %4025 = vmatmul.mubr.f32.gmra.mrb[0].mxu0 %v3936
    %v4026 = vpop.f32.mrb[0].mxu0
    %v4027 = vadd.f32 0.0, %v4026
    %v4028 = vpop.f32.mrb[0].mxu0
    %4029 = vmatprep.mubr.f32.mxu0 0.0
    %4030 = vmatmul.mubr.f32.gmra.mrb[0].mxu0 %v3938
    %v4031 = vpop.f32.mrb[0].mxu0
    %v4032 = vadd.f32 0.0, %v4031
    %v4033 = vpop.f32.mrb[0].mxu0
    %4034 = vmatprep.mubr.f32.mxu0 0.0
    %4035 = vmatmul.mubr.f32.gmra.mrb[0].mxu0 %v3940
    %v4036 = vpop.f32.mrb[0].mxu0
    %v4037 = vadd.f32 0.0, %v4036
    %v4038 = vpop.f32.mrb[0].mxu0
    %4039 = vmatprep.mubr.f32.mxu0 0.0
    %4040 = vmatmul.mubr.f32.gmra.mrb[0].mxu0 %v3942
    %v4041 = vpop.f32.mrb[0].mxu0
    %v4042 = vadd.f32 0.0, %v4041
    %v4043 = vpop.f32.mrb[0].mxu0
    %4044 = vmatprep.mubr.f32.mxu0 0.0
    %4045 = vmatmul.mubr.f32.gmra.mrb[0].mxu0 %v3944
    %v4046 = vpop.f32.mrb[0].mxu0
    %v4047 = vadd.f32 0.0, %v4046
    %v4048 = vpop.f32.mrb[0].mxu0
    %4049 = vmatprep.mubr.f32.mxu0 0.0
    %4050 = vmatmul.mubr.f32.gmra.mrb[0].mxu0 %v3946
    %v4051 = vpop.f32.mrb[0].mxu0
    %v4052 = vadd.f32 0.0, %v4051
    %v4053 = vpop.f32.mrb[0].mxu0
    %4054 = vdwg.mxu0
    %v4055 = vsel %vm858, %v4027, -inf
    %4056 = vmax.xlane.f32.xlu0 %v4055
    %v4057 = vpop.xlane.xlu0 %4056
    %v4058 = vsel %vm858, %v4032, -inf
    %4059 = vmax.xlane.f32.xlu0 %v4058
    %v4060 = vpop.xlane.xlu0 %4059
    %v4061 = vsel %vm858, %v4037, -inf
    %4062 = vmax.xlane.f32.xlu0 %v4061
    %v4063 = vpop.xlane.xlu0 %4062
    %v4064 = vsel %vm858, %v4042, -inf
    %4065 = vmax.xlane.f32.xlu0 %v4064
    %v4066 = vpop.xlane.xlu0 %4065
    %v4067 = vsel %vm858, %v4047, -inf
    %4068 = vmax.xlane.f32.xlu0 %v4067
    %v4069 = vpop.xlane.xlu0 %4068
    %v4070 = vsel %vm858, %v4052, -inf
    %4071 = vmax.xlane.f32.xlu0 %v4070
    %v4072 = vpop.xlane.xlu0 %4071
    %v4073 = vsub.f32 %v4027, %v4057
    %v4074 = vsub.f32 %v4032, %v4060
    %v4075 = vsub.f32 %v4037, %v4063
    %v4076 = vsub.f32 %v4042, %v4066
    %v4077 = vsub.f32 %v4047, %v4069
    %v4078 = vsub.f32 %v4052, %v4072
    %v4079 = vmul.f32 %v4073, 1.442695
    %v4080 = vpow.pop %v4079
    %v4081 = vmul.f32 %v4074, 1.442695
    %v4082 = vpow.pop %v4081
    %v4083 = vmul.f32 %v4075, 1.442695
    %v4084 = vpow.pop %v4083
    %v4085 = vmul.f32 %v4076, 1.442695
    %v4086 = vpow.pop %v4085
    %v4087 = vmul.f32 %v4077, 1.442695
    %v4088 = vpow.pop %v4087
    %v4089 = vmul.f32 %v4078, 1.442695
    %v4090 = vpow.pop %v4089
    %v4091 = vsel %vm858, %v4080, 0.0
    %4092 = vadd.xlane.f32.xlu0 %v4091
    %v4093 = vpop.xlane.xlu0 %4092
    %v4094 = vsel %vm858, %v4082, 0.0
    %4095 = vadd.xlane.f32.xlu0 %v4094
    %v4096 = vpop.xlane.xlu0 %4095
    %v4097 = vsel %vm858, %v4084, 0.0
    %4098 = vadd.xlane.f32.xlu0 %v4097
    %v4099 = vpop.xlane.xlu0 %4098
    %v4100 = vsel %vm858, %v4086, 0.0
    %4101 = vadd.xlane.f32.xlu0 %v4100
    %v4102 = vpop.xlane.xlu0 %4101
    %v4103 = vsel %vm858, %v4088, 0.0
    %4104 = vadd.xlane.f32.xlu0 %v4103
    %v4105 = vpop.xlane.xlu0 %4104
    %v4106 = vsel %vm858, %v4090, 0.0
    %4107 = vadd.xlane.f32.xlu0 %v4106
    %v4108 = vpop.xlane.xlu0 %4107
    %v4109 = vrcp.pop %v4093
    %v4110 = vrcp.pop %v4096
    %v4111 = vrcp.pop %v4099
    %v4112 = vrcp.pop %v4102
    %v4113 = vrcp.pop %v4105
    %v4114 = vrcp.pop %v4108
    %v4115 = vmul.f32 %v4080, %v4109
    %v4116 = vmul.f32 %v4082, %v4110
    %v4117 = vmul.f32 %v4084, %v4111
    %v4118 = vmul.f32 %v4086, %v4112
    %v4119 = vmul.f32 %v4088, %v4113
    %v4120 = vmul.f32 %v4090, %v4114
    %4121 = vrot.lane.b32.xlu0 %v3222, 64
    %v4122 = vpop.permute.xlu0 %4121
    %4123 = vrot.lane.b32.xlu0 %v3227, 64
    %v4124 = vpop.permute.xlu0 %4123
    %4125 = vrot.lane.b32.xlu0 %v3232, 64
    %v4126 = vpop.permute.xlu0 %4125
    %4127 = vrot.lane.b32.xlu0 %v3237, 64
    %v4128 = vpop.permute.xlu0 %4127
    %4129 = vrot.lane.b32.xlu0 %v3242, 64
    %v4130 = vpop.permute.xlu0 %4129
    %4131 = vrot.lane.b32.xlu0 %v3247, 64
    %v4132 = vpop.permute.xlu0 %4131
    %v4140 = vsel %vm858, %v4115, 0
    %v4143 = vsel %vm858, %v4116, 0
    %v4146 = vsel %vm858, %v4117, 0
    %v4149 = vsel %vm858, %v4118, 0
    %v4152 = vsel %vm858, %v4119, 0
    %v4155 = vsel %vm858, %v4120, 0
    %4157 = vmatprep.subr.mxu0 0.0
    %4158 = vmatpush1.msra.mxu0 %v4122
    %4159 = vmatprep.subr.mxu0 0.0
    %4160 = vmatpush1.msra.mxu0 %v4124
    %4161 = vmatprep.subr.mxu0 0.0
    %4162 = vmatpush1.msra.mxu0 %v4126
    %4163 = vmatprep.subr.mxu0 0.0
    %4164 = vmatpush1.msra.mxu0 %v4128
    %4165 = vmatprep.subr.mxu0 0.0
    %4166 = vmatpush1.msra.mxu0 %v4130
    %4167 = vmatprep.subr.mxu0 0.0
    %4168 = vmatpush1.msra.mxu0 %v4132
    %4169 = vmatprep.subr.mxu0 0.0
    %4170 = vmatpush1.msra.mxu0 0.0
    %4171 = vmatprep.subr.mxu0 0.0
    %4172 = vmatpush1.msra.mxu0 0.0
    %4173 = vmatprep.subr.mxu0 0.0
    %4174 = vmatpush1.msra.mxu0 0.0
    %4175 = vmatprep.subr.mxu0 0.0
    %4176 = vmatpush1.msra.mxu0 0.0
    %4177 = vmatprep.subr.mxu0 0.0
    %4178 = vmatpush1.msra.mxu0 0.0
    %4179 = vmatprep.subr.mxu0 0.0
    %4180 = vmatpush1.msra.mxu0 0.0
    %4181 = vmatprep.subr.mxu0 0.0
    %4182 = vmatpush1.msra.mxu0 0.0
    %4183 = vmatprep.subr.mxu0 0.0
    %4184 = vmatpush1.msra.mxu0 0.0
    %4185 = vmatprep.subr.mxu0 0.0
    %4186 = vmatpush1.msra.mxu0 0.0
    %4187 = vmatprep.subr.mxu0 0.0
    %4188 = vmatpush1.msra.mxu0 0.0
    %4189 = vmatprep.subr.mxu0 0.0
    %4190 = vmatpush1.msra.mxu0 0.0
    %4191 = vmatprep.subr.mxu0 0.0
    %4192 = vmatpush1.msra.mxu0 0.0
    %4193 = vmatprep.subr.mxu0 0.0
    %4194 = vmatpush1.msra.mxu0 0.0
    %4195 = vmatprep.subr.mxu0 0.0
    %4196 = vmatpush1.msra.mxu0 0.0
    %4197 = vmatprep.subr.mxu0 0.0
    %4198 = vmatpush1.msra.mxu0 0.0
    %4199 = vmatprep.subr.mxu0 0.0
    %4200 = vmatpush1.msra.mxu0 0.0
    %4201 = vmatprep.subr.mxu0 0.0
    %4202 = vmatpush1.msra.mxu0 0.0
    %4203 = vmatprep.subr.mxu0 0.0
    %4204 = vmatpush1.msra.mxu0 0.0
    %4205 = vmatprep.subr.mxu0 0.0
    %4206 = vmatpush1.msra.mxu0 0.0
    %4207 = vmatprep.subr.mxu0 0.0
    %4208 = vmatpush1.msra.mxu0 0.0
    %4209 = vmatprep.subr.mxu0 0.0
    %4210 = vmatpush1.msra.mxu0 0.0
    %4211 = vmatprep.subr.mxu0 0.0
    %4212 = vmatpush1.msra.mxu0 0.0
    %4213 = vmatprep.subr.mxu0 0.0
    %4214 = vmatpush1.msra.mxu0 0.0
    %4215 = vmatprep.subr.mxu0 0.0
    %4216 = vmatpush1.msra.mxu0 0.0
    %4217 = vmatprep.subr.mxu0 0.0
    %4218 = vmatpush1.msra.mxu0 0.0
    %4219 = vmatprep.subr.mxu0 0.0
    %4220 = vmatpush1.msra.mxu0 0.0
    %4221 = vmatprep.mubr.f32.mxu0 0.0
    %4222 = vmatmul.mubr.f32.gmra.mrb[0].mxu0 %v4140
    %v4223 = vpop.f32.mrb[0].mxu0
    %v4224 = vadd.f32 0.0, %v4223
    %v4225 = vpop.f32.mrb[0].mxu0
    %4226 = vmatprep.mubr.f32.mxu0 0.0
    %4227 = vmatmul.mubr.f32.gmra.mrb[0].mxu0 %v4143
    %v4228 = vpop.f32.mrb[0].mxu0
    %v4229 = vadd.f32 0.0, %v4228
    %v4230 = vpop.f32.mrb[0].mxu0
    %4231 = vmatprep.mubr.f32.mxu0 0.0
    %4232 = vmatmul.mubr.f32.gmra.mrb[0].mxu0 %v4146
    %v4233 = vpop.f32.mrb[0].mxu0
    %v4234 = vadd.f32 0.0, %v4233
    %v4235 = vpop.f32.mrb[0].mxu0
    %4236 = vmatprep.mubr.f32.mxu0 0.0
    %4237 = vmatmul.mubr.f32.gmra.mrb[0].mxu0 %v4149
    %v4238 = vpop.f32.mrb[0].mxu0
    %v4239 = vadd.f32 0.0, %v4238
    %v4240 = vpop.f32.mrb[0].mxu0
    %4241 = vmatprep.mubr.f32.mxu0 0.0
    %4242 = vmatmul.mubr.f32.gmra.mrb[0].mxu0 %v4152
    %v4243 = vpop.f32.mrb[0].mxu0
    %v4244 = vadd.f32 0.0, %v4243
    %v4245 = vpop.f32.mrb[0].mxu0
    %4246 = vmatprep.mubr.f32.mxu0 0.0
    %4247 = vmatmul.mubr.f32.gmra.mrb[0].mxu0 %v4155
    %v4248 = vpop.f32.mrb[0].mxu0
    %v4249 = vadd.f32 0.0, %v4248
    %v4250 = vpop.f32.mrb[0].mxu0
    %4251 = vdwg.mxu0
    %4252 = vrot.lane.b32.xlu0 %v3250, 32
    %v4253 = vpop.permute.xlu0 %4252
    %4254 = vrot.lane.b32.xlu0 %v3251, 32
    %v4255 = vpop.permute.xlu0 %4254
    %4256 = vrot.lane.b32.xlu0 %v3252, 32
    %v4257 = vpop.permute.xlu0 %4256
    %4258 = vrot.lane.b32.xlu0 %v3253, 32
    %v4259 = vpop.permute.xlu0 %4258
    %4260 = vrot.lane.b32.xlu0 %v3254, 32
    %v4261 = vpop.permute.xlu0 %4260
    %4262 = vrot.lane.b32.xlu0 %v3255, 32
    %v4263 = vpop.permute.xlu0 %4262
    %4264 = vrot.lane.b32.xlu0 %v3123, 32
    %v4265 = vpop.permute.xlu0 %4264
    %4266 = vrot.lane.b32.xlu0 %v3129, 32
    %v4267 = vpop.permute.xlu0 %4266
    %4268 = vrot.lane.b32.xlu0 %v3135, 32
    %v4269 = vpop.permute.xlu0 %4268
    %4270 = vrot.lane.b32.xlu0 %v3141, 32
    %v4271 = vpop.permute.xlu0 %4270
    %4272 = vrot.lane.b32.xlu0 %v3147, 32
    %v4273 = vpop.permute.xlu0 %4272
    %4274 = vrot.lane.b32.xlu0 %v3153, 32
    %v4275 = vpop.permute.xlu0 %4274
    %v4276 = vsel %vm726, %v4253, 0
    %v4278 = vsel %vm726, %v4255, 0
    %v4280 = vsel %vm726, %v4257, 0
    %v4282 = vsel %vm726, %v4259, 0
    %v4284 = vsel %vm726, %v4261, 0
    %v4286 = vsel %vm726, %v4263, 0
    %v4288 = vsel %vm726, %v4265, 0
    %v4290 = vsel %vm726, %v4267, 0
    %v4292 = vsel %vm726, %v4269, 0
    %v4294 = vsel %vm726, %v4271, 0
    %v4296 = vsel %vm726, %v4273, 0
    %v4298 = vsel %vm726, %v4275, 0
    %4300 = vmatprep.subr.mxu0 0.0
    %4301 = vmatpush1.xpose.msra.mxu0 %v4288
    %4302 = vmatprep.subr.mxu0 0.0
    %4303 = vmatpush1.xpose.msra.mxu0 %v4290
    %4304 = vmatprep.subr.mxu0 0.0
    %4305 = vmatpush1.xpose.msra.mxu0 %v4292
    %4306 = vmatprep.subr.mxu0 0.0
    %4307 = vmatpush1.xpose.msra.mxu0 %v4294
    %4308 = vmatprep.subr.mxu0 0.0
    %4309 = vmatpush1.xpose.msra.mxu0 %v4296
    %4310 = vmatprep.subr.mxu0 0.0
    %4311 = vmatpush1.xpose.msra.mxu0 %v4298
    %4312 = vmatprep.subr.mxu0 0.0
    %4313 = vmatpush1.xpose.msra.mxu0 0.0
    %4314 = vmatprep.subr.mxu0 0.0
    %4315 = vmatpush1.xpose.msra.mxu0 0.0
    %4316 = vmatprep.subr.mxu0 0.0
    %4317 = vmatpush1.xpose.msra.mxu0 0.0
    %4318 = vmatprep.subr.mxu0 0.0
    %4319 = vmatpush1.xpose.msra.mxu0 0.0
    %4320 = vmatprep.subr.mxu0 0.0
    %4321 = vmatpush1.xpose.msra.mxu0 0.0
    %4322 = vmatprep.subr.mxu0 0.0
    %4323 = vmatpush1.xpose.msra.mxu0 0.0
    %4324 = vmatprep.subr.mxu0 0.0
    %4325 = vmatpush1.xpose.msra.mxu0 0.0
    %4326 = vmatprep.subr.mxu0 0.0
    %4327 = vmatpush1.xpose.msra.mxu0 0.0
    %4328 = vmatprep.subr.mxu0 0.0
    %4329 = vmatpush1.xpose.msra.mxu0 0.0
    %4330 = vmatprep.subr.mxu0 0.0
    %4331 = vmatpush1.xpose.msra.mxu0 0.0
    %4332 = vmatprep.subr.mxu0 0.0
    %4333 = vmatpush1.xpose.msra.mxu0 0.0
    %4334 = vmatprep.subr.mxu0 0.0
    %4335 = vmatpush1.xpose.msra.mxu0 0.0
    %4336 = vmatprep.subr.mxu0 0.0
    %4337 = vmatpush1.xpose.msra.mxu0 0.0
    %4338 = vmatprep.subr.mxu0 0.0
    %4339 = vmatpush1.xpose.msra.mxu0 0.0
    %4340 = vmatprep.subr.mxu0 0.0
    %4341 = vmatpush1.xpose.msra.mxu0 0.0
    %4342 = vmatprep.subr.mxu0 0.0
    %4343 = vmatpush1.xpose.msra.mxu0 0.0
    %4344 = vmatprep.subr.mxu0 0.0
    %4345 = vmatpush1.xpose.msra.mxu0 0.0
    %4346 = vmatprep.subr.mxu0 0.0
    %4347 = vmatpush1.xpose.msra.mxu0 0.0
    %4348 = vmatprep.subr.mxu0 0.0
    %4349 = vmatpush1.xpose.msra.mxu0 0.0
    %4350 = vmatprep.subr.mxu0 0.0
    %4351 = vmatpush1.xpose.msra.mxu0 0.0
    %4352 = vmatprep.subr.mxu0 0.0
    %4353 = vmatpush1.xpose.msra.mxu0 0.0
    %4354 = vmatprep.subr.mxu0 0.0
    %4355 = vmatpush1.xpose.msra.mxu0 0.0
    %4356 = vmatprep.subr.mxu0 0.0
    %4357 = vmatpush1.xpose.msra.mxu0 0.0
    %4358 = vmatprep.subr.mxu0 0.0
    %4359 = vmatpush1.xpose.msra.mxu0 0.0
    %4360 = vmatprep.subr.mxu0 0.0
    %4361 = vmatpush1.xpose.msra.mxu0 0.0
    %4362 = vmatprep.subr.mxu0 0.0
    %4363 = vmatpush1.xpose.msra.mxu0 0.0
    %4364 = vmatprep.mubr.f32.mxu0 0.0
    %4365 = vmatmul.mubr.f32.gmra.mrb[0].mxu0 %v4276
    %v4366 = vpop.f32.mrb[0].mxu0
    %v4367 = vadd.f32 0.0, %v4366
    %v4368 = vpop.f32.mrb[0].mxu0
    %4369 = vmatprep.mubr.f32.mxu0 0.0
    %4370 = vmatmul.mubr.f32.gmra.mrb[0].mxu0 %v4278
    %v4371 = vpop.f32.mrb[0].mxu0
    %v4372 = vadd.f32 0.0, %v4371
    %v4373 = vpop.f32.mrb[0].mxu0
    %4374 = vmatprep.mubr.f32.mxu0 0.0
    %4375 = vmatmul.mubr.f32.gmra.mrb[0].mxu0 %v4280
    %v4376 = vpop.f32.mrb[0].mxu0
    %v4377 = vadd.f32 0.0, %v4376
    %v4378 = vpop.f32.mrb[0].mxu0
    %4379 = vmatprep.mubr.f32.mxu0 0.0
    %4380 = vmatmul.mubr.f32.gmra.mrb[0].mxu0 %v4282
    %v4381 = vpop.f32.mrb[0].mxu0
    %v4382 = vadd.f32 0.0, %v4381
    %v4383 = vpop.f32.mrb[0].mxu0
    %4384 = vmatprep.mubr.f32.mxu0 0.0
    %4385 = vmatmul.mubr.f32.gmra.mrb[0].mxu0 %v4284
    %v4386 = vpop.f32.mrb[0].mxu0
    %v4387 = vadd.f32 0.0, %v4386
    %v4388 = vpop.f32.mrb[0].mxu0
    %4389 = vmatprep.mubr.f32.mxu0 0.0
    %4390 = vmatmul.mubr.f32.gmra.mrb[0].mxu0 %v4286
    %v4391 = vpop.f32.mrb[0].mxu0
    %v4392 = vadd.f32 0.0, %v4391
    %v4393 = vpop.f32.mrb[0].mxu0
    %4394 = vdwg.mxu0
    %v4395 = vsel %vm858, %v4367, -inf
    %4396 = vmax.xlane.f32.xlu0 %v4395
    %v4397 = vpop.xlane.xlu0 %4396
    %v4398 = vsel %vm858, %v4372, -inf
    %4399 = vmax.xlane.f32.xlu0 %v4398
    %v4400 = vpop.xlane.xlu0 %4399
    %v4401 = vsel %vm858, %v4377, -inf
    %4402 = vmax.xlane.f32.xlu0 %v4401
    %v4403 = vpop.xlane.xlu0 %4402
    %v4404 = vsel %vm858, %v4382, -inf
    %4405 = vmax.xlane.f32.xlu0 %v4404
    %v4406 = vpop.xlane.xlu0 %4405
    %v4407 = vsel %vm858, %v4387, -inf
    %4408 = vmax.xlane.f32.xlu0 %v4407
    %v4409 = vpop.xlane.xlu0 %4408
    %v4410 = vsel %vm858, %v4392, -inf
    %4411 = vmax.xlane.f32.xlu0 %v4410
    %v4412 = vpop.xlane.xlu0 %4411
    %v4413 = vsub.f32 %v4367, %v4397
    %v4414 = vsub.f32 %v4372, %v4400
    %v4415 = vsub.f32 %v4377, %v4403
    %v4416 = vsub.f32 %v4382, %v4406
    %v4417 = vsub.f32 %v4387, %v4409
    %v4418 = vsub.f32 %v4392, %v4412
    %v4419 = vmul.f32 %v4413, 1.442695
    %v4420 = vpow.pop %v4419
    %v4421 = vmul.f32 %v4414, 1.442695
    %v4422 = vpow.pop %v4421
    %v4423 = vmul.f32 %v4415, 1.442695
    %v4424 = vpow.pop %v4423
    %v4425 = vmul.f32 %v4416, 1.442695
    %v4426 = vpow.pop %v4425
    %v4427 = vmul.f32 %v4417, 1.442695
    %v4428 = vpow.pop %v4427
    %v4429 = vmul.f32 %v4418, 1.442695
    %v4430 = vpow.pop %v4429
    %v4431 = vsel %vm858, %v4420, 0.0
    %4432 = vadd.xlane.f32.xlu0 %v4431
    %v4433 = vpop.xlane.xlu0 %4432
    %v4434 = vsel %vm858, %v4422, 0.0
    %4435 = vadd.xlane.f32.xlu0 %v4434
    %v4436 = vpop.xlane.xlu0 %4435
    %v4437 = vsel %vm858, %v4424, 0.0
    %4438 = vadd.xlane.f32.xlu0 %v4437
    %v4439 = vpop.xlane.xlu0 %4438
    %v4440 = vsel %vm858, %v4426, 0.0
    %4441 = vadd.xlane.f32.xlu0 %v4440
    %v4442 = vpop.xlane.xlu0 %4441
    %v4443 = vsel %vm858, %v4428, 0.0
    %4444 = vadd.xlane.f32.xlu0 %v4443
    %v4445 = vpop.xlane.xlu0 %4444
    %v4446 = vsel %vm858, %v4430, 0.0
    %4447 = vadd.xlane.f32.xlu0 %v4446
    %v4448 = vpop.xlane.xlu0 %4447
    %v4449 = vrcp.pop %v4433
    %v4450 = vrcp.pop %v4436
    %v4451 = vrcp.pop %v4439
    %v4452 = vrcp.pop %v4442
    %v4453 = vrcp.pop %v4445
    %v4454 = vrcp.pop %v4448
    %v4455 = vmul.f32 %v4420, %v4449
    %v4456 = vmul.f32 %v4422, %v4450
    %v4457 = vmul.f32 %v4424, %v4451
    %v4458 = vmul.f32 %v4426, %v4452
    %v4459 = vmul.f32 %v4428, %v4453
    %v4460 = vmul.f32 %v4430, %v4454
    %4461 = vrot.lane.b32.xlu0 %v3222, 32
    %v4462 = vpop.permute.xlu0 %4461
    %4463 = vrot.lane.b32.xlu0 %v3227, 32
    %v4464 = vpop.permute.xlu0 %4463
    %4465 = vrot.lane.b32.xlu0 %v3232, 32
    %v4466 = vpop.permute.xlu0 %4465
    %4467 = vrot.lane.b32.xlu0 %v3237, 32
    %v4468 = vpop.permute.xlu0 %4467
    %4469 = vrot.lane.b32.xlu0 %v3242, 32
    %v4470 = vpop.permute.xlu0 %4469
    %4471 = vrot.lane.b32.xlu0 %v3247, 32
    %v4472 = vpop.permute.xlu0 %4471
    %v4480 = vsel %vm858, %v4455, 0
    %v4483 = vsel %vm858, %v4456, 0
    %v4486 = vsel %vm858, %v4457, 0
    %v4489 = vsel %vm858, %v4458, 0
    %v4492 = vsel %vm858, %v4459, 0
    %v4495 = vsel %vm858, %v4460, 0
    %4497 = vmatprep.subr.mxu0 0.0
    %4498 = vmatpush1.msra.mxu0 %v4462
    %4499 = vmatprep.subr.mxu0 0.0
    %4500 = vmatpush1.msra.mxu0 %v4464
    %4501 = vmatprep.subr.mxu0 0.0
    %4502 = vmatpush1.msra.mxu0 %v4466
    %4503 = vmatprep.subr.mxu0 0.0
    %4504 = vmatpush1.msra.mxu0 %v4468
    %4505 = vmatprep.subr.mxu0 0.0
    %4506 = vmatpush1.msra.mxu0 %v4470
    %4507 = vmatprep.subr.mxu0 0.0
    %4508 = vmatpush1.msra.mxu0 %v4472
    %4509 = vmatprep.subr.mxu0 0.0
    %4510 = vmatpush1.msra.mxu0 0.0
    %4511 = vmatprep.subr.mxu0 0.0
    %4512 = vmatpush1.msra.mxu0 0.0
    %4513 = vmatprep.subr.mxu0 0.0
    %4514 = vmatpush1.msra.mxu0 0.0
    %4515 = vmatprep.subr.mxu0 0.0
    %4516 = vmatpush1.msra.mxu0 0.0
    %4517 = vmatprep.subr.mxu0 0.0
    %4518 = vmatpush1.msra.mxu0 0.0
    %4519 = vmatprep.subr.mxu0 0.0
    %4520 = vmatpush1.msra.mxu0 0.0
    %4521 = vmatprep.subr.mxu0 0.0
    %4522 = vmatpush1.msra.mxu0 0.0
    %4523 = vmatprep.subr.mxu0 0.0
    %4524 = vmatpush1.msra.mxu0 0.0
    %4525 = vmatprep.subr.mxu0 0.0
    %4526 = vmatpush1.msra.mxu0 0.0
    %4527 = vmatprep.subr.mxu0 0.0
    %4528 = vmatpush1.msra.mxu0 0.0
    %4529 = vmatprep.subr.mxu0 0.0
    %4530 = vmatpush1.msra.mxu0 0.0
    %4531 = vmatprep.subr.mxu0 0.0
    %4532 = vmatpush1.msra.mxu0 0.0
    %4533 = vmatprep.subr.mxu0 0.0
    %4534 = vmatpush1.msra.mxu0 0.0
    %4535 = vmatprep.subr.mxu0 0.0
    %4536 = vmatpush1.msra.mxu0 0.0
    %4537 = vmatprep.subr.mxu0 0.0
    %4538 = vmatpush1.msra.mxu0 0.0
    %4539 = vmatprep.subr.mxu0 0.0
    %4540 = vmatpush1.msra.mxu0 0.0
    %4541 = vmatprep.subr.mxu0 0.0
    %4542 = vmatpush1.msra.mxu0 0.0
    %4543 = vmatprep.subr.mxu0 0.0
    %4544 = vmatpush1.msra.mxu0 0.0
    %4545 = vmatprep.subr.mxu0 0.0
    %4546 = vmatpush1.msra.mxu0 0.0
    %4547 = vmatprep.subr.mxu0 0.0
    %4548 = vmatpush1.msra.mxu0 0.0
    %4549 = vmatprep.subr.mxu0 0.0
    %4550 = vmatpush1.msra.mxu0 0.0
    %4551 = vmatprep.subr.mxu0 0.0
    %4552 = vmatpush1.msra.mxu0 0.0
    %4553 = vmatprep.subr.mxu0 0.0
    %4554 = vmatpush1.msra.mxu0 0.0
    %4555 = vmatprep.subr.mxu0 0.0
    %4556 = vmatpush1.msra.mxu0 0.0
    %4557 = vmatprep.subr.mxu0 0.0
    %4558 = vmatpush1.msra.mxu0 0.0
    %4559 = vmatprep.subr.mxu0 0.0
    %4560 = vmatpush1.msra.mxu0 0.0
    %4561 = vmatprep.mubr.f32.mxu0 0.0
    %4562 = vmatmul.mubr.f32.gmra.mrb[0].mxu0 %v4480
    %v4563 = vpop.f32.mrb[0].mxu0
    %v4564 = vadd.f32 0.0, %v4563
    %v4565 = vpop.f32.mrb[0].mxu0
    %4566 = vmatprep.mubr.f32.mxu0 0.0
    %4567 = vmatmul.mubr.f32.gmra.mrb[0].mxu0 %v4483
    %v4568 = vpop.f32.mrb[0].mxu0
    %v4569 = vadd.f32 0.0, %v4568
    %v4570 = vpop.f32.mrb[0].mxu0
    %4571 = vmatprep.mubr.f32.mxu0 0.0
    %4572 = vmatmul.mubr.f32.gmra.mrb[0].mxu0 %v4486
    %v4573 = vpop.f32.mrb[0].mxu0
    %v4574 = vadd.f32 0.0, %v4573
    %v4575 = vpop.f32.mrb[0].mxu0
    %4576 = vmatprep.mubr.f32.mxu0 0.0
    %4577 = vmatmul.mubr.f32.gmra.mrb[0].mxu0 %v4489
    %v4578 = vpop.f32.mrb[0].mxu0
    %v4579 = vadd.f32 0.0, %v4578
    %v4580 = vpop.f32.mrb[0].mxu0
    %4581 = vmatprep.mubr.f32.mxu0 0.0
    %4582 = vmatmul.mubr.f32.gmra.mrb[0].mxu0 %v4492
    %v4583 = vpop.f32.mrb[0].mxu0
    %v4584 = vadd.f32 0.0, %v4583
    %v4585 = vpop.f32.mrb[0].mxu0
    %4586 = vmatprep.mubr.f32.mxu0 0.0
    %4587 = vmatmul.mubr.f32.gmra.mrb[0].mxu0 %v4495
    %v4588 = vpop.f32.mrb[0].mxu0
    %v4589 = vadd.f32 0.0, %v4588
    %v4590 = vpop.f32.mrb[0].mxu0
    %4591 = vdwg.mxu0
    %4598 = vrot.lane.b32.xlu0 %v3884, 32
    %v4599 = vpop.permute.xlu0 %4598
    %4600 = vrot.lane.b32.xlu0 %v3889, 32
    %v4601 = vpop.permute.xlu0 %4600
    %4602 = vrot.lane.b32.xlu0 %v3894, 32
    %v4603 = vpop.permute.xlu0 %4602
    %4604 = vrot.lane.b32.xlu0 %v3899, 32
    %v4605 = vpop.permute.xlu0 %4604
    %4606 = vrot.lane.b32.xlu0 %v3904, 32
    %v4607 = vpop.permute.xlu0 %4606
    %4608 = vrot.lane.b32.xlu0 %v3909, 32
    %v4609 = vpop.permute.xlu0 %4608
    %4622 = vrot.lane.b32.xlu0 %v4224, 64
    %v4623 = vpop.permute.xlu0 %4622
    %4624 = vrot.lane.b32.xlu0 %v4229, 64
    %v4625 = vpop.permute.xlu0 %4624
    %4626 = vrot.lane.b32.xlu0 %v4234, 64
    %v4627 = vpop.permute.xlu0 %4626
    %4628 = vrot.lane.b32.xlu0 %v4239, 64
    %v4629 = vpop.permute.xlu0 %4628
    %4630 = vrot.lane.b32.xlu0 %v4244, 64
    %v4631 = vpop.permute.xlu0 %4630
    %4632 = vrot.lane.b32.xlu0 %v4249, 64
    %v4633 = vpop.permute.xlu0 %4632
    %4646 = vrot.lane.b32.xlu0 %v4564, 96
    %v4647 = vpop.permute.xlu0 %4646
    %4648 = vrot.lane.b32.xlu0 %v4569, 96
    %v4649 = vpop.permute.xlu0 %4648
    %4650 = vrot.lane.b32.xlu0 %v4574, 96
    %v4651 = vpop.permute.xlu0 %4650
    %4652 = vrot.lane.b32.xlu0 %v4579, 96
    %v4653 = vpop.permute.xlu0 %4652
    %4654 = vrot.lane.b32.xlu0 %v4584, 96
    %v4655 = vpop.permute.xlu0 %4654
    %4656 = vrot.lane.b32.xlu0 %v4589, 96
    %v4657 = vpop.permute.xlu0 %4656
    %v4664 = vsel %vm726, %v3538, %v4599
    %v4665 = vsel %vm726, %v3543, %v4601
    %v4666 = vsel %vm726, %v3548, %v4603
    %v4667 = vsel %vm726, %v3553, %v4605
    %v4668 = vsel %vm726, %v3558, %v4607
    %v4669 = vsel %vm726, %v3563, %v4609
    %v4670 = vsel %vm2142, %v4664, %v4623
    %v4671 = vsel %vm2142, %v4665, %v4625
    %v4672 = vsel %vm2142, %v4666, %v4627
    %v4673 = vsel %vm2142, %v4667, %v4629
    %v4674 = vsel %vm2142, %v4668, %v4631
    %v4675 = vsel %vm2142, %v4669, %v4633
    %v4676 = vsel %vm2149, %v4670, %v4647
    %v4677 = vsel %vm2149, %v4671, %v4649
    %v4678 = vsel %vm2149, %v4672, %v4651
    %v4679 = vsel %vm2149, %v4673, %v4653
    %v4680 = vsel %vm2149, %v4674, %v4655
    %v4681 = vsel %vm2149, %v4675, %v4657
    %4682 = vmatprep.subr.mxu0 0.0
    %4683 = vmatpush1.msra.mxu0 %v262
    %4684 = vmatprep.subr.mxu0 0.0
    %4685 = vmatpush1.msra.mxu0 %v263
    %4686 = vmatprep.subr.mxu0 0.0
    %4687 = vmatpush1.msra.mxu0 %v264
    %4688 = vmatprep.subr.mxu0 0.0
    %4689 = vmatpush1.msra.mxu0 %v265
    %4690 = vmatprep.subr.mxu0 0.0
    %4691 = vmatpush1.msra.mxu0 %v266
    %4692 = vmatprep.subr.mxu0 0.0
    %4693 = vmatpush1.msra.mxu0 %v267
    %4694 = vmatprep.subr.mxu0 0.0
    %4695 = vmatpush1.msra.mxu0 %v268
    %4696 = vmatprep.subr.mxu0 0.0
    %4697 = vmatpush1.msra.mxu0 %v269
    %4698 = vmatprep.subr.mxu0 0.0
    %4699 = vmatpush1.msra.mxu0 %v270
    %4700 = vmatprep.subr.mxu0 0.0
    %4701 = vmatpush1.msra.mxu0 %v271
    %4702 = vmatprep.subr.mxu0 0.0
    %4703 = vmatpush1.msra.mxu0 %v272
    %4704 = vmatprep.subr.mxu0 0.0
    %4705 = vmatpush1.msra.mxu0 %v273
    %4706 = vmatprep.subr.mxu0 0.0
    %4707 = vmatpush1.msra.mxu0 %v274
    %4708 = vmatprep.subr.mxu0 0.0
    %4709 = vmatpush1.msra.mxu0 %v275
    %4710 = vmatprep.subr.mxu0 0.0
    %4711 = vmatpush1.msra.mxu0 %v276
    %4712 = vmatprep.subr.mxu0 0.0
    %4713 = vmatpush1.msra.mxu0 %v277
    %4714 = vmatprep.subr.mxu0 0.0
    %4715 = vmatpush1.msra.mxu0 0.0
    %4716 = vmatprep.subr.mxu0 0.0
    %4717 = vmatpush1.msra.mxu0 0.0
    %4718 = vmatprep.subr.mxu0 0.0
    %4719 = vmatpush1.msra.mxu0 0.0
    %4720 = vmatprep.subr.mxu0 0.0
    %4721 = vmatpush1.msra.mxu0 0.0
    %4722 = vmatprep.subr.mxu0 0.0
    %4723 = vmatpush1.msra.mxu0 0.0
    %4724 = vmatprep.subr.mxu0 0.0
    %4725 = vmatpush1.msra.mxu0 0.0
    %4726 = vmatprep.subr.mxu0 0.0
    %4727 = vmatpush1.msra.mxu0 0.0
    %4728 = vmatprep.subr.mxu0 0.0
    %4729 = vmatpush1.msra.mxu0 0.0
    %4730 = vmatprep.subr.mxu0 0.0
    %4731 = vmatpush1.msra.mxu0 0.0
    %4732 = vmatprep.subr.mxu0 0.0
    %4733 = vmatpush1.msra.mxu0 0.0
    %4734 = vmatprep.subr.mxu0 0.0
    %4735 = vmatpush1.msra.mxu0 0.0
    %4736 = vmatprep.subr.mxu0 0.0
    %4737 = vmatpush1.msra.mxu0 0.0
    %4738 = vmatprep.subr.mxu0 0.0
    %4739 = vmatpush1.msra.mxu0 0.0
    %4740 = vmatprep.subr.mxu0 0.0
    %4741 = vmatpush1.msra.mxu0 0.0
    %4742 = vmatprep.subr.mxu0 0.0
    %4743 = vmatpush1.msra.mxu0 0.0
    %4744 = vmatprep.subr.mxu0 0.0
    %4745 = vmatpush1.msra.mxu0 0.0
    %4746 = vmatprep.mubr.f32.mxu0 0.0
    %4747 = vmatmul.mubr.f32.gmra.mrb[0].mxu0 %v4676
    %v4748 = vpop.f32.mrb[0].mxu0
    %v4749 = vadd.f32 %v2160, %v4748
    %v4750 = vpop.f32.mrb[0].mxu0
    %4751 = vmatprep.mubr.f32.mxu0 0.0
    %4752 = vmatmul.mubr.f32.gmra.mrb[0].mxu0 %v4677
    %v4753 = vpop.f32.mrb[0].mxu0
    %v4754 = vadd.f32 %v2160, %v4753
    %v4755 = vpop.f32.mrb[0].mxu0
    %4756 = vmatprep.mubr.f32.mxu0 0.0
    %4757 = vmatmul.mubr.f32.gmra.mrb[0].mxu0 %v4678
    %v4758 = vpop.f32.mrb[0].mxu0
    %v4759 = vadd.f32 %v2160, %v4758
    %v4760 = vpop.f32.mrb[0].mxu0
    %4761 = vmatprep.mubr.f32.mxu0 0.0
    %4762 = vmatmul.mubr.f32.gmra.mrb[0].mxu0 %v4679
    %v4763 = vpop.f32.mrb[0].mxu0
    %v4764 = vadd.f32 %v2160, %v4763
    %v4765 = vpop.f32.mrb[0].mxu0
    %4766 = vmatprep.mubr.f32.mxu0 0.0
    %4767 = vmatmul.mubr.f32.gmra.mrb[0].mxu0 %v4680
    %v4768 = vpop.f32.mrb[0].mxu0
    %v4769 = vadd.f32 %v2160, %v4768
    %v4770 = vpop.f32.mrb[0].mxu0
    %4771 = vmatprep.mubr.f32.mxu0 0.0
    %4772 = vmatmul.mubr.f32.gmra.mrb[0].mxu0 %v4681
    %v4773 = vpop.f32.mrb[0].mxu0
    %v4774 = vadd.f32 %v2160, %v4773
    %v4775 = vpop.f32.mrb[0].mxu0
    %4776 = vdwg.mxu0
    %v4777 = vadd.f32 %v2977, %v4749
    %v4778 = vadd.f32 %v2991, %v4754
    %v4779 = vadd.f32 %v3007, %v4759
    %v4780 = vadd.f32 %v3021, %v4764
    %v4781 = vadd.f32 %v3035, %v4769
    %v4782 = vadd.f32 %v3052, %v4774
    %4783 = vadd.xlane.f32.xlu0 %v4777
    %v4784 = vpop.xlane.xlu0 %4783
    %4785 = vadd.xlane.f32.xlu0 %v4778
    %v4786 = vpop.xlane.xlu0 %4785
    %4787 = vadd.xlane.f32.xlu0 %v4779
    %v4788 = vpop.xlane.xlu0 %4787
    %4789 = vadd.xlane.f32.xlu0 %v4780
    %v4790 = vpop.xlane.xlu0 %4789
    %4791 = vadd.xlane.f32.xlu0 %v4781
    %v4792 = vpop.xlane.xlu0 %4791
    %4793 = vadd.xlane.f32.xlu0 %v4782
    %v4794 = vpop.xlane.xlu0 %4793
    %v4795 = vmul.f32 %v4784, %v2275
    %v4796 = vmul.f32 %v4786, %v2275
    %v4797 = vmul.f32 %v4788, %v2275
    %v4798 = vmul.f32 %v4790, %v2275
    %v4799 = vmul.f32 %v4792, %v2275
    %v4800 = vmul.f32 %v4794, %v2275
    %v4801 = vsub.f32 %v4777, %v4795
    %v4802 = vsub.f32 %v4778, %v4796
    %v4803 = vsub.f32 %v4779, %v4797
    %v4804 = vsub.f32 %v4780, %v4798
    %v4805 = vsub.f32 %v4781, %v4799
    %v4806 = vsub.f32 %v4782, %v4800
    %v4807 = vmul.f32 %v4801, %v4801
    %v4808 = vmul.f32 %v4802, %v4802
    %v4809 = vmul.f32 %v4803, %v4803
    %v4810 = vmul.f32 %v4804, %v4804
    %v4811 = vmul.f32 %v4805, %v4805
    %v4812 = vmul.f32 %v4806, %v4806
    %4813 = vadd.xlane.f32.xlu0 %v4807
    %v4814 = vpop.xlane.xlu0 %4813
    %4815 = vadd.xlane.f32.xlu0 %v4808
    %v4816 = vpop.xlane.xlu0 %4815
    %4817 = vadd.xlane.f32.xlu0 %v4809
    %v4818 = vpop.xlane.xlu0 %4817
    %4819 = vadd.xlane.f32.xlu0 %v4810
    %v4820 = vpop.xlane.xlu0 %4819
    %4821 = vadd.xlane.f32.xlu0 %v4811
    %v4822 = vpop.xlane.xlu0 %4821
    %4823 = vadd.xlane.f32.xlu0 %v4812
    %v4824 = vpop.xlane.xlu0 %4823
    %v4825 = vmul.f32 %v4814, %v2275
    %v4826 = vmul.f32 %v4816, %v2275
    %v4827 = vmul.f32 %v4818, %v2275
    %v4828 = vmul.f32 %v4820, %v2275
    %v4829 = vmul.f32 %v4822, %v2275
    %v4830 = vmul.f32 %v4824, %v2275
    %v4831 = vadd.f32 %v4825, 1e-05
    %v4832 = vadd.f32 %v4826, 1e-05
    %v4833 = vadd.f32 %v4827, 1e-05
    %v4834 = vadd.f32 %v4828, 1e-05
    %v4835 = vadd.f32 %v4829, 1e-05
    %v4836 = vadd.f32 %v4830, 1e-05
    %v4837 = vrsqrt.pop %v4831
    %v4838 = vrsqrt.pop %v4832
    %v4839 = vrsqrt.pop %v4833
    %v4840 = vrsqrt.pop %v4834
    %v4841 = vrsqrt.pop %v4835
    %v4842 = vrsqrt.pop %v4836
    %v4843 = vmul.f32 %v4801, %v4837
    %v4844 = vmul.f32 %v4802, %v4838
    %v4845 = vmul.f32 %v4803, %v4839
    %v4846 = vmul.f32 %v4804, %v4840
    %v4847 = vmul.f32 %v4805, %v4841
    %v4848 = vmul.f32 %v4806, %v4842
    %v4849 = vmul.f32 %v4843, %v2334
    %v4850 = vmul.f32 %v4844, %v2334
    %v4851 = vmul.f32 %v4845, %v2334
    %v4852 = vmul.f32 %v4846, %v2334
    %v4853 = vmul.f32 %v4847, %v2334
    %v4854 = vmul.f32 %v4848, %v2334
    %v4855 = vadd.f32 %v4849, %v2346
    %v4856 = vadd.f32 %v4850, %v2346
    %v4857 = vadd.f32 %v4851, %v2346
    %v4858 = vadd.f32 %v4852, %v2346
    %v4859 = vadd.f32 %v4853, %v2346
    %v4860 = vadd.f32 %v4854, %v2346
    %4861 = vmatprep.subr.mxu0 0.0
    %4862 = vmatpush1.msra.mxu0 %v281
    %4863 = vmatprep.subr.mxu0 0.0
    %4864 = vmatpush1.msra.mxu0 %v282
    %4865 = vmatprep.subr.mxu0 0.0
    %4866 = vmatpush1.msra.mxu0 %v283
    %4867 = vmatprep.subr.mxu0 0.0
    %4868 = vmatpush1.msra.mxu0 %v284
    %4869 = vmatprep.subr.mxu0 0.0
    %4870 = vmatpush1.msra.mxu0 %v285
    %4871 = vmatprep.subr.mxu0 0.0
    %4872 = vmatpush1.msra.mxu0 %v286
    %4873 = vmatprep.subr.mxu0 0.0
    %4874 = vmatpush1.msra.mxu0 %v287
    %4875 = vmatprep.subr.mxu0 0.0
    %4876 = vmatpush1.msra.mxu0 %v288
    %4877 = vmatprep.subr.mxu0 0.0
    %4878 = vmatpush1.msra.mxu0 %v289
    %4879 = vmatprep.subr.mxu0 0.0
    %4880 = vmatpush1.msra.mxu0 %v290
    %4881 = vmatprep.subr.mxu0 0.0
    %4882 = vmatpush1.msra.mxu0 %v291
    %4883 = vmatprep.subr.mxu0 0.0
    %4884 = vmatpush1.msra.mxu0 %v292
    %4885 = vmatprep.subr.mxu0 0.0
    %4886 = vmatpush1.msra.mxu0 %v293
    %4887 = vmatprep.subr.mxu0 0.0
    %4888 = vmatpush1.msra.mxu0 %v294
    %4889 = vmatprep.subr.mxu0 0.0
    %4890 = vmatpush1.msra.mxu0 %v295
    %4891 = vmatprep.subr.mxu0 0.0
    %4892 = vmatpush1.msra.mxu0 %v296
    %4893 = vmatprep.subr.mxu0 0.0
    %4894 = vmatpush1.msra.mxu0 0.0
    %4895 = vmatprep.subr.mxu0 0.0
    %4896 = vmatpush1.msra.mxu0 0.0
    %4897 = vmatprep.subr.mxu0 0.0
    %4898 = vmatpush1.msra.mxu0 0.0
    %4899 = vmatprep.subr.mxu0 0.0
    %4900 = vmatpush1.msra.mxu0 0.0
    %4901 = vmatprep.subr.mxu0 0.0
    %4902 = vmatpush1.msra.mxu0 0.0
    %4903 = vmatprep.subr.mxu0 0.0
    %4904 = vmatpush1.msra.mxu0 0.0
    %4905 = vmatprep.subr.mxu0 0.0
    %4906 = vmatpush1.msra.mxu0 0.0
    %4907 = vmatprep.subr.mxu0 0.0
    %4908 = vmatpush1.msra.mxu0 0.0
    %4909 = vmatprep.subr.mxu0 0.0
    %4910 = vmatpush1.msra.mxu0 0.0
    %4911 = vmatprep.subr.mxu0 0.0
    %4912 = vmatpush1.msra.mxu0 0.0
    %4913 = vmatprep.subr.mxu0 0.0
    %4914 = vmatpush1.msra.mxu0 0.0
    %4915 = vmatprep.subr.mxu0 0.0
    %4916 = vmatpush1.msra.mxu0 0.0
    %4917 = vmatprep.subr.mxu0 0.0
    %4918 = vmatpush1.msra.mxu0 0.0
    %4919 = vmatprep.subr.mxu0 0.0
    %4920 = vmatpush1.msra.mxu0 0.0
    %4921 = vmatprep.subr.mxu0 0.0
    %4922 = vmatpush1.msra.mxu0 0.0
    %4923 = vmatprep.subr.mxu0 0.0
    %4924 = vmatpush1.msra.mxu0 0.0
    %4925 = vmatprep.mubr.f32.mxu0 0.0
    %4926 = vmatmul.mubr.f32.gmra.mrb[0].mxu0 %v4855
    %v4927 = vpop.f32.mrb[0].mxu0
    %v4928 = vadd.f32 %v2358, %v4927
    %v4929 = vpop.f32.mrb[0].mxu0
    %4930 = vmatprep.mubr.f32.mxu0 0.0
    %4931 = vmatmul.mubr.f32.gmra.mrb[0].mxu0 %v4856
    %v4932 = vpop.f32.mrb[0].mxu0
    %v4933 = vadd.f32 %v2358, %v4932
    %v4934 = vpop.f32.mrb[0].mxu0
    %4935 = vmatprep.mubr.f32.mxu0 0.0
    %4936 = vmatmul.mubr.f32.gmra.mrb[0].mxu0 %v4857
    %v4937 = vpop.f32.mrb[0].mxu0
    %v4938 = vadd.f32 %v2358, %v4937
    %v4939 = vpop.f32.mrb[0].mxu0
    %4940 = vmatprep.mubr.f32.mxu0 0.0
    %4941 = vmatmul.mubr.f32.gmra.mrb[0].mxu0 %v4858
    %v4942 = vpop.f32.mrb[0].mxu0
    %v4943 = vadd.f32 %v2358, %v4942
    %v4944 = vpop.f32.mrb[0].mxu0
    %4945 = vmatprep.mubr.f32.mxu0 0.0
    %4946 = vmatmul.mubr.f32.gmra.mrb[0].mxu0 %v4859
    %v4947 = vpop.f32.mrb[0].mxu0
    %v4948 = vadd.f32 %v2358, %v4947
    %v4949 = vpop.f32.mrb[0].mxu0
    %4950 = vmatprep.mubr.f32.mxu0 0.0
    %4951 = vmatmul.mubr.f32.gmra.mrb[0].mxu0 %v4860
    %v4952 = vpop.f32.mrb[0].mxu0
    %v4953 = vadd.f32 %v2358, %v4952
    %v4954 = vpop.f32.mrb[0].mxu0
    %4955 = vdwg.mxu0
    %v4956 = vmax.f32 %v4928, 0.0
    %v4957 = vmax.f32 %v4933, 0.0
    %v4958 = vmax.f32 %v4938, 0.0
    %v4959 = vmax.f32 %v4943, 0.0
    %v4960 = vmax.f32 %v4948, 0.0
    %v4961 = vmax.f32 %v4953, 0.0
    %4962 = vmatprep.subr.mxu0 0.0
    %4963 = vmatpush1.msra.mxu0 %v298
    %4964 = vmatprep.subr.mxu0 0.0
    %4965 = vmatpush1.msra.mxu0 %v299
    %4966 = vmatprep.subr.mxu0 0.0
    %4967 = vmatpush1.msra.mxu0 %v300
    %4968 = vmatprep.subr.mxu0 0.0
    %4969 = vmatpush1.msra.mxu0 %v301
    %4970 = vmatprep.subr.mxu0 0.0
    %4971 = vmatpush1.msra.mxu0 %v302
    %4972 = vmatprep.subr.mxu0 0.0
    %4973 = vmatpush1.msra.mxu0 %v303
    %4974 = vmatprep.subr.mxu0 0.0
    %4975 = vmatpush1.msra.mxu0 %v304
    %4976 = vmatprep.subr.mxu0 0.0
    %4977 = vmatpush1.msra.mxu0 %v305
    %4978 = vmatprep.subr.mxu0 0.0
    %4979 = vmatpush1.msra.mxu0 %v306
    %4980 = vmatprep.subr.mxu0 0.0
    %4981 = vmatpush1.msra.mxu0 %v307
    %4982 = vmatprep.subr.mxu0 0.0
    %4983 = vmatpush1.msra.mxu0 %v308
    %4984 = vmatprep.subr.mxu0 0.0
    %4985 = vmatpush1.msra.mxu0 %v309
    %4986 = vmatprep.subr.mxu0 0.0
    %4987 = vmatpush1.msra.mxu0 %v310
    %4988 = vmatprep.subr.mxu0 0.0
    %4989 = vmatpush1.msra.mxu0 %v311
    %4990 = vmatprep.subr.mxu0 0.0
    %4991 = vmatpush1.msra.mxu0 %v312
    %4992 = vmatprep.subr.mxu0 0.0
    %4993 = vmatpush1.msra.mxu0 %v313
    %4994 = vmatprep.subr.mxu0 0.0
    %4995 = vmatpush1.msra.mxu0 0.0
    %4996 = vmatprep.subr.mxu0 0.0
    %4997 = vmatpush1.msra.mxu0 0.0
    %4998 = vmatprep.subr.mxu0 0.0
    %4999 = vmatpush1.msra.mxu0 0.0
    %5000 = vmatprep.subr.mxu0 0.0
    %5001 = vmatpush1.msra.mxu0 0.0
    %5002 = vmatprep.subr.mxu0 0.0
    %5003 = vmatpush1.msra.mxu0 0.0
    %5004 = vmatprep.subr.mxu0 0.0
    %5005 = vmatpush1.msra.mxu0 0.0
    %5006 = vmatprep.subr.mxu0 0.0
    %5007 = vmatpush1.msra.mxu0 0.0
    %5008 = vmatprep.subr.mxu0 0.0
    %5009 = vmatpush1.msra.mxu0 0.0
    %5010 = vmatprep.subr.mxu0 0.0
    %5011 = vmatpush1.msra.mxu0 0.0
    %5012 = vmatprep.subr.mxu0 0.0
    %5013 = vmatpush1.msra.mxu0 0.0
    %5014 = vmatprep.subr.mxu0 0.0
    %5015 = vmatpush1.msra.mxu0 0.0
    %5016 = vmatprep.subr.mxu0 0.0
    %5017 = vmatpush1.msra.mxu0 0.0
    %5018 = vmatprep.subr.mxu0 0.0
    %5019 = vmatpush1.msra.mxu0 0.0
    %5020 = vmatprep.subr.mxu0 0.0
    %5021 = vmatpush1.msra.mxu0 0.0
    %5022 = vmatprep.subr.mxu0 0.0
    %5023 = vmatpush1.msra.mxu0 0.0
    %5024 = vmatprep.subr.mxu0 0.0
    %5025 = vmatpush1.msra.mxu0 0.0
    %5026 = vmatprep.mubr.f32.mxu0 0.0
    %5027 = vmatmul.mubr.f32.gmra.mrb[0].mxu0 %v4956
    %v5028 = vpop.f32.mrb[0].mxu0
    %v5029 = vadd.f32 %v2465, %v5028
    %v5030 = vpop.f32.mrb[0].mxu0
    %5031 = vmatprep.mubr.f32.mxu0 0.0
    %5032 = vmatmul.mubr.f32.gmra.mrb[0].mxu0 %v4957
    %v5033 = vpop.f32.mrb[0].mxu0
    %v5034 = vadd.f32 %v2465, %v5033
    %v5035 = vpop.f32.mrb[0].mxu0
    %5036 = vmatprep.mubr.f32.mxu0 0.0
    %5037 = vmatmul.mubr.f32.gmra.mrb[0].mxu0 %v4958
    %v5038 = vpop.f32.mrb[0].mxu0
    %v5039 = vadd.f32 %v2465, %v5038
    %v5040 = vpop.f32.mrb[0].mxu0
    %5041 = vmatprep.mubr.f32.mxu0 0.0
    %5042 = vmatmul.mubr.f32.gmra.mrb[0].mxu0 %v4959
    %v5043 = vpop.f32.mrb[0].mxu0
    %v5044 = vadd.f32 %v2465, %v5043
    %v5045 = vpop.f32.mrb[0].mxu0
    %5046 = vmatprep.mubr.f32.mxu0 0.0
    %5047 = vmatmul.mubr.f32.gmra.mrb[0].mxu0 %v4960
    %v5048 = vpop.f32.mrb[0].mxu0
    %v5049 = vadd.f32 %v2465, %v5048
    %v5050 = vpop.f32.mrb[0].mxu0
    %5051 = vmatprep.mubr.f32.mxu0 0.0
    %5052 = vmatmul.mubr.f32.gmra.mrb[0].mxu0 %v4961
    %v5053 = vpop.f32.mrb[0].mxu0
    %v5054 = vadd.f32 %v2465, %v5053
    %v5055 = vpop.f32.mrb[0].mxu0
    %5056 = vdwg.mxu0
    %v5057 = vadd.f32 %v4855, %v5029
    %v5058 = vadd.f32 %v4856, %v5034
    %v5059 = vadd.f32 %v4857, %v5039
    %v5060 = vadd.f32 %v4858, %v5044
    %v5061 = vadd.f32 %v4859, %v5049
    %v5062 = vadd.f32 %v4860, %v5054
    %v5065 = vcombine.high %v5057, %v5057
    %v5067 = vunpack.c.l.s4 1966171168
    %v5068 = vunpack.c.0.s8 %v5067
    %v5069 = vlaneseq
    %v5070 = vshrl.u32 %v5069, 7
    %v5071 = vsub.s32 %v5068, %v5070
    %v5072 = vrot.slane %v5057, %v5071
    %v5074 = vunpack.c.l.s4 1966171168
    %v5075 = vunpack.c.0.s8 %v5074
    %v5076 = vlaneseq
    %v5077 = vshrl.u32 %v5076, 7
    %v5078 = vsub.s32 %v5075, %v5077
    %v5079 = vrot.slane %v5065, %v5078
    %v5080 = vcombine.high %v5072, %v5072
    %v5081 = vcombine.high %v5079, %v5079
    %v5083 = vunpack.c.l.s4 1966171168
    %v5084 = vunpack.c.0.s8 %v5083
    %v5085 = vlaneseq
    %v5086 = vshrl.u32 %v5085, 7
    %v5087 = vsub.s32 %v5084, %v5086
    %v5088 = vrot.slane %v5072, %v5087
    %v5090 = vunpack.c.l.s4 1966171168
    %v5091 = vunpack.c.0.s8 %v5090
    %v5092 = vlaneseq
    %v5093 = vshrl.u32 %v5092, 7
    %v5094 = vsub.s32 %v5091, %v5093
    %v5095 = vrot.slane %v5079, %v5094
    %v5097 = vunpack.c.l.s4 1966171168
    %v5098 = vunpack.c.0.s8 %v5097
    %v5099 = vlaneseq
    %v5100 = vshrl.u32 %v5099, 7
    %v5101 = vsub.s32 %v5098, %v5100
    %v5102 = vrot.slane %v5080, %v5101
    %v5104 = vunpack.c.l.s4 1966171168
    %v5105 = vunpack.c.0.s8 %v5104
    %v5106 = vlaneseq
    %v5107 = vshrl.u32 %v5106, 7
    %v5108 = vsub.s32 %v5105, %v5107
    %v5109 = vrot.slane %v5081, %v5108
    %v5110 = vcombine.high %v5088, %v5088
    %v5111 = vcombine.high %v5095, %v5095
    %v5112 = vcombine.high %v5102, %v5102
    %v5113 = vcombine.high %v5109, %v5109
    %v5114 = vcombine.high %v5058, %v5058
    %v5116 = vunpack.c.l.s4 1966171168
    %v5117 = vunpack.c.0.s8 %v5116
    %v5118 = vlaneseq
    %v5119 = vshrl.u32 %v5118, 7
    %v5120 = vsub.s32 %v5117, %v5119
    %v5121 = vrot.slane %v5058, %v5120
    %v5123 = vunpack.c.l.s4 1966171168
    %v5124 = vunpack.c.0.s8 %v5123
    %v5125 = vlaneseq
    %v5126 = vshrl.u32 %v5125, 7
    %v5127 = vsub.s32 %v5124, %v5126
    %v5128 = vrot.slane %v5114, %v5127
    %v5129 = vcombine.high %v5121, %v5121
    %v5130 = vcombine.high %v5128, %v5128
    %v5132 = vunpack.c.l.s4 1966171168
    %v5133 = vunpack.c.0.s8 %v5132
    %v5134 = vlaneseq
    %v5135 = vshrl.u32 %v5134, 7
    %v5136 = vsub.s32 %v5133, %v5135
    %v5137 = vrot.slane %v5121, %v5136
    %v5139 = vunpack.c.l.s4 1966171168
    %v5140 = vunpack.c.0.s8 %v5139
    %v5141 = vlaneseq
    %v5142 = vshrl.u32 %v5141, 7
    %v5143 = vsub.s32 %v5140, %v5142
    %v5144 = vrot.slane %v5128, %v5143
    %v5146 = vunpack.c.l.s4 1966171168
    %v5147 = vunpack.c.0.s8 %v5146
    %v5148 = vlaneseq
    %v5149 = vshrl.u32 %v5148, 7
    %v5150 = vsub.s32 %v5147, %v5149
    %v5151 = vrot.slane %v5129, %v5150
    %v5153 = vunpack.c.l.s4 1966171168
    %v5154 = vunpack.c.0.s8 %v5153
    %v5155 = vlaneseq
    %v5156 = vshrl.u32 %v5155, 7
    %v5157 = vsub.s32 %v5154, %v5156
    %v5158 = vrot.slane %v5130, %v5157
    %v5159 = vcombine.high %v5137, %v5137
    %v5160 = vcombine.high %v5144, %v5144
    %v5161 = vcombine.high %v5151, %v5151
    %v5162 = vcombine.high %v5158, %v5158
    %5179 = vst [vmem:[#allocation26 + $0x1] sm:$0x1] %v5088
    %5180 = vst [vmem:[#allocation26 + $0x3] sm:$0x1] %v5102
    %5181 = vst [vmem:[#allocation26 + $0x5] sm:$0x1] %v5110
    %5182 = vst [vmem:[#allocation26 + $0x7] sm:$0x1] %v5112
    %5183 = vst [vmem:[#allocation26 + $0x9] sm:$0x1] %v5095
    %5184 = vst [vmem:[#allocation26 + $0xb] sm:$0x1] %v5109
    %5185 = vst [vmem:[#allocation26 + $0xd] sm:$0x1] %v5111
    %5186 = vst [vmem:[#allocation26 + $0xf] sm:$0x1] %v5113
    %5187 = vst [vmem:[#allocation26 + $0x11] sm:$0x1] %v5137
    %5188 = vst [vmem:[#allocation26 + $0x13] sm:$0x1] %v5151
    %5189 = vst [vmem:[#allocation26 + $0x15] sm:$0x1] %v5159
    %5190 = vst [vmem:[#allocation26 + $0x17] sm:$0x1] %v5161
    %5191 = vst [vmem:[#allocation26 + $0x19] sm:$0x1] %v5144
    %5192 = vst [vmem:[#allocation26 + $0x1b] sm:$0x1] %v5158
    %5193 = vst [vmem:[#allocation26 + $0x1d] sm:$0x1] %v5160
    %5194 = vst [vmem:[#allocation26 + $0x1f] sm:$0x1] %v5162
    %v5198 = vcombine.high %v5059, %v5059
    %v5200 = vunpack.c.l.s4 1966171168
    %v5201 = vunpack.c.0.s8 %v5200
    %v5202 = vlaneseq
    %v5203 = vshrl.u32 %v5202, 7
    %v5204 = vsub.s32 %v5201, %v5203
    %v5205 = vrot.slane %v5059, %v5204
    %v5207 = vunpack.c.l.s4 1966171168
    %v5208 = vunpack.c.0.s8 %v5207
    %v5209 = vlaneseq
    %v5210 = vshrl.u32 %v5209, 7
    %v5211 = vsub.s32 %v5208, %v5210
    %v5212 = vrot.slane %v5198, %v5211
    %v5213 = vcombine.high %v5205, %v5205
    %v5214 = vcombine.high %v5212, %v5212
    %v5216 = vunpack.c.l.s4 1966171168
    %v5217 = vunpack.c.0.s8 %v5216
    %v5218 = vlaneseq
    %v5219 = vshrl.u32 %v5218, 7
    %v5220 = vsub.s32 %v5217, %v5219
    %v5221 = vrot.slane %v5205, %v5220
    %v5223 = vunpack.c.l.s4 1966171168
    %v5224 = vunpack.c.0.s8 %v5223
    %v5225 = vlaneseq
    %v5226 = vshrl.u32 %v5225, 7
    %v5227 = vsub.s32 %v5224, %v5226
    %v5228 = vrot.slane %v5212, %v5227
    %v5230 = vunpack.c.l.s4 1966171168
    %v5231 = vunpack.c.0.s8 %v5230
    %v5232 = vlaneseq
    %v5233 = vshrl.u32 %v5232, 7
    %v5234 = vsub.s32 %v5231, %v5233
    %v5235 = vrot.slane %v5213, %v5234
    %v5237 = vunpack.c.l.s4 1966171168
    %v5238 = vunpack.c.0.s8 %v5237
    %v5239 = vlaneseq
    %v5240 = vshrl.u32 %v5239, 7
    %v5241 = vsub.s32 %v5238, %v5240
    %v5242 = vrot.slane %v5214, %v5241
    %v5243 = vcombine.high %v5221, %v5221
    %v5244 = vcombine.high %v5228, %v5228
    %v5245 = vcombine.high %v5235, %v5235
    %v5246 = vcombine.high %v5242, %v5242
    %v5247 = vcombine.high %v5060, %v5060
    %v5249 = vunpack.c.l.s4 1966171168
    %v5250 = vunpack.c.0.s8 %v5249
    %v5251 = vlaneseq
    %v5252 = vshrl.u32 %v5251, 7
    %v5253 = vsub.s32 %v5250, %v5252
    %v5254 = vrot.slane %v5060, %v5253
    %v5256 = vunpack.c.l.s4 1966171168
    %v5257 = vunpack.c.0.s8 %v5256
    %v5258 = vlaneseq
    %v5259 = vshrl.u32 %v5258, 7
    %v5260 = vsub.s32 %v5257, %v5259
    %v5261 = vrot.slane %v5247, %v5260
    %v5262 = vcombine.high %v5254, %v5254
    %v5263 = vcombine.high %v5261, %v5261
    %v5265 = vunpack.c.l.s4 1966171168
    %v5266 = vunpack.c.0.s8 %v5265
    %v5267 = vlaneseq
    %v5268 = vshrl.u32 %v5267, 7
    %v5269 = vsub.s32 %v5266, %v5268
    %v5270 = vrot.slane %v5254, %v5269
    %v5272 = vunpack.c.l.s4 1966171168
    %v5273 = vunpack.c.0.s8 %v5272
    %v5274 = vlaneseq
    %v5275 = vshrl.u32 %v5274, 7
    %v5276 = vsub.s32 %v5273, %v5275
    %v5277 = vrot.slane %v5261, %v5276
    %v5279 = vunpack.c.l.s4 1966171168
    %v5280 = vunpack.c.0.s8 %v5279
    %v5281 = vlaneseq
    %v5282 = vshrl.u32 %v5281, 7
    %v5283 = vsub.s32 %v5280, %v5282
    %v5284 = vrot.slane %v5262, %v5283
    %v5286 = vunpack.c.l.s4 1966171168
    %v5287 = vunpack.c.0.s8 %v5286
    %v5288 = vlaneseq
    %v5289 = vshrl.u32 %v5288, 7
    %v5290 = vsub.s32 %v5287, %v5289
    %v5291 = vrot.slane %v5263, %v5290
    %v5292 = vcombine.high %v5270, %v5270
    %v5293 = vcombine.high %v5277, %v5277
    %v5294 = vcombine.high %v5284, %v5284
    %v5295 = vcombine.high %v5291, %v5291
    %v5296 = vcombine.high %v5061, %v5061
    %v5298 = vunpack.c.l.s4 1966171168
    %v5299 = vunpack.c.0.s8 %v5298
    %v5300 = vlaneseq
    %v5301 = vshrl.u32 %v5300, 7
    %v5302 = vsub.s32 %v5299, %v5301
    %v5303 = vrot.slane %v5061, %v5302
    %v5305 = vunpack.c.l.s4 1966171168
    %v5306 = vunpack.c.0.s8 %v5305
    %v5307 = vlaneseq
    %v5308 = vshrl.u32 %v5307, 7
    %v5309 = vsub.s32 %v5306, %v5308
    %v5310 = vrot.slane %v5296, %v5309
    %v5311 = vcombine.high %v5303, %v5303
    %v5312 = vcombine.high %v5310, %v5310
    %v5314 = vunpack.c.l.s4 1966171168
    %v5315 = vunpack.c.0.s8 %v5314
    %v5316 = vlaneseq
    %v5317 = vshrl.u32 %v5316, 7
    %v5318 = vsub.s32 %v5315, %v5317
    %v5319 = vrot.slane %v5303, %v5318
    %v5321 = vunpack.c.l.s4 1966171168
    %v5322 = vunpack.c.0.s8 %v5321
    %v5323 = vlaneseq
    %v5324 = vshrl.u32 %v5323, 7
    %v5325 = vsub.s32 %v5322, %v5324
    %v5326 = vrot.slane %v5310, %v5325
    %v5328 = vunpack.c.l.s4 1966171168
    %v5329 = vunpack.c.0.s8 %v5328
    %v5330 = vlaneseq
    %v5331 = vshrl.u32 %v5330, 7
    %v5332 = vsub.s32 %v5329, %v5331
    %v5333 = vrot.slane %v5311, %v5332
    %v5335 = vunpack.c.l.s4 1966171168
    %v5336 = vunpack.c.0.s8 %v5335
    %v5337 = vlaneseq
    %v5338 = vshrl.u32 %v5337, 7
    %v5339 = vsub.s32 %v5336, %v5338
    %v5340 = vrot.slane %v5312, %v5339
    %v5341 = vcombine.high %v5319, %v5319
    %v5342 = vcombine.high %v5326, %v5326
    %v5343 = vcombine.high %v5333, %v5333
    %v5344 = vcombine.high %v5340, %v5340
    %5369 = vst [vmem:[#allocation23 + $0x1] sm:$0x1] %v5221
    %5370 = vst [vmem:[#allocation23 + $0x3] sm:$0x1] %v5235
    %5371 = vst [vmem:[#allocation23 + $0x5] sm:$0x1] %v5243
    %5372 = vst [vmem:[#allocation23 + $0x7] sm:$0x1] %v5245
    %5373 = vst [vmem:[#allocation23 + $0x9] sm:$0x1] %v5228
    %5374 = vst [vmem:[#allocation23 + $0xb] sm:$0x1] %v5242
    %5375 = vst [vmem:[#allocation23 + $0xd] sm:$0x1] %v5244
    %5376 = vst [vmem:[#allocation23 + $0xf] sm:$0x1] %v5246
    %5377 = vst [vmem:[#allocation23 + $0x11] sm:$0x1] %v5270
    %5378 = vst [vmem:[#allocation23 + $0x13] sm:$0x1] %v5284
    %5379 = vst [vmem:[#allocation23 + $0x15] sm:$0x1] %v5292
    %5380 = vst [vmem:[#allocation23 + $0x17] sm:$0x1] %v5294
    %5381 = vst [vmem:[#allocation23 + $0x19] sm:$0x1] %v5277
    %5382 = vst [vmem:[#allocation23 + $0x1b] sm:$0x1] %v5291
    %5383 = vst [vmem:[#allocation23 + $0x1d] sm:$0x1] %v5293
    %5384 = vst [vmem:[#allocation23 + $0x1f] sm:$0x1] %v5295
    %5385 = vst [vmem:[#allocation23 + $0x21] sm:$0x1] %v5319
    %5386 = vst [vmem:[#allocation23 + $0x23] sm:$0x1] %v5333
    %5387 = vst [vmem:[#allocation23 + $0x25] sm:$0x1] %v5341
    %5388 = vst [vmem:[#allocation23 + $0x27] sm:$0x1] %v5343
    %5389 = vst [vmem:[#allocation23 + $0x29] sm:$0x1] %v5326
    %5390 = vst [vmem:[#allocation23 + $0x2b] sm:$0x1] %v5340
    %5391 = vst [vmem:[#allocation23 + $0x2d] sm:$0x1] %v5342
    %5392 = vst [vmem:[#allocation23 + $0x2f] sm:$0x1] %v5344
    %v5394 = vcombine.high %v5062, %v5062
    %v5396 = vunpack.c.l.s4 1966171168
    %v5397 = vunpack.c.0.s8 %v5396
    %v5398 = vlaneseq
    %v5399 = vshrl.u32 %v5398, 7
    %v5400 = vsub.s32 %v5397, %v5399
    %v5401 = vrot.slane %v5062, %v5400
    %v5403 = vunpack.c.l.s4 1966171168
    %v5404 = vunpack.c.0.s8 %v5403
    %v5405 = vlaneseq
    %v5406 = vshrl.u32 %v5405, 7
    %v5407 = vsub.s32 %v5404, %v5406
    %v5408 = vrot.slane %v5394, %v5407
    %v5409 = vcombine.high %v5401, %v5401
    %v5410 = vcombine.high %v5408, %v5408
    %v5412 = vunpack.c.l.s4 1966171168
    %v5413 = vunpack.c.0.s8 %v5412
    %v5414 = vlaneseq
    %v5415 = vshrl.u32 %v5414, 7
    %v5416 = vsub.s32 %v5413, %v5415
    %v5417 = vrot.slane %v5401, %v5416
    %v5419 = vunpack.c.l.s4 1966171168
    %v5420 = vunpack.c.0.s8 %v5419
    %v5421 = vlaneseq
    %v5422 = vshrl.u32 %v5421, 7
    %v5423 = vsub.s32 %v5420, %v5422
    %v5424 = vrot.slane %v5408, %v5423
    %v5426 = vunpack.c.l.s4 1966171168
    %v5427 = vunpack.c.0.s8 %v5426
    %v5428 = vlaneseq
    %v5429 = vshrl.u32 %v5428, 7
    %v5430 = vsub.s32 %v5427, %v5429
    %v5431 = vrot.slane %v5409, %v5430
    %v5433 = vunpack.c.l.s4 1966171168
    %v5434 = vunpack.c.0.s8 %v5433
    %v5435 = vlaneseq
    %v5436 = vshrl.u32 %v5435, 7
    %v5437 = vsub.s32 %v5434, %v5436
    %v5438 = vrot.slane %v5410, %v5437
    %v5439 = vcombine.high %v5417, %v5417
    %v5440 = vcombine.high %v5424, %v5424
    %v5441 = vcombine.high %v5431, %v5431
    %v5442 = vcombine.high %v5438, %v5438
    %5451 = vst [vmem:[#allocation24 + $0x1] sm:$0x1] %v5417
    %5452 = vst [vmem:[#allocation24 + $0x3] sm:$0x1] %v5431
    %5453 = vst [vmem:[#allocation24 + $0x5] sm:$0x1] %v5439
    %5454 = vst [vmem:[#allocation24 + $0x7] sm:$0x1] %v5441
    %5455 = vst [vmem:[#allocation24 + $0x9] sm:$0x1] %v5424
    %5456 = vst [vmem:[#allocation24 + $0xb] sm:$0x1] %v5438
    %5457 = vst [vmem:[#allocation24 + $0xd] sm:$0x1] %v5440
    %5458 = vst [vmem:[#allocation24 + $0xf] sm:$0x1] %v5442
    // Predicated region
    $region106: #{vlsa_adapter_depth_forward.1} parent=1 // pred_check
      _
    $region107: #{vlsa_adapter_depth_forward.1} parent=1 // pred_check_branch
      %5460 = sbr.rel (0) target = $region109
    $region108: #{vlsa_adapter_depth_forward.1} parent=1 // pred_region
      %s5462 = ssub.s32 768, 768
      %5463 = vsyncadd [#allocation4], %s5462
      %s5464 = sshll.u32 [#allocation23], 4
      %s5465 = int_to_ptr.vmem [resolvable:$true] %s5464
      %5470 = dma.vmem_to_hbm [thread:$0]  %s5465, 768, %s13, [#allocation4], 32, 32, 2
    $region109: #{vlsa_adapter_depth_forward.1} parent=1 // pred_fallthru
      _
    // Predicated region
    $region110: #{vlsa_adapter_depth_forward.1} parent=1 // pred_check
      _
    $region111: #{vlsa_adapter_depth_forward.1} parent=1 // pred_check_branch
      %5472 = sbr.rel (0) target = $region113
    $region112: #{vlsa_adapter_depth_forward.1} parent=1 // pred_region
      %s5474 = ssub.s32 256, 256
      %5475 = vsyncadd [#allocation25], %s5474
      %s5476 = sshll.u32 [#allocation24], 4
      %s5477 = int_to_ptr.vmem [resolvable:$true] %s5476
      %5482 = dma.vmem_to_hbm [thread:$0]  %s5477, 256, %s14, [#allocation25], 32, 32, 2
    $region113: #{vlsa_adapter_depth_forward.1} parent=1 // pred_fallthru
      _
    // Predicated region
    $region114: #{vlsa_adapter_depth_forward.1} parent=1 // pred_check
      _
    $region115: #{vlsa_adapter_depth_forward.1} parent=1 // pred_check_branch
      %5484 = sbr.rel (0) target = $region117
    $region116: #{vlsa_adapter_depth_forward.1} parent=1 // pred_region
      %s5486 = ssub.s32 512, 512
      %5487 = vsyncadd [#allocation25], %s5486
      %s5488 = sshll.u32 [#allocation26], 4
      %s5489 = int_to_ptr.vmem [resolvable:$true] %s5488
      %5494 = dma.vmem_to_hbm [thread:$0]  %s5489, 512, %s15, [#allocation25], 32, 32, 2
    $region117: #{vlsa_adapter_depth_forward.1} parent=1 // pred_fallthru
      _
    // Predicated region
    $region118: #{vlsa_adapter_depth_forward.1} parent=1 // pred_check
      _
    $region119: #{vlsa_adapter_depth_forward.1} parent=1 // pred_check_branch
      %5496 = sbr.rel (0) target = $region121
    $region120: #{vlsa_adapter_depth_forward.1} parent=1 // pred_region
      %5497 = dma.done [#allocation4], 768
    $region121: #{vlsa_adapter_depth_forward.1} parent=1 // pred_fallthru
      _
    // Predicated region
    $region122: #{vlsa_adapter_depth_forward.1} parent=1 // pred_check
      _
    $region123: #{vlsa_adapter_depth_forward.1} parent=1 // pred_check_branch
      %5499 = sbr.rel (0) target = $region125
    $region124: #{vlsa_adapter_depth_forward.1} parent=1 // pred_region
      %5500 = dma.done [#allocation25], 256
    $region125: #{vlsa_adapter_depth_forward.1} parent=1 // pred_fallthru
      _
    // Predicated region
    $region126: #{vlsa_adapter_depth_forward.1} parent=1 // pred_check
      _
    $region127: #{vlsa_adapter_depth_forward.1} parent=1 // pred_check_branch
      %5502 = sbr.rel (0) target = $region129
    $region128: #{vlsa_adapter_depth_forward.1} parent=1 // pred_region
      %5503 = dma.done [#allocation25], 512
    $region129: #{vlsa_adapter_depth_forward.1} parent=1 // pred_fallthru
      _
    %5504 = vsyncpa [#allocation3], 1
    %5505 = vsyncpa [#allocation6], 1
    %5506 = vsyncpa [#allocation9], 1
    %5507 = vsyncpa [#allocation12], 1
    %5508 = vsyncpa [#allocation15], 1
    %5509 = vsyncpa [#allocation18], 1
    %5510 = vsyncpa [#allocation21], 1
    %5511 = vsyncpa [#allocation4], 1
    %5512 = vsyncpa [#allocation25], 1

</llo_original>
